<compile_context>
chip_gen: v5e
topology: v5e:2x2
jax: 0.10.0
libtpu: 0.0.40
codegen_flags: <defaults>
</compile_context>

<pallas_src>
import functools
import math

import numpy as np
import jax
import jax.numpy as jnp
from jax import lax
from jax.experimental import pallas as pl
from jax.experimental.pallas import tpu as pltpu

# --- module defaults (from nn.TransformerEncoderLayer / PositionalEncoding) ---
NHEAD = 8
DIM_FF = 2048
LN_EPS = 1e-5
MAX_LEN = 24 * 60


# ----------------------------- helpers ------------------------------------- #
def _build_pe_np(d_model, length):
    # Matches PositionalEncoding buffer: pe[pos, 0::2]=sin, pe[pos, 1::2]=cos.
    pos = np.arange(length, dtype=np.float32)[:, None]
    div = np.exp(np.arange(0, d_model, 2, dtype=np.float32)
                 * (-math.log(10000.0) / d_model))
    pe = np.zeros((length, d_model), np.float32)
    pe[:, 0::2] = np.sin(pos * div)
    pe[:, 1::2] = np.cos(pos * div)
    return pe


def _layernorm(x, g, b):
    mu = jnp.mean(x, axis=-1, keepdims=True)
    var = jnp.mean(jnp.square(x - mu), axis=-1, keepdims=True)
    return (x - mu) * lax.rsqrt(var + LN_EPS) * g + b


# ----------------------------- fused Pallas kernel -------------------------- #
def _encoder_kernel(
    x_ref, pe_ref,
    fcin_w_ref, fcin_b_ref, lnin_g_ref, lnin_b_ref,
    in_w_ref, in_b_ref, out_w_ref, out_b_ref,
    ff1_w_ref, ff1_b_ref, ff2_w_ref, ff2_b_ref,
    n1_g_ref, n1_b_ref, n2_g_ref, n2_b_ref,
    fcout_w_ref, fcout_b_ref,
    o_ref,
    h_ref,                      # VMEM scratch: (D1, H) f32, resident across the layer axis
    *, nhead, dh):
    H = nhead * dh
    seq = h_ref.shape[0]
    layer = pl.program_id(1)

    # ---- fc_in -> LayerNorm -> ReLU -> + positional encoding (first layer step only) ----
    @pl.when(layer == 0)
    def _init():
        xb = x_ref[0].astype(jnp.bfloat16)
        h0 = jnp.dot(xb, fcin_w_ref[...], preferred_element_type=jnp.float32)
        h0 = h0 + fcin_b_ref[...]
        h0 = _layernorm(h0, lnin_g_ref[...], lnin_b_ref[...])
        # pe_ref[0] is this D0-group's single PE row, broadcast over the D1 rows.
        h_ref[...] = jnp.maximum(h0, 0.0) + pe_ref[0]
        # TODO(synk): dropout (PE p=0.3, encoder p=0.1) is eval-mode identity here.

    h = h_ref[...]                                            # (seq, H) f32

    # --- self-attention sub-block (post-norm) ---
    qkv = jnp.dot(h.astype(jnp.bfloat16), in_w_ref[0],
                  preferred_element_type=jnp.float32) + in_b_ref[0]     # (seq, 3H)
    # 1/sqrt(dh) is pre-folded into the Q weights/bias on the host.
    q = qkv[:, :H]
    k = qkv[:, H:2 * H]
    v = qkv[:, 2 * H:]

    # Per-head scores, stacked along sublanes -> one vectorized softmax pass.
    s_parts = []
    for hd in range(nhead):
        sl = slice(hd * dh, (hd + 1) * dh)
        s_parts.append(lax.dot_general(q[:, sl], k[:, sl],
                                       (((1,), (1,)), ((), ())),
                                       preferred_element_type=jnp.float32))
    s = jnp.concatenate(s_parts, axis=0)                      # (nhead*seq, seq)
    s = s - jnp.max(s, axis=-1, keepdims=True)
    p = jnp.exp(s)
    p = p * pl.reciprocal(jnp.sum(p, axis=-1, keepdims=True), approx=True)

    # Per-head PV, concatenated along lanes -> ONE fused K=H output projection.
    o_parts = []
    for hd in range(nhead):
        sl = slice(hd * dh, (hd + 1) * dh)
        o_parts.append(jnp.dot(p[hd * seq:(hd + 1) * seq, :], v[:, sl],
                               preferred_element_type=jnp.float32))
    attn = jnp.concatenate(o_parts, axis=-1)                  # (seq, H)
    attn = jnp.dot(attn.astype(jnp.bfloat16), out_w_ref[0],
                   preferred_element_type=jnp.float32) + out_b_ref[0]
    h = _layernorm(h + attn, n1_g_ref[0], n1_b_ref[0])        # norm1(x + attn)

    # --- feed-forward sub-block ---
    f = jnp.dot(h.astype(jnp.bfloat16), ff1_w_ref[0],
                preferred_element_type=jnp.float32) + ff1_b_ref[0]
    f = jnp.maximum(f, 0.0)
    f = jnp.dot(f.astype(jnp.bfloat16), ff2_w_ref[0],
                preferred_element_type=jnp.float32) + ff2_b_ref[0]
    h = _layernorm(h + f, n2_g_ref[0], n2_b_ref[0])           # norm2(x + ff)
    h_ref[...] = h

    # ---- fc_out (lane-dense, padded to a multiple of 128) on the last layer step ----
    @pl.when(layer == pl.num_programs(1) - 1)
    def _final():
        o_ref[0] = (jnp.dot(h.astype(jnp.bfloat16), fcout_w_ref[...],
                            preferred_element_type=jnp.float32) + fcout_b_ref[...])


# ------------------------------ model glue --------------------------------- #
def transformer_forward(x, params):
    D0, D1, F = x.shape
    H = params["ln_g"].shape[0]
    dh = H // NHEAD
    L = params["in_w"].shape[0]
    FF = params["ff1_w"].shape[-1]
    O = params["fc_out_w"].shape[1]
    O_pad = ((O + 127) // 128) * 128
    wdt = jnp.bfloat16

    # Fold the softmax scale 1/sqrt(dh) into the Q columns of in_proj (weight AND bias).
    scale = 1.0 / math.sqrt(dh)
    in_w = jnp.concatenate([params["in_w"][..., :H] * scale,
                            params["in_w"][..., H:]], axis=-1)
    in_b = jnp.concatenate([params["in_b"][..., :H] * scale,
                            params["in_b"][..., H:]], axis=-1)

    # Positional encoding as a (D0, 1, H) table (broadcast in-kernel over dim 1).
    pe = jnp.asarray(_build_pe_np(H, MAX_LEN)[:D0]).reshape(D0, 1, H)

    # Lane-dense padded fc_out (extra columns are zero; sliced off below).
    fc_out_w = jnp.zeros((H, O_pad), jnp.float32).at[:, :O].set(params["fc_out_w"])
    fc_out_b = jnp.zeros((1, O_pad), jnp.float32).at[0, :O].set(params["fc_out_b"])

    args = (
        x.astype(jnp.float32),
        pe,
        params["fc_in_w"].astype(wdt), params["fc_in_b"].reshape(1, H),
        params["ln_g"].reshape(1, H), params["ln_b"].reshape(1, H),
        in_w.astype(wdt), in_b.reshape(L, 1, 3 * H),
        params["out_w"].astype(wdt), params["out_b"].reshape(L, 1, H),
        params["ff1_w"].astype(wdt), params["ff1_b"].reshape(L, 1, FF),
        params["ff2_w"].astype(wdt), params["ff2_b"].reshape(L, 1, H),
        params["n1_g"].reshape(L, 1, H), params["n1_b"].reshape(L, 1, H),
        params["n2_g"].reshape(L, 1, H), params["n2_b"].reshape(L, 1, H),
        fc_out_w.astype(wdt), fc_out_b,
    )

    in_specs = [
        pl.BlockSpec((1, D1, F), lambda d, l: (d, 0, 0)),       # x (per D0 group)
        pl.BlockSpec((1, 1, H), lambda d, l: (d, 0, 0)),        # pe row for this group
        pl.BlockSpec((F, H), lambda d, l: (0, 0)),              # fc_in_w
        pl.BlockSpec((1, H), lambda d, l: (0, 0)),              # fc_in_b
        pl.BlockSpec((1, H), lambda d, l: (0, 0)),              # ln gamma
        pl.BlockSpec((1, H), lambda d, l: (0, 0)),              # ln beta
        pl.BlockSpec((1, H, 3 * H), lambda d, l: (l, 0, 0)),    # in_proj W (per layer)
        pl.BlockSpec((1, 1, 3 * H), lambda d, l: (l, 0, 0)),    # in_proj b
        pl.BlockSpec((1, H, H), lambda d, l: (l, 0, 0)),        # out_proj W
        pl.BlockSpec((1, 1, H), lambda d, l: (l, 0, 0)),        # out_proj b
        pl.BlockSpec((1, H, FF), lambda d, l: (l, 0, 0)),       # linear1 W
        pl.BlockSpec((1, 1, FF), lambda d, l: (l, 0, 0)),       # linear1 b
        pl.BlockSpec((1, FF, H), lambda d, l: (l, 0, 0)),       # linear2 W
        pl.BlockSpec((1, 1, H), lambda d, l: (l, 0, 0)),        # linear2 b
        pl.BlockSpec((1, 1, H), lambda d, l: (l, 0, 0)),        # norm1 gamma
        pl.BlockSpec((1, 1, H), lambda d, l: (l, 0, 0)),        # norm1 beta
        pl.BlockSpec((1, 1, H), lambda d, l: (l, 0, 0)),        # norm2 gamma
        pl.BlockSpec((1, 1, H), lambda d, l: (l, 0, 0)),        # norm2 beta
        pl.BlockSpec((H, O_pad), lambda d, l: (0, 0)),          # fc_out_w (padded)
        pl.BlockSpec((1, O_pad), lambda d, l: (0, 0)),          # fc_out_b (padded)
    ]

    out = pl.pallas_call(
        functools.partial(_encoder_kernel, nhead=NHEAD, dh=dh),
        out_shape=jax.ShapeDtypeStruct((D0, D1, O_pad), jnp.float32),
        grid=(D0, L),
        in_specs=in_specs,
        out_specs=pl.BlockSpec((1, D1, O_pad), lambda d, l: (d, 0, 0)),
        scratch_shapes=[pltpu.VMEM((D1, H), jnp.float32)],
        compiler_params=pltpu.CompilerParams(
            dimension_semantics=("parallel", "arbitrary")),
    )(*args)
    return out[..., :O].astype(jnp.float32)


def _reference_forward(x, params):
    # Pure-JAX f32 reference (no Pallas) used only for a correctness check.
    D0, D1, _ = x.shape
    H = params["ln_g"].shape[0]
    dh = H // NHEAD
    L = params["in_w"].shape[0]

    def ln(t, g, b):
        mu = t.mean(-1, keepdims=True)
        var = ((t - mu) ** 2).mean(-1, keepdims=True)
        return (t - mu) / jnp.sqrt(var + LN_EPS) * g + b

    h = x @ params["fc_in_w"] + params["fc_in_b"]
    h = ln(h, params["ln_g"], params["ln_b"])
    h = jax.nn.relu(h)
    h = h + jnp.asarray(_build_pe_np(H, MAX_LEN)[:D0])[:, None, :]
    for l in range(L):
        qkv = h @ params["in_w"][l] + params["in_b"][l]
        q, k, v = jnp.split(qkv, 3, axis=-1)

        def heads(t):
            return t.reshape(D0, D1, NHEAD, dh).transpose(0, 2, 1, 3)

        s = jnp.einsum("bhqd,bhkd->bhqk", heads(q), heads(k)) / math.sqrt(dh)
        p = jax.nn.softmax(s, axis=-1)
        o = jnp.einsum("bhqk,bhkd->bhqd", p, heads(v))
        o = o.transpose(0, 2, 1, 3).reshape(D0, D1, H)
        a = o @ params["out_w"][l] + params["out_b"][l]
        h = ln(h + a, params["n1_g"][l], params["n1_b"][l])
        f = jax.nn.relu(h @ params["ff1_w"][l] + params["ff1_b"][l])
        f = f @ params["ff2_w"][l] + params["ff2_b"][l]
        h = ln(h + f, params["n2_g"][l], params["n2_b"][l])
    return h @ params["fc_out_w"] + params["fc_out_b"]


def init_params(key, input_size, hidden_size, out_size, n_layers):
    H = hidden_size
    keys = jax.random.split(key, 2 + 4 * n_layers)

    def dense(k, fan_in, fan_out):
        kw, kb = jax.random.split(k)
        bound = 1.0 / math.sqrt(fan_in)
        w = jax.random.uniform(kw, (fan_in, fan_out), jnp.float32, -bound, bound)
        b = jax.random.uniform(kb, (fan_out,), jnp.float32, -bound, bound)
        return w, b

    p = {}
    p["fc_in_w"], p["fc_in_b"] = dense(keys[0], input_size, H)
    p["ln_g"] = jnp.ones((H,), jnp.float32)
    p["ln_b"] = jnp.zeros((H,), jnp.float32)

    in_w, in_b, out_w, out_b = [], [], [], []
    ff1_w, ff1_b, ff2_w, ff2_b = [], [], [], []
    for l in range(n_layers):
        k0, k1, k2, k3 = keys[2 + 4 * l: 2 + 4 * l + 4]
        w, b = dense(k0, H, 3 * H); in_w.append(w); in_b.append(b)     # MHA in_proj
        w, b = dense(k1, H, H); out_w.append(w); out_b.append(b)       # MHA out_proj
        w, b = dense(k2, H, DIM_FF); ff1_w.append(w); ff1_b.append(b)  # linear1
        w, b = dense(k3, DIM_FF, H); ff2_w.append(w); ff2_b.append(b)  # linear2
    p["in_w"], p["in_b"] = jnp.stack(in_w), jnp.stack(in_b)
    p["out_w"], p["out_b"] = jnp.stack(out_w), jnp.stack(out_b)
    p["ff1_w"], p["ff1_b"] = jnp.stack(ff1_w), jnp.stack(ff1_b)
    p["ff2_w"], p["ff2_b"] = jnp.stack(ff2_w), jnp.stack(ff2_b)
    p["n1_g"] = jnp.ones((n_layers, H), jnp.float32)
    p["n1_b"] = jnp.zeros((n_layers, H), jnp.float32)
    p["n2_g"] = jnp.ones((n_layers, H), jnp.float32)
    p["n2_b"] = jnp.zeros((n_layers, H), jnp.float32)
    p["fc_out_w"], p["fc_out_b"] = dense(keys[1], H, out_size)
    return p


if __name__ == "__main__":
    input_size, hidden_size, out_size, n_layers = 16, 32, 5, 2
    D0, D1 = 2, 8  # dim 0: batch-like (PE varies here), dim 1: attended sequence dim

    key = jax.random.PRNGKey(0)
    kx, kp = jax.random.split(key)
    x = jax.random.normal(kx, (D0, D1, input_size), jnp.float32)
    params = init_params(kp, input_size, hidden_size, out_size, n_layers)

    fwd = jax.jit(transformer_forward)
    y = fwd(x, params)
    jax.block_until_ready(y)
    assert y.shape == (D0, D1, out_size), y.shape
    assert y.dtype == jnp.float32

    y_ref = jax.jit(_reference_forward)(x, params)
    jax.block_until_ready(y_ref)
    assert bool(jnp.all(jnp.isfinite(y)))
    # Tolerance covers bf16 matmul weights + approx-reciprocal softmax vs. the f32 reference.
    assert bool(jnp.allclose(y, y_ref, rtol=3e-2, atol=3e-2)), (
        float(jnp.max(jnp.abs(y - y_ref))))
    print("KERNEL_OK")
</pallas_src>

<mosaic_0001>
module attributes {stable_mosaic.version = 11 : i64} {
  func.func @_encoder_kernel(%arg0: i32, %arg1: i32, %arg2: memref<1x8x16xf32, #tpu.memory_space<vmem>>, %arg3: memref<1x1x32xf32, #tpu.memory_space<vmem>>, %arg4: memref<16x32xbf16, #tpu.memory_space<vmem>>, %arg5: memref<1x32xf32, #tpu.memory_space<vmem>>, %arg6: memref<1x32xf32, #tpu.memory_space<vmem>>, %arg7: memref<1x32xf32, #tpu.memory_space<vmem>>, %arg8: memref<1x32x96xbf16, #tpu.memory_space<vmem>>, %arg9: memref<1x1x96xf32, #tpu.memory_space<vmem>>, %arg10: memref<1x32x32xbf16, #tpu.memory_space<vmem>>, %arg11: memref<1x1x32xf32, #tpu.memory_space<vmem>>, %arg12: memref<1x32x2048xbf16, #tpu.memory_space<vmem>>, %arg13: memref<1x1x2048xf32, #tpu.memory_space<vmem>>, %arg14: memref<1x2048x32xbf16, #tpu.memory_space<vmem>>, %arg15: memref<1x1x32xf32, #tpu.memory_space<vmem>>, %arg16: memref<1x1x32xf32, #tpu.memory_space<vmem>>, %arg17: memref<1x1x32xf32, #tpu.memory_space<vmem>>, %arg18: memref<1x1x32xf32, #tpu.memory_space<vmem>>, %arg19: memref<1x1x32xf32, #tpu.memory_space<vmem>>, %arg20: memref<32x128xbf16, #tpu.memory_space<vmem>>, %arg21: memref<1x128xf32, #tpu.memory_space<vmem>>, %arg22: memref<1x8x128xf32, #tpu.memory_space<vmem>>, %arg23: memref<8x32xf32, #tpu.memory_space<vmem>>) attributes {dimension_semantics = [#tpu.dimension_semantics<parallel>, #tpu.dimension_semantics<arbitrary>], iteration_bounds = array<i64: 2, 2>, scalar_prefetch = 0 : i64, scratch_operands = 1 : i64, tpu.core_type = #tpu.core_type<tc>, window_params = [{transform_indices = @transform_0, window_bounds = array<i64: 1, 8, 16>}, {transform_indices = @transform_1, window_bounds = array<i64: 1, 1, 32>}, {pipeline_mode = #tpu.pipeline_mode<synchronous>, transform_indices = @transform_2, window_bounds = array<i64: 16, 32>}, {pipeline_mode = #tpu.pipeline_mode<synchronous>, transform_indices = @transform_3, window_bounds = array<i64: 1, 32>}, {pipeline_mode = #tpu.pipeline_mode<synchronous>, transform_indices = @transform_4, window_bounds = array<i64: 1, 32>}, {pipeline_mode = #tpu.pipeline_mode<synchronous>, transform_indices = @transform_5, window_bounds = array<i64: 1, 32>}, {transform_indices = @transform_6, window_bounds = array<i64: 1, 32, 96>}, {transform_indices = @transform_7, window_bounds = array<i64: 1, 1, 96>}, {transform_indices = @transform_8, window_bounds = array<i64: 1, 32, 32>}, {transform_indices = @transform_9, window_bounds = array<i64: 1, 1, 32>}, {transform_indices = @transform_10, window_bounds = array<i64: 1, 32, 2048>}, {transform_indices = @transform_11, window_bounds = array<i64: 1, 1, 2048>}, {transform_indices = @transform_12, window_bounds = array<i64: 1, 2048, 32>}, {transform_indices = @transform_13, window_bounds = array<i64: 1, 1, 32>}, {transform_indices = @transform_14, window_bounds = array<i64: 1, 1, 32>}, {transform_indices = @transform_15, window_bounds = array<i64: 1, 1, 32>}, {transform_indices = @transform_16, window_bounds = array<i64: 1, 1, 32>}, {transform_indices = @transform_17, window_bounds = array<i64: 1, 1, 32>}, {pipeline_mode = #tpu.pipeline_mode<synchronous>, transform_indices = @transform_18, window_bounds = array<i64: 32, 128>}, {pipeline_mode = #tpu.pipeline_mode<synchronous>, transform_indices = @transform_19, window_bounds = array<i64: 1, 128>}, {transform_indices = @transform_20, window_bounds = array<i64: 1, 8, 128>}]} {
    %c0_i32 = arith.constant 0 : i32
    %0 = arith.cmpi eq, %arg1, %c0_i32 : i32
    %1 = arith.extui %0 : i1 to i32
    %c0_i32_0 = arith.constant 0 : i32
    %2 = arith.cmpi ne, %1, %c0_i32_0 : i32
    scf.if %2 {
      %c0_73 = arith.constant 0 : index
      %c0_74 = arith.constant 0 : index
      %c0_75 = arith.constant 0 : index
      %159 = vector.load %arg2[%c0_73, %c0_74, %c0_75] : memref<1x8x16xf32, #tpu.memory_space<vmem>>, vector<1x8x16xf32>
      %160 = vector.shape_cast %159 : vector<1x8x16xf32> to vector<8x16xf32>
      %161 = arith.truncf %160 : vector<8x16xf32> to vector<8x16xbf16>
      %c0_76 = arith.constant 0 : index
      %c0_77 = arith.constant 0 : index
      %162 = vector.load %arg4[%c0_76, %c0_77] : memref<16x32xbf16, #tpu.memory_space<vmem>>, vector<16x32xbf16>
      %cst_78 = arith.constant dense<0.000000e+00> : vector<8x32xf32>
      %163 = tpu.matmul %161, %162, %cst_78 {dimension_numbers = #tpu.dot_dimension_numbers<[1], [0], [0], [1], [0, 0, 1, 1], [], []>} : vector<8x16xbf16>, vector<16x32xbf16>, vector<8x32xf32> -> vector<8x32xf32>
      %c0_79 = arith.constant 0 : index
      %c0_80 = arith.constant 0 : index
      %164 = vector.load %arg5[%c0_79, %c0_80] : memref<1x32xf32, #tpu.memory_space<vmem>>, vector<1x32xf32>
      %165 = vector.broadcast %164 : vector<1x32xf32> to vector<8x32xf32>
      %166 = arith.addf %163, %165 : vector<8x32xf32>
      %c0_81 = arith.constant 0 : index
      %c0_82 = arith.constant 0 : index
      %167 = vector.load %arg6[%c0_81, %c0_82] : memref<1x32xf32, #tpu.memory_space<vmem>>, vector<1x32xf32>
      %c0_83 = arith.constant 0 : index
      %c0_84 = arith.constant 0 : index
      %168 = vector.load %arg7[%c0_83, %c0_84] : memref<1x32xf32, #tpu.memory_space<vmem>>, vector<1x32xf32>
      %cst_85 = arith.constant dense<0.000000e+00> : vector<8xf32>
      %169 = vector.multi_reduction <add>, %166, %cst_85 [1] : vector<8x32xf32> to vector<8xf32>
      %170 = vector.shape_cast %169 : vector<8xf32> to vector<8x1xf32>
      %cst_86 = arith.constant 3.200000e+01 : f32
      %171 = vector.broadcast %cst_86 : f32 to vector<8x1xf32>
      %172 = arith.divf %170, %171 : vector<8x1xf32>
      %173 = vector.broadcast %172 : vector<8x1xf32> to vector<8x32xf32>
      %174 = arith.subf %166, %173 : vector<8x32xf32>
      %175 = arith.mulf %174, %174 : vector<8x32xf32>
      %cst_87 = arith.constant dense<0.000000e+00> : vector<8xf32>
      %176 = vector.multi_reduction <add>, %175, %cst_87 [1] : vector<8x32xf32> to vector<8xf32>
      %177 = vector.shape_cast %176 : vector<8xf32> to vector<8x1xf32>
      %cst_88 = arith.constant 3.200000e+01 : f32
      %178 = vector.broadcast %cst_88 : f32 to vector<8x1xf32>
      %179 = arith.divf %177, %178 : vector<8x1xf32>
      %180 = vector.broadcast %172 : vector<8x1xf32> to vector<8x32xf32>
      %181 = arith.subf %166, %180 : vector<8x32xf32>
      %cst_89 = arith.constant 9.99999974E-6 : f32
      %182 = vector.broadcast %cst_89 : f32 to vector<8x1xf32>
      %183 = arith.addf %179, %182 : vector<8x1xf32>
      %184 = math.rsqrt %183 : vector<8x1xf32>
      %185 = vector.broadcast %184 : vector<8x1xf32> to vector<8x32xf32>
      %186 = arith.mulf %181, %185 : vector<8x32xf32>
      %187 = vector.broadcast %167 : vector<1x32xf32> to vector<8x32xf32>
      %188 = arith.mulf %186, %187 : vector<8x32xf32>
      %189 = vector.broadcast %168 : vector<1x32xf32> to vector<8x32xf32>
      %190 = arith.addf %188, %189 : vector<8x32xf32>
      %cst_90 = arith.constant 0.000000e+00 : f32
      %191 = vector.broadcast %cst_90 : f32 to vector<8x32xf32>
      %192 = arith.maximumf %190, %191 : vector<8x32xf32>
      %c0_91 = arith.constant 0 : index
      %c0_92 = arith.constant 0 : index
      %c0_93 = arith.constant 0 : index
      %193 = vector.load %arg3[%c0_91, %c0_92, %c0_93] : memref<1x1x32xf32, #tpu.memory_space<vmem>>, vector<1x1x32xf32>
      %194 = vector.shape_cast %193 : vector<1x1x32xf32> to vector<1x32xf32>
      %195 = vector.broadcast %194 : vector<1x32xf32> to vector<8x32xf32>
      %196 = arith.addf %192, %195 : vector<8x32xf32>
      %c0_94 = arith.constant 0 : index
      %c0_95 = arith.constant 0 : index
      %197 = vector.load %arg23[%c0_94, %c0_95] : memref<8x32xf32, #tpu.memory_space<vmem>>, vector<8x32xf32>
      tpu.vector_store %arg23[%c0_94, %c0_95], %196 {strides = array<i32>} : memref<8x32xf32, #tpu.memory_space<vmem>>, vector<8x32xf32>,
    } else {
    }
    %c0 = arith.constant 0 : index
    %c0_1 = arith.constant 0 : index
    %3 = vector.load %arg23[%c0, %c0_1] : memref<8x32xf32, #tpu.memory_space<vmem>>, vector<8x32xf32>
    %4 = arith.truncf %3 : vector<8x32xf32> to vector<8x32xbf16>
    %c0_2 = arith.constant 0 : index
    %c0_3 = arith.constant 0 : index
    %c0_4 = arith.constant 0 : index
    %5 = vector.load %arg8[%c0_2, %c0_3, %c0_4] : memref<1x32x96xbf16, #tpu.memory_space<vmem>>, vector<1x32x96xbf16>
    %6 = vector.shape_cast %5 : vector<1x32x96xbf16> to vector<32x96xbf16>
    %cst = arith.constant dense<0.000000e+00> : vector<8x96xf32>
    %7 = tpu.matmul %4, %6, %cst {dimension_numbers = #tpu.dot_dimension_numbers<[1], [0], [0], [1], [0, 0, 1, 1], [], []>} : vector<8x32xbf16>, vector<32x96xbf16>, vector<8x96xf32> -> vector<8x96xf32>
    %c0_5 = arith.constant 0 : index
    %c0_6 = arith.constant 0 : index
    %c0_7 = arith.constant 0 : index
    %8 = vector.load %arg9[%c0_5, %c0_6, %c0_7] : memref<1x1x96xf32, #tpu.memory_space<vmem>>, vector<1x1x96xf32>
    %9 = vector.shape_cast %8 : vector<1x1x96xf32> to vector<1x96xf32>
    %10 = vector.broadcast %9 : vector<1x96xf32> to vector<8x96xf32>
    %11 = arith.addf %7, %10 : vector<8x96xf32>
    %12 = vector.extract_strided_slice %11 {offsets = [0, 0], sizes = [8, 32], strides = [1, 1]} : vector<8x96xf32> to vector<8x32xf32>
    %13 = vector.extract_strided_slice %11 {offsets = [0, 32], sizes = [8, 32], strides = [1, 1]} : vector<8x96xf32> to vector<8x32xf32>
    %14 = vector.extract_strided_slice %11 {offsets = [0, 64], sizes = [8, 32], strides = [1, 1]} : vector<8x96xf32> to vector<8x32xf32>
    %15 = vector.extract_strided_slice %12 {offsets = [0, 0], sizes = [8, 4], strides = [1, 1]} : vector<8x32xf32> to vector<8x4xf32>
    %16 = vector.extract_strided_slice %13 {offsets = [0, 0], sizes = [8, 4], strides = [1, 1]} : vector<8x32xf32> to vector<8x4xf32>
    %cst_8 = arith.constant dense<0.000000e+00> : vector<8x8xf32>
    %17 = tpu.matmul %15, %16, %cst_8 {dimension_numbers = #tpu.dot_dimension_numbers<[1], [1], [0], [0], [0, 0, 1, 0], [], []>} : vector<8x4xf32>, vector<8x4xf32>, vector<8x8xf32> -> vector<8x8xf32>
    %18 = vector.extract_strided_slice %12 {offsets = [0, 4], sizes = [8, 4], strides = [1, 1]} : vector<8x32xf32> to vector<8x4xf32>
    %19 = vector.extract_strided_slice %13 {offsets = [0, 4], sizes = [8, 4], strides = [1, 1]} : vector<8x32xf32> to vector<8x4xf32>
    %cst_9 = arith.constant dense<0.000000e+00> : vector<8x8xf32>
    %20 = tpu.matmul %18, %19, %cst_9 {dimension_numbers = #tpu.dot_dimension_numbers<[1], [1], [0], [0], [0, 0, 1, 0], [], []>} : vector<8x4xf32>, vector<8x4xf32>, vector<8x8xf32> -> vector<8x8xf32>
    %21 = vector.extract_strided_slice %12 {offsets = [0, 8], sizes = [8, 4], strides = [1, 1]} : vector<8x32xf32> to vector<8x4xf32>
    %22 = vector.extract_strided_slice %13 {offsets = [0, 8], sizes = [8, 4], strides = [1, 1]} : vector<8x32xf32> to vector<8x4xf32>
    %cst_10 = arith.constant dense<0.000000e+00> : vector<8x8xf32>
    %23 = tpu.matmul %21, %22, %cst_10 {dimension_numbers = #tpu.dot_dimension_numbers<[1], [1], [0], [0], [0, 0, 1, 0], [], []>} : vector<8x4xf32>, vector<8x4xf32>, vector<8x8xf32> -> vector<8x8xf32>
    %24 = vector.extract_strided_slice %12 {offsets = [0, 12], sizes = [8, 4], strides = [1, 1]} : vector<8x32xf32> to vector<8x4xf32>
    %25 = vector.extract_strided_slice %13 {offsets = [0, 12], sizes = [8, 4], strides = [1, 1]} : vector<8x32xf32> to vector<8x4xf32>
    %cst_11 = arith.constant dense<0.000000e+00> : vector<8x8xf32>
    %26 = tpu.matmul %24, %25, %cst_11 {dimension_numbers = #tpu.dot_dimension_numbers<[1], [1], [0], [0], [0, 0, 1, 0], [], []>} : vector<8x4xf32>, vector<8x4xf32>, vector<8x8xf32> -> vector<8x8xf32>
    %27 = vector.extract_strided_slice %12 {offsets = [0, 16], sizes = [8, 4], strides = [1, 1]} : vector<8x32xf32> to vector<8x4xf32>
    %28 = vector.extract_strided_slice %13 {offsets = [0, 16], sizes = [8, 4], strides = [1, 1]} : vector<8x32xf32> to vector<8x4xf32>
    %cst_12 = arith.constant dense<0.000000e+00> : vector<8x8xf32>
    %29 = tpu.matmul %27, %28, %cst_12 {dimension_numbers = #tpu.dot_dimension_numbers<[1], [1], [0], [0], [0, 0, 1, 0], [], []>} : vector<8x4xf32>, vector<8x4xf32>, vector<8x8xf32> -> vector<8x8xf32>
    %30 = vector.extract_strided_slice %12 {offsets = [0, 20], sizes = [8, 4], strides = [1, 1]} : vector<8x32xf32> to vector<8x4xf32>
    %31 = vector.extract_strided_slice %13 {offsets = [0, 20], sizes = [8, 4], strides = [1, 1]} : vector<8x32xf32> to vector<8x4xf32>
    %cst_13 = arith.constant dense<0.000000e+00> : vector<8x8xf32>
    %32 = tpu.matmul %30, %31, %cst_13 {dimension_numbers = #tpu.dot_dimension_numbers<[1], [1], [0], [0], [0, 0, 1, 0], [], []>} : vector<8x4xf32>, vector<8x4xf32>, vector<8x8xf32> -> vector<8x8xf32>
    %33 = vector.extract_strided_slice %12 {offsets = [0, 24], sizes = [8, 4], strides = [1, 1]} : vector<8x32xf32> to vector<8x4xf32>
    %34 = vector.extract_strided_slice %13 {offsets = [0, 24], sizes = [8, 4], strides = [1, 1]} : vector<8x32xf32> to vector<8x4xf32>
    %cst_14 = arith.constant dense<0.000000e+00> : vector<8x8xf32>
    %35 = tpu.matmul %33, %34, %cst_14 {dimension_numbers = #tpu.dot_dimension_numbers<[1], [1], [0], [0], [0, 0, 1, 0], [], []>} : vector<8x4xf32>, vector<8x4xf32>, vector<8x8xf32> -> vector<8x8xf32>
    %36 = vector.extract_strided_slice %12 {offsets = [0, 28], sizes = [8, 4], strides = [1, 1]} : vector<8x32xf32> to vector<8x4xf32>
    %37 = vector.extract_strided_slice %13 {offsets = [0, 28], sizes = [8, 4], strides = [1, 1]} : vector<8x32xf32> to vector<8x4xf32>
    %cst_15 = arith.constant dense<0.000000e+00> : vector<8x8xf32>
    %38 = tpu.matmul %36, %37, %cst_15 {dimension_numbers = #tpu.dot_dimension_numbers<[1], [1], [0], [0], [0, 0, 1, 0], [], []>} : vector<8x4xf32>, vector<8x4xf32>, vector<8x8xf32> -> vector<8x8xf32>
    %39 = tpu.concatenate %17, %20, %23, %26, %29, %32, %35, %38 in 0 : vector<8x8xf32>, vector<8x8xf32>, vector<8x8xf32>, vector<8x8xf32>, vector<8x8xf32>, vector<8x8xf32>, vector<8x8xf32>, vector<8x8xf32> -> vector<64x8xf32>
    %cst_16 = arith.constant dense<0xFF800000> : vector<64xf32>
    %40 = vector.multi_reduction <maximumf>, %39, %cst_16 [1] : vector<64x8xf32> to vector<64xf32>
    %41 = vector.shape_cast %40 : vector<64xf32> to vector<64x1xf32>
    %42 = vector.broadcast %41 : vector<64x1xf32> to vector<64x8xf32>
    %43 = arith.subf %39, %42 : vector<64x8xf32>
    %44 = math.exp %43 : vector<64x8xf32>
    %cst_17 = arith.constant dense<0.000000e+00> : vector<64xf32>
    %45 = vector.multi_reduction <add>, %44, %cst_17 [1] : vector<64x8xf32> to vector<64xf32>
    %46 = vector.shape_cast %45 : vector<64xf32> to vector<64x1xf32>
    %47 = tpu.reciprocal %46 {approx = true} : vector<64x1xf32> -> vector<64x1xf32>
    %48 = vector.broadcast %47 : vector<64x1xf32> to vector<64x8xf32>
    %49 = arith.mulf %44, %48 : vector<64x8xf32>
    %50 = vector.extract_strided_slice %49 {offsets = [0, 0], sizes = [8, 8], strides = [1, 1]} : vector<64x8xf32> to vector<8x8xf32>
    %51 = vector.extract_strided_slice %14 {offsets = [0, 0], sizes = [8, 4], strides = [1, 1]} : vector<8x32xf32> to vector<8x4xf32>
    %cst_18 = arith.constant dense<0.000000e+00> : vector<8x4xf32>
    %52 = tpu.matmul %50, %51, %cst_18 {dimension_numbers = #tpu.dot_dimension_numbers<[1], [0], [0], [1], [0, 0, 1, 1], [], []>} : vector<8x8xf32>, vector<8x4xf32>, vector<8x4xf32> -> vector<8x4xf32>
    %53 = vector.extract_strided_slice %49 {offsets = [8, 0], sizes = [8, 8], strides = [1, 1]} : vector<64x8xf32> to vector<8x8xf32>
    %54 = vector.extract_strided_slice %14 {offsets = [0, 4], sizes = [8, 4], strides = [1, 1]} : vector<8x32xf32> to vector<8x4xf32>
    %cst_19 = arith.constant dense<0.000000e+00> : vector<8x4xf32>
    %55 = tpu.matmul %53, %54, %cst_19 {dimension_numbers = #tpu.dot_dimension_numbers<[1], [0], [0], [1], [0, 0, 1, 1], [], []>} : vector<8x8xf32>, vector<8x4xf32>, vector<8x4xf32> -> vector<8x4xf32>
    %56 = vector.extract_strided_slice %49 {offsets = [16, 0], sizes = [8, 8], strides = [1, 1]} : vector<64x8xf32> to vector<8x8xf32>
    %57 = vector.extract_strided_slice %14 {offsets = [0, 8], sizes = [8, 4], strides = [1, 1]} : vector<8x32xf32> to vector<8x4xf32>
    %cst_20 = arith.constant dense<0.000000e+00> : vector<8x4xf32>
    %58 = tpu.matmul %56, %57, %cst_20 {dimension_numbers = #tpu.dot_dimension_numbers<[1], [0], [0], [1], [0, 0, 1, 1], [], []>} : vector<8x8xf32>, vector<8x4xf32>, vector<8x4xf32> -> vector<8x4xf32>
    %59 = vector.extract_strided_slice %49 {offsets = [24, 0], sizes = [8, 8], strides = [1, 1]} : vector<64x8xf32> to vector<8x8xf32>
    %60 = vector.extract_strided_slice %14 {offsets = [0, 12], sizes = [8, 4], strides = [1, 1]} : vector<8x32xf32> to vector<8x4xf32>
    %cst_21 = arith.constant dense<0.000000e+00> : vector<8x4xf32>
    %61 = tpu.matmul %59, %60, %cst_21 {dimension_numbers = #tpu.dot_dimension_numbers<[1], [0], [0], [1], [0, 0, 1, 1], [], []>} : vector<8x8xf32>, vector<8x4xf32>, vector<8x4xf32> -> vector<8x4xf32>
    %62 = vector.extract_strided_slice %49 {offsets = [32, 0], sizes = [8, 8], strides = [1, 1]} : vector<64x8xf32> to vector<8x8xf32>
    %63 = vector.extract_strided_slice %14 {offsets = [0, 16], sizes = [8, 4], strides = [1, 1]} : vector<8x32xf32> to vector<8x4xf32>
    %cst_22 = arith.constant dense<0.000000e+00> : vector<8x4xf32>
    %64 = tpu.matmul %62, %63, %cst_22 {dimension_numbers = #tpu.dot_dimension_numbers<[1], [0], [0], [1], [0, 0, 1, 1], [], []>} : vector<8x8xf32>, vector<8x4xf32>, vector<8x4xf32> -> vector<8x4xf32>
    %65 = vector.extract_strided_slice %49 {offsets = [40, 0], sizes = [8, 8], strides = [1, 1]} : vector<64x8xf32> to vector<8x8xf32>
    %66 = vector.extract_strided_slice %14 {offsets = [0, 20], sizes = [8, 4], strides = [1, 1]} : vector<8x32xf32> to vector<8x4xf32>
    %cst_23 = arith.constant dense<0.000000e+00> : vector<8x4xf32>
    %67 = tpu.matmul %65, %66, %cst_23 {dimension_numbers = #tpu.dot_dimension_numbers<[1], [0], [0], [1], [0, 0, 1, 1], [], []>} : vector<8x8xf32>, vector<8x4xf32>, vector<8x4xf32> -> vector<8x4xf32>
    %68 = vector.extract_strided_slice %49 {offsets = [48, 0], sizes = [8, 8], strides = [1, 1]} : vector<64x8xf32> to vector<8x8xf32>
    %69 = vector.extract_strided_slice %14 {offsets = [0, 24], sizes = [8, 4], strides = [1, 1]} : vector<8x32xf32> to vector<8x4xf32>
    %cst_24 = arith.constant dense<0.000000e+00> : vector<8x4xf32>
    %70 = tpu.matmul %68, %69, %cst_24 {dimension_numbers = #tpu.dot_dimension_numbers<[1], [0], [0], [1], [0, 0, 1, 1], [], []>} : vector<8x8xf32>, vector<8x4xf32>, vector<8x4xf32> -> vector<8x4xf32>
    %71 = vector.extract_strided_slice %49 {offsets = [56, 0], sizes = [8, 8], strides = [1, 1]} : vector<64x8xf32> to vector<8x8xf32>
    %72 = vector.extract_strided_slice %14 {offsets = [0, 28], sizes = [8, 4], strides = [1, 1]} : vector<8x32xf32> to vector<8x4xf32>
    %cst_25 = arith.constant dense<0.000000e+00> : vector<8x4xf32>
    %73 = tpu.matmul %71, %72, %cst_25 {dimension_numbers = #tpu.dot_dimension_numbers<[1], [0], [0], [1], [0, 0, 1, 1], [], []>} : vector<8x8xf32>, vector<8x4xf32>, vector<8x4xf32> -> vector<8x4xf32>
    %74 = tpu.concatenate %52, %55, %58, %61, %64, %67, %70, %73 in 1 : vector<8x4xf32>, vector<8x4xf32>, vector<8x4xf32>, vector<8x4xf32>, vector<8x4xf32>, vector<8x4xf32>, vector<8x4xf32>, vector<8x4xf32> -> vector<8x32xf32>
    %75 = arith.truncf %74 : vector<8x32xf32> to vector<8x32xbf16>
    %c0_26 = arith.constant 0 : index
    %c0_27 = arith.constant 0 : index
    %c0_28 = arith.constant 0 : index
    %76 = vector.load %arg10[%c0_26, %c0_27, %c0_28] : memref<1x32x32xbf16, #tpu.memory_space<vmem>>, vector<1x32x32xbf16>
    %77 = vector.shape_cast %76 : vector<1x32x32xbf16> to vector<32x32xbf16>
    %cst_29 = arith.constant dense<0.000000e+00> : vector<8x32xf32>
    %78 = tpu.matmul %75, %77, %cst_29 {dimension_numbers = #tpu.dot_dimension_numbers<[1], [0], [0], [1], [0, 0, 1, 1], [], []>} : vector<8x32xbf16>, vector<32x32xbf16>, vector<8x32xf32> -> vector<8x32xf32>
    %c0_30 = arith.constant 0 : index
    %c0_31 = arith.constant 0 : index
    %c0_32 = arith.constant 0 : index
    %79 = vector.load %arg11[%c0_30, %c0_31, %c0_32] : memref<1x1x32xf32, #tpu.memory_space<vmem>>, vector<1x1x32xf32>
    %80 = vector.shape_cast %79 : vector<1x1x32xf32> to vector<1x32xf32>
    %81 = vector.broadcast %80 : vector<1x32xf32> to vector<8x32xf32>
    %82 = arith.addf %78, %81 : vector<8x32xf32>
    %83 = arith.addf %3, %82 : vector<8x32xf32>
    %c0_33 = arith.constant 0 : index
    %c0_34 = arith.constant 0 : index
    %c0_35 = arith.constant 0 : index
    %84 = vector.load %arg16[%c0_33, %c0_34, %c0_35] : memref<1x1x32xf32, #tpu.memory_space<vmem>>, vector<1x1x32xf32>
    %85 = vector.shape_cast %84 : vector<1x1x32xf32> to vector<1x32xf32>
    %c0_36 = arith.constant 0 : index
    %c0_37 = arith.constant 0 : index
    %c0_38 = arith.constant 0 : index
    %86 = vector.load %arg17[%c0_36, %c0_37, %c0_38] : memref<1x1x32xf32, #tpu.memory_space<vmem>>, vector<1x1x32xf32>
    %87 = vector.shape_cast %86 : vector<1x1x32xf32> to vector<1x32xf32>
    %cst_39 = arith.constant dense<0.000000e+00> : vector<8xf32>
    %88 = vector.multi_reduction <add>, %83, %cst_39 [1] : vector<8x32xf32> to vector<8xf32>
    %89 = vector.shape_cast %88 : vector<8xf32> to vector<8x1xf32>
    %cst_40 = arith.constant 3.200000e+01 : f32
    %90 = vector.broadcast %cst_40 : f32 to vector<8x1xf32>
    %91 = arith.divf %89, %90 : vector<8x1xf32>
    %92 = vector.broadcast %91 : vector<8x1xf32> to vector<8x32xf32>
    %93 = arith.subf %83, %92 : vector<8x32xf32>
    %94 = arith.mulf %93, %93 : vector<8x32xf32>
    %cst_41 = arith.constant dense<0.000000e+00> : vector<8xf32>
    %95 = vector.multi_reduction <add>, %94, %cst_41 [1] : vector<8x32xf32> to vector<8xf32>
    %96 = vector.shape_cast %95 : vector<8xf32> to vector<8x1xf32>
    %cst_42 = arith.constant 3.200000e+01 : f32
    %97 = vector.broadcast %cst_42 : f32 to vector<8x1xf32>
    %98 = arith.divf %96, %97 : vector<8x1xf32>
    %99 = vector.broadcast %91 : vector<8x1xf32> to vector<8x32xf32>
    %100 = arith.subf %83, %99 : vector<8x32xf32>
    %cst_43 = arith.constant 9.99999974E-6 : f32
    %101 = vector.broadcast %cst_43 : f32 to vector<8x1xf32>
    %102 = arith.addf %98, %101 : vector<8x1xf32>
    %103 = math.rsqrt %102 : vector<8x1xf32>
    %104 = vector.broadcast %103 : vector<8x1xf32> to vector<8x32xf32>
    %105 = arith.mulf %100, %104 : vector<8x32xf32>
    %106 = vector.broadcast %85 : vector<1x32xf32> to vector<8x32xf32>
    %107 = arith.mulf %105, %106 : vector<8x32xf32>
    %108 = vector.broadcast %87 : vector<1x32xf32> to vector<8x32xf32>
    %109 = arith.addf %107, %108 : vector<8x32xf32>
    %110 = arith.truncf %109 : vector<8x32xf32> to vector<8x32xbf16>
    %c0_44 = arith.constant 0 : index
    %c0_45 = arith.constant 0 : index
    %c0_46 = arith.constant 0 : index
    %111 = vector.load %arg12[%c0_44, %c0_45, %c0_46] : memref<1x32x2048xbf16, #tpu.memory_space<vmem>>, vector<1x32x2048xbf16>
    %112 = vector.shape_cast %111 : vector<1x32x2048xbf16> to vector<32x2048xbf16>
    %cst_47 = arith.constant dense<0.000000e+00> : vector<8x2048xf32>
    %113 = tpu.matmul %110, %112, %cst_47 {dimension_numbers = #tpu.dot_dimension_numbers<[1], [0], [0], [1], [0, 0, 1, 1], [], []>} : vector<8x32xbf16>, vector<32x2048xbf16>, vector<8x2048xf32> -> vector<8x2048xf32>
    %c0_48 = arith.constant 0 : index
    %c0_49 = arith.constant 0 : index
    %c0_50 = arith.constant 0 : index
    %114 = vector.load %arg13[%c0_48, %c0_49, %c0_50] : memref<1x1x2048xf32, #tpu.memory_space<vmem>>, vector<1x1x2048xf32>
    %115 = vector.shape_cast %114 : vector<1x1x2048xf32> to vector<1x2048xf32>
    %116 = vector.broadcast %115 : vector<1x2048xf32> to vector<8x2048xf32>
    %117 = arith.addf %113, %116 : vector<8x2048xf32>
    %cst_51 = arith.constant 0.000000e+00 : f32
    %118 = vector.broadcast %cst_51 : f32 to vector<8x2048xf32>
    %119 = arith.maximumf %117, %118 : vector<8x2048xf32>
    %120 = arith.truncf %119 : vector<8x2048xf32> to vector<8x2048xbf16>
    %c0_52 = arith.constant 0 : index
    %c0_53 = arith.constant 0 : index
    %c0_54 = arith.constant 0 : index
    %121 = vector.load %arg14[%c0_52, %c0_53, %c0_54] : memref<1x2048x32xbf16, #tpu.memory_space<vmem>>, vector<1x2048x32xbf16>
    %122 = vector.shape_cast %121 : vector<1x2048x32xbf16> to vector<2048x32xbf16>
    %cst_55 = arith.constant dense<0.000000e+00> : vector<8x32xf32>
    %123 = tpu.matmul %120, %122, %cst_55 {dimension_numbers = #tpu.dot_dimension_numbers<[1], [0], [0], [1], [0, 0, 1, 1], [], []>} : vector<8x2048xbf16>, vector<2048x32xbf16>, vector<8x32xf32> -> vector<8x32xf32>
    %c0_56 = arith.constant 0 : index
    %c0_57 = arith.constant 0 : index
    %c0_58 = arith.constant 0 : index
    %124 = vector.load %arg15[%c0_56, %c0_57, %c0_58] : memref<1x1x32xf32, #tpu.memory_space<vmem>>, vector<1x1x32xf32>
    %125 = vector.shape_cast %124 : vector<1x1x32xf32> to vector<1x32xf32>
    %126 = vector.broadcast %125 : vector<1x32xf32> to vector<8x32xf32>
    %127 = arith.addf %123, %126 : vector<8x32xf32>
    %128 = arith.addf %109, %127 : vector<8x32xf32>
    %c0_59 = arith.constant 0 : index
    %c0_60 = arith.constant 0 : index
    %c0_61 = arith.constant 0 : index
    %129 = vector.load %arg18[%c0_59, %c0_60, %c0_61] : memref<1x1x32xf32, #tpu.memory_space<vmem>>, vector<1x1x32xf32>
    %130 = vector.shape_cast %129 : vector<1x1x32xf32> to vector<1x32xf32>
    %c0_62 = arith.constant 0 : index
    %c0_63 = arith.constant 0 : index
    %c0_64 = arith.constant 0 : index
    %131 = vector.load %arg19[%c0_62, %c0_63, %c0_64] : memref<1x1x32xf32, #tpu.memory_space<vmem>>, vector<1x1x32xf32>
    %132 = vector.shape_cast %131 : vector<1x1x32xf32> to vector<1x32xf32>
    %cst_65 = arith.constant dense<0.000000e+00> : vector<8xf32>
    %133 = vector.multi_reduction <add>, %128, %cst_65 [1] : vector<8x32xf32> to vector<8xf32>
    %134 = vector.shape_cast %133 : vector<8xf32> to vector<8x1xf32>
    %cst_66 = arith.constant 3.200000e+01 : f32
    %135 = vector.broadcast %cst_66 : f32 to vector<8x1xf32>
    %136 = arith.divf %134, %135 : vector<8x1xf32>
    %137 = vector.broadcast %136 : vector<8x1xf32> to vector<8x32xf32>
    %138 = arith.subf %128, %137 : vector<8x32xf32>
    %139 = arith.mulf %138, %138 : vector<8x32xf32>
    %cst_67 = arith.constant dense<0.000000e+00> : vector<8xf32>
    %140 = vector.multi_reduction <add>, %139, %cst_67 [1] : vector<8x32xf32> to vector<8xf32>
    %141 = vector.shape_cast %140 : vector<8xf32> to vector<8x1xf32>
    %cst_68 = arith.constant 3.200000e+01 : f32
    %142 = vector.broadcast %cst_68 : f32 to vector<8x1xf32>
    %143 = arith.divf %141, %142 : vector<8x1xf32>
    %144 = vector.broadcast %136 : vector<8x1xf32> to vector<8x32xf32>
    %145 = arith.subf %128, %144 : vector<8x32xf32>
    %cst_69 = arith.constant 9.99999974E-6 : f32
    %146 = vector.broadcast %cst_69 : f32 to vector<8x1xf32>
    %147 = arith.addf %143, %146 : vector<8x1xf32>
    %148 = math.rsqrt %147 : vector<8x1xf32>
    %149 = vector.broadcast %148 : vector<8x1xf32> to vector<8x32xf32>
    %150 = arith.mulf %145, %149 : vector<8x32xf32>
    %151 = vector.broadcast %130 : vector<1x32xf32> to vector<8x32xf32>
    %152 = arith.mulf %150, %151 : vector<8x32xf32>
    %153 = vector.broadcast %132 : vector<1x32xf32> to vector<8x32xf32>
    %154 = arith.addf %152, %153 : vector<8x32xf32>
    %c0_70 = arith.constant 0 : index
    %c0_71 = arith.constant 0 : index
    %155 = vector.load %arg23[%c0_70, %c0_71] : memref<8x32xf32, #tpu.memory_space<vmem>>, vector<8x32xf32>
    tpu.vector_store %arg23[%c0_70, %c0_71], %154 {strides = array<i32>} : memref<8x32xf32, #tpu.memory_space<vmem>>, vector<8x32xf32>,
    %c1_i32 = arith.constant 1 : i32
    %156 = arith.cmpi eq, %arg1, %c1_i32 : i32
    %157 = arith.extui %156 : i1 to i32
    %c0_i32_72 = arith.constant 0 : i32
    %158 = arith.cmpi ne, %157, %c0_i32_72 : i32
    scf.if %158 {
      %159 = arith.truncf %154 : vector<8x32xf32> to vector<8x32xbf16>
      %c0_73 = arith.constant 0 : index
      %c0_74 = arith.constant 0 : index
      %160 = vector.load %arg20[%c0_73, %c0_74] : memref<32x128xbf16, #tpu.memory_space<vmem>>, vector<32x128xbf16>
      %cst_75 = arith.constant dense<0.000000e+00> : vector<8x128xf32>
      %161 = tpu.matmul %159, %160, %cst_75 {dimension_numbers = #tpu.dot_dimension_numbers<[1], [0], [0], [1], [0, 0, 1, 1], [], []>} : vector<8x32xbf16>, vector<32x128xbf16>, vector<8x128xf32> -> vector<8x128xf32>
      %c0_76 = arith.constant 0 : index
      %c0_77 = arith.constant 0 : index
      %162 = vector.load %arg21[%c0_76, %c0_77] : memref<1x128xf32, #tpu.memory_space<vmem>>, vector<1x128xf32>
      %163 = vector.broadcast %162 : vector<1x128xf32> to vector<8x128xf32>
      %164 = arith.addf %161, %163 : vector<8x128xf32>
      %c0_78 = arith.constant 0 : index
      %c0_79 = arith.constant 0 : index
      %c0_80 = arith.constant 0 : index
      %165 = vector.load %arg22[%c0_78, %c0_79, %c0_80] : memref<1x8x128xf32, #tpu.memory_space<vmem>>, vector<1x8x128xf32>
      %166 = vector.shape_cast %165 : vector<1x8x128xf32> to vector<8x128xf32>
      %167 = vector.shape_cast %164 : vector<8x128xf32> to vector<1x8x128xf32>
      tpu.vector_store %arg22[%c0_78, %c0_79, %c0_80], %167 {strides = array<i32>} : memref<1x8x128xf32, #tpu.memory_space<vmem>>, vector<1x8x128xf32>,
    } else {
    }
    return
  }
  func.func @transform_0(%arg0: i32, %arg1: i32) -> (i32, i32, i32) {
    %c0_i32 = arith.constant 0 : i32
    %c0_i32_0 = arith.constant 0 : i32
    %c0_i32_1 = arith.constant 0 : i32
    return %arg0, %c0_i32, %c0_i32_0 : i32, i32, i32
  }
  func.func @transform_1(%arg0: i32, %arg1: i32) -> (i32, i32, i32) {
    %c0_i32 = arith.constant 0 : i32
    %c0_i32_0 = arith.constant 0 : i32
    %c0_i32_1 = arith.constant 0 : i32
    return %arg0, %c0_i32, %c0_i32_0 : i32, i32, i32
  }
  func.func @transform_2(%arg0: i32, %arg1: i32) -> (i32, i32) {
    %c0_i32 = arith.constant 0 : i32
    %c0_i32_0 = arith.constant 0 : i32
    %c0_i32_1 = arith.constant 0 : i32
    return %c0_i32, %c0_i32_0 : i32, i32
  }
  func.func @transform_3(%arg0: i32, %arg1: i32) -> (i32, i32) {
    %c0_i32 = arith.constant 0 : i32
    %c0_i32_0 = arith.constant 0 : i32
    %c0_i32_1 = arith.constant 0 : i32
    return %c0_i32, %c0_i32_0 : i32, i32
  }
  func.func @transform_4(%arg0: i32, %arg1: i32) -> (i32, i32) {
    %c0_i32 = arith.constant 0 : i32
    %c0_i32_0 = arith.constant 0 : i32
    %c0_i32_1 = arith.constant 0 : i32
    return %c0_i32, %c0_i32_0 : i32, i32
  }
  func.func @transform_5(%arg0: i32, %arg1: i32) -> (i32, i32) {
    %c0_i32 = arith.constant 0 : i32
    %c0_i32_0 = arith.constant 0 : i32
    %c0_i32_1 = arith.constant 0 : i32
    return %c0_i32, %c0_i32_0 : i32, i32
  }
  func.func @transform_6(%arg0: i32, %arg1: i32) -> (i32, i32, i32) {
    %c0_i32 = arith.constant 0 : i32
    %c0_i32_0 = arith.constant 0 : i32
    %c0_i32_1 = arith.constant 0 : i32
    return %arg1, %c0_i32, %c0_i32_0 : i32, i32, i32
  }
  func.func @transform_7(%arg0: i32, %arg1: i32) -> (i32, i32, i32) {
    %c0_i32 = arith.constant 0 : i32
    %c0_i32_0 = arith.constant 0 : i32
    %c0_i32_1 = arith.constant 0 : i32
    return %arg1, %c0_i32, %c0_i32_0 : i32, i32, i32
  }
  func.func @transform_8(%arg0: i32, %arg1: i32) -> (i32, i32, i32) {
    %c0_i32 = arith.constant 0 : i32
    %c0_i32_0 = arith.constant 0 : i32
    %c0_i32_1 = arith.constant 0 : i32
    return %arg1, %c0_i32, %c0_i32_0 : i32, i32, i32
  }
  func.func @transform_9(%arg0: i32, %arg1: i32) -> (i32, i32, i32) {
    %c0_i32 = arith.constant 0 : i32
    %c0_i32_0 = arith.constant 0 : i32
    %c0_i32_1 = arith.constant 0 : i32
    return %arg1, %c0_i32, %c0_i32_0 : i32, i32, i32
  }
  func.func @transform_10(%arg0: i32, %arg1: i32) -> (i32, i32, i32) {
    %c0_i32 = arith.constant 0 : i32
    %c0_i32_0 = arith.constant 0 : i32
    %c0_i32_1 = arith.constant 0 : i32
    return %arg1, %c0_i32, %c0_i32_0 : i32, i32, i32
  }
  func.func @transform_11(%arg0: i32, %arg1: i32) -> (i32, i32, i32) {
    %c0_i32 = arith.constant 0 : i32
    %c0_i32_0 = arith.constant 0 : i32
    %c0_i32_1 = arith.constant 0 : i32
    return %arg1, %c0_i32, %c0_i32_0 : i32, i32, i32
  }
  func.func @transform_12(%arg0: i32, %arg1: i32) -> (i32, i32, i32) {
    %c0_i32 = arith.constant 0 : i32
    %c0_i32_0 = arith.constant 0 : i32
    %c0_i32_1 = arith.constant 0 : i32
    return %arg1, %c0_i32, %c0_i32_0 : i32, i32, i32
  }
  func.func @transform_13(%arg0: i32, %arg1: i32) -> (i32, i32, i32) {
    %c0_i32 = arith.constant 0 : i32
    %c0_i32_0 = arith.constant 0 : i32
    %c0_i32_1 = arith.constant 0 : i32
    return %arg1, %c0_i32, %c0_i32_0 : i32, i32, i32
  }
  func.func @transform_14(%arg0: i32, %arg1: i32) -> (i32, i32, i32) {
    %c0_i32 = arith.constant 0 : i32
    %c0_i32_0 = arith.constant 0 : i32
    %c0_i32_1 = arith.constant 0 : i32
    return %arg1, %c0_i32, %c0_i32_0 : i32, i32, i32
  }
  func.func @transform_15(%arg0: i32, %arg1: i32) -> (i32, i32, i32) {
    %c0_i32 = arith.constant 0 : i32
    %c0_i32_0 = arith.constant 0 : i32
    %c0_i32_1 = arith.constant 0 : i32
    return %arg1, %c0_i32, %c0_i32_0 : i32, i32, i32
  }
  func.func @transform_16(%arg0: i32, %arg1: i32) -> (i32, i32, i32) {
    %c0_i32 = arith.constant 0 : i32
    %c0_i32_0 = arith.constant 0 : i32
    %c0_i32_1 = arith.constant 0 : i32
    return %arg1, %c0_i32, %c0_i32_0 : i32, i32, i32
  }
  func.func @transform_17(%arg0: i32, %arg1: i32) -> (i32, i32, i32) {
    %c0_i32 = arith.constant 0 : i32
    %c0_i32_0 = arith.constant 0 : i32
    %c0_i32_1 = arith.constant 0 : i32
    return %arg1, %c0_i32, %c0_i32_0 : i32, i32, i32
  }
  func.func @transform_18(%arg0: i32, %arg1: i32) -> (i32, i32) {
    %c0_i32 = arith.constant 0 : i32
    %c0_i32_0 = arith.constant 0 : i32
    %c0_i32_1 = arith.constant 0 : i32
    return %c0_i32, %c0_i32_0 : i32, i32
  }
  func.func @transform_19(%arg0: i32, %arg1: i32) -> (i32, i32) {
    %c0_i32 = arith.constant 0 : i32
    %c0_i32_0 = arith.constant 0 : i32
    %c0_i32_1 = arith.constant 0 : i32
    return %c0_i32, %c0_i32_0 : i32, i32
  }
  func.func @transform_20(%arg0: i32, %arg1: i32) -> (i32, i32, i32) {
    %c0_i32 = arith.constant 0 : i32
    %c0_i32_0 = arith.constant 0 : i32
    %c0_i32_1 = arith.constant 0 : i32
    return %arg0, %c0_i32, %c0_i32_0 : i32, i32, i32
  }
}

</mosaic_0001>

<llo_original>
// kernel: transformer_forward.1
$region0: #{transformer_forward.1}
  #allocation0 [shape = 'u32[]', space=smem, size = 0x4, offset = 0x4, fixed_abs, tag = 'smem constant byte address 0x4 - core index']
  #allocation1 [shape = 'u32[72,128]{1,0:T(1,128)}', space=vmem, size = 0x9000, scoped, tag = 'internal scratch']
  #allocation2 [shape = 'f32[8,32]{1,0:T(8,128)}', space=vmem, size = 0x1000, scoped, tag = 'scratch operand']
  %s0 = inlined_call_operand.vmem [shape: f32[2,8,16], index: 0, kind: input, shape index: {}]
  %s1 = inlined_call_operand.vmem [shape: f32[2,1,32], index: 1, kind: input, shape index: {}]
  %s2 = inlined_call_operand.vmem [shape: bf16[16,32], index: 2, kind: input, shape index: {}]
  %s3 = inlined_call_operand.vmem [shape: f32[1,32], index: 3, kind: input, shape index: {}]
  %s4 = inlined_call_operand.vmem [shape: f32[1,32], index: 4, kind: input, shape index: {}]
  %s5 = inlined_call_operand.vmem [shape: f32[1,32], index: 5, kind: input, shape index: {}]
  %s6 = inlined_call_operand.vmem [shape: bf16[2,32,96], index: 6, kind: input, shape index: {}]
  %s7 = inlined_call_operand.vmem [shape: f32[2,1,96], index: 7, kind: input, shape index: {}]
  %s8 = inlined_call_operand.vmem [shape: bf16[2,32,32], index: 8, kind: input, shape index: {}]
  %s9 = inlined_call_operand.vmem [shape: f32[2,1,32], index: 9, kind: input, shape index: {}]
  %s10 = inlined_call_operand.vmem [shape: bf16[2,32,2048], index: 10, kind: input, shape index: {}]
  %s11 = inlined_call_operand.vmem [shape: f32[2,1,2048], index: 11, kind: input, shape index: {}]
  %s12 = inlined_call_operand.vmem [shape: bf16[2,2048,32], index: 12, kind: input, shape index: {}]
  %s13 = inlined_call_operand.vmem [shape: f32[2,1,32], index: 13, kind: input, shape index: {}]
  %s14 = inlined_call_operand.vmem [shape: f32[2,1,32], index: 14, kind: input, shape index: {}]
  %s15 = inlined_call_operand.vmem [shape: f32[2,1,32], index: 15, kind: input, shape index: {}]
  %s16 = inlined_call_operand.vmem [shape: f32[2,1,32], index: 16, kind: input, shape index: {}]
  %s17 = inlined_call_operand.vmem [shape: f32[2,1,32], index: 17, kind: input, shape index: {}]
  %s18 = inlined_call_operand.vmem [shape: bf16[32,128], index: 18, kind: input, shape index: {}]
  %s19 = inlined_call_operand.vmem [shape: f32[1,128], index: 19, kind: input, shape index: {}]
  %s20 = inlined_call_operand.vmem [shape: f32[2,8,128], index: 20, kind: output, shape index: {}]
  %s21 = sld [smem:[#allocation0]]
  $region121: #{transformer_forward.1} parent=0
    _
  %s23 = ssub.s32 1, %s21
  %s24 = scalar_select 0, %s23, %s21
  loop: start=0, step=1, limit=6
  $region2: #{transformer_forward.1} parent=0 // loop_pre_header
    _
  $region3: #{transformer_forward.1} parent=0 // loop_header
    %s26 = sphi 0, %s30
    %p27 = scmp.ge.s32.totalorder %s26, 6
    %s33 = sphi 0, %s45
    %s34 = sphi 0, %s41
    %s35 = sphi 0, %s33
    %s36 = sphi 0, %s34
    %s37 = sphi 0, %s35
    %s38 = sphi 0, %s36
    %s48 = sphi 0, %s50
    %s51 = sphi 0, %s48
    %s52 = sphi 0, %s51
    %s68 = sphi 0, %s52
    %s74 = sphi 0, %s76
    %s77 = sphi 0, %s74
    %s78 = sphi 0, %s77
    %s94 = sphi 0, %s78
    %s98 = sphi 0, %s98
    %s100 = sphi 0, %s98
    %s101 = sphi 0, %s100
    %s115 = sphi 0, %s101
    %s119 = sphi 0, %s119
    %s121 = sphi 0, %s119
    %s122 = sphi 0, %s121
    %s136 = sphi 0, %s122
    %s140 = sphi 0, %s140
    %s142 = sphi 0, %s140
    %s143 = sphi 0, %s142
    %s157 = sphi 0, %s143
    %s161 = sphi 0, %s161
    %s163 = sphi 0, %s161
    %s164 = sphi 0, %s163
    %s178 = sphi 0, %s164
    %s184 = sphi 0, %s186
    %s187 = sphi 0, %s184
    %s188 = sphi 0, %s187
    %s204 = sphi 0, %s188
    %s210 = sphi 0, %s212
    %s213 = sphi 0, %s210
    %s214 = sphi 0, %s213
    %s230 = sphi 0, %s214
    %s236 = sphi 0, %s238
    %s239 = sphi 0, %s236
    %s240 = sphi 0, %s239
    %s256 = sphi 0, %s240
    %s262 = sphi 0, %s264
    %s265 = sphi 0, %s262
    %s266 = sphi 0, %s265
    %s282 = sphi 0, %s266
    %s288 = sphi 0, %s290
    %s291 = sphi 0, %s288
    %s292 = sphi 0, %s291
    %s308 = sphi 0, %s292
    %s314 = sphi 0, %s316
    %s317 = sphi 0, %s314
    %s318 = sphi 0, %s317
    %s334 = sphi 0, %s318
    %s340 = sphi 0, %s342
    %s343 = sphi 0, %s340
    %s344 = sphi 0, %s343
    %s360 = sphi 0, %s344
    %s366 = sphi 0, %s368
    %s369 = sphi 0, %s366
    %s370 = sphi 0, %s369
    %s386 = sphi 0, %s370
    %s392 = sphi 0, %s394
    %s395 = sphi 0, %s392
    %s396 = sphi 0, %s395
    %s412 = sphi 0, %s396
    %s418 = sphi 0, %s420
    %s421 = sphi 0, %s418
    %s422 = sphi 0, %s421
    %s438 = sphi 0, %s422
    %s444 = sphi 0, %s446
    %s447 = sphi 0, %s444
    %s448 = sphi 0, %s447
    %s464 = sphi 0, %s448
    %s470 = sphi 0, %s472
    %s473 = sphi 0, %s470
    %s474 = sphi 0, %s473
    %s490 = sphi 0, %s474
    %s494 = sphi 0, %s494
    %s496 = sphi 0, %s494
    %s497 = sphi 0, %s496
    %s511 = sphi 0, %s497
    %s515 = sphi 0, %s515
    %s517 = sphi 0, %s515
    %s518 = sphi 0, %s517
    %s532 = sphi 0, %s518
    %s538 = sphi 0, %s540
    %s541 = sphi 0, %s538
    %s542 = sphi 0, %s541
    %s558 = sphi 0, %s542
  $region4: #{transformer_forward.1} parent=0 // loop_header_branch
    %29 = sbr.rel (%p27) target = $region8
  $region5: #{transformer_forward.1} parent=0 // loop_body
    %s31 = ssub.s32 %s26, 1
    %s32 = ssub.s32 %s26, 2
    %s39 = sadd.s32 1, %s34
    %p40 = scmp.ge.s32.totalorder %s39, 2
    %s41 = scalar_select %p40, 0, %s39
    %s42 = sadd.s32 1, %s33
    %s43 = scalar_select %p40, %s42, %s33
    %p44 = scmp.ge.s32.totalorder %s43, 2
    %s45 = scalar_select %p44, 0, %s43
    %s46 = ssub.s32 %s33, %s45
    %p47 = scmp.eq.s32.totalorder %s46, 0
    %s49 = sadd.s32 %s48, 1
    %s50 = scalar_select %p47, %s48, %s49
    %p53 = pneg %p47
    %p54 = scmp.eq.s32.totalorder %s26, 3
    %p55 = por %p53, %p54
    %p56 = scmp.ne.s32.totalorder %s48, %s51
    %p57 = scmp.eq.s32.totalorder %s26, 0
    %p58 = por %p56, %p57
    %p59 = scmp.ne.s32.totalorder %s48, %s51
    %p60 = scmp.eq.s32.totalorder %s31, 3
    %p61 = por %p59, %p60
    %p62 = scmp.ne.s32.totalorder %s51, %s52
    %p63 = scmp.eq.s32.totalorder %s31, 0
    %p64 = por %p62, %p63
    %p65 = scmp.ne.s32.totalorder %s51, %s52
    %p66 = scmp.eq.s32.totalorder %s32, 3
    %p67 = por %p65, %p66
    %p69 = scmp.ne.s32.totalorder %s52, %s68
    %p70 = scmp.eq.s32.totalorder %s32, 0
    %p71 = por %p69, %p70
    %s72 = ssub.s32 %s33, %s45
    %p73 = scmp.eq.s32.totalorder %s72, 0
    %s75 = sadd.s32 %s74, 1
    %s76 = scalar_select %p73, %s74, %s75
    %p79 = pneg %p73
    %p80 = scmp.eq.s32.totalorder %s26, 3
    %p81 = por %p79, %p80
    %p82 = scmp.ne.s32.totalorder %s74, %s77
    %p83 = scmp.eq.s32.totalorder %s26, 0
    %p84 = por %p82, %p83
    %p85 = scmp.ne.s32.totalorder %s74, %s77
    %p86 = scmp.eq.s32.totalorder %s31, 3
    %p87 = por %p85, %p86
    %p88 = scmp.ne.s32.totalorder %s77, %s78
    %p89 = scmp.eq.s32.totalorder %s31, 0
    %p90 = por %p88, %p89
    %p91 = scmp.ne.s32.totalorder %s77, %s78
    %p92 = scmp.eq.s32.totalorder %s32, 3
    %p93 = por %p91, %p92
    %p95 = scmp.ne.s32.totalorder %s78, %s94
    %p96 = scmp.eq.s32.totalorder %s32, 0
    %p97 = por %p95, %p96
    %s99 = sadd.s32 %s98, 1
    %p102 = scmp.eq.s32.totalorder %s26, 3
    %p103 = scmp.ne.s32.totalorder %s98, %s100
    %p104 = scmp.eq.s32.totalorder %s26, 0
    %p105 = por %p103, %p104
    %p106 = scmp.ne.s32.totalorder %s98, %s100
    %p107 = scmp.eq.s32.totalorder %s31, 3
    %p108 = por %p106, %p107
    %p109 = scmp.ne.s32.totalorder %s100, %s101
    %p110 = scmp.eq.s32.totalorder %s31, 0
    %p111 = por %p109, %p110
    %p112 = scmp.ne.s32.totalorder %s100, %s101
    %p113 = scmp.eq.s32.totalorder %s32, 3
    %p114 = por %p112, %p113
    %p116 = scmp.ne.s32.totalorder %s101, %s115
    %p117 = scmp.eq.s32.totalorder %s32, 0
    %p118 = por %p116, %p117
    %s120 = sadd.s32 %s119, 1
    %p123 = scmp.eq.s32.totalorder %s26, 3
    %p124 = scmp.ne.s32.totalorder %s119, %s121
    %p125 = scmp.eq.s32.totalorder %s26, 0
    %p126 = por %p124, %p125
    %p127 = scmp.ne.s32.totalorder %s119, %s121
    %p128 = scmp.eq.s32.totalorder %s31, 3
    %p129 = por %p127, %p128
    %p130 = scmp.ne.s32.totalorder %s121, %s122
    %p131 = scmp.eq.s32.totalorder %s31, 0
    %p132 = por %p130, %p131
    %p133 = scmp.ne.s32.totalorder %s121, %s122
    %p134 = scmp.eq.s32.totalorder %s32, 3
    %p135 = por %p133, %p134
    %p137 = scmp.ne.s32.totalorder %s122, %s136
    %p138 = scmp.eq.s32.totalorder %s32, 0
    %p139 = por %p137, %p138
    %s141 = sadd.s32 %s140, 1
    %p144 = scmp.eq.s32.totalorder %s26, 3
    %p145 = scmp.ne.s32.totalorder %s140, %s142
    %p146 = scmp.eq.s32.totalorder %s26, 0
    %p147 = por %p145, %p146
    %p148 = scmp.ne.s32.totalorder %s140, %s142
    %p149 = scmp.eq.s32.totalorder %s31, 3
    %p150 = por %p148, %p149
    %p151 = scmp.ne.s32.totalorder %s142, %s143
    %p152 = scmp.eq.s32.totalorder %s31, 0
    %p153 = por %p151, %p152
    %p154 = scmp.ne.s32.totalorder %s142, %s143
    %p155 = scmp.eq.s32.totalorder %s32, 3
    %p156 = por %p154, %p155
    %p158 = scmp.ne.s32.totalorder %s143, %s157
    %p159 = scmp.eq.s32.totalorder %s32, 0
    %p160 = por %p158, %p159
    %s162 = sadd.s32 %s161, 1
    %p165 = scmp.eq.s32.totalorder %s26, 3
    %p166 = scmp.ne.s32.totalorder %s161, %s163
    %p167 = scmp.eq.s32.totalorder %s26, 0
    %p168 = por %p166, %p167
    %p169 = scmp.ne.s32.totalorder %s161, %s163
    %p170 = scmp.eq.s32.totalorder %s31, 3
    %p171 = por %p169, %p170
    %p172 = scmp.ne.s32.totalorder %s163, %s164
    %p173 = scmp.eq.s32.totalorder %s31, 0
    %p174 = por %p172, %p173
    %p175 = scmp.ne.s32.totalorder %s163, %s164
    %p176 = scmp.eq.s32.totalorder %s32, 3
    %p177 = por %p175, %p176
    %p179 = scmp.ne.s32.totalorder %s164, %s178
    %p180 = scmp.eq.s32.totalorder %s32, 0
    %p181 = por %p179, %p180
    %s182 = ssub.s32 %s34, %s41
    %p183 = scmp.eq.s32.totalorder %s182, 0
    %s185 = sadd.s32 %s184, 1
    %s186 = scalar_select %p183, %s184, %s185
    %p189 = pneg %p183
    %p190 = scmp.eq.s32.totalorder %s26, 3
    %p191 = por %p189, %p190
    %p192 = scmp.ne.s32.totalorder %s184, %s187
    %p193 = scmp.eq.s32.totalorder %s26, 0
    %p194 = por %p192, %p193
    %p195 = scmp.ne.s32.totalorder %s184, %s187
    %p196 = scmp.eq.s32.totalorder %s31, 3
    %p197 = por %p195, %p196
    %p198 = scmp.ne.s32.totalorder %s187, %s188
    %p199 = scmp.eq.s32.totalorder %s31, 0
    %p200 = por %p198, %p199
    %p201 = scmp.ne.s32.totalorder %s187, %s188
    %p202 = scmp.eq.s32.totalorder %s32, 3
    %p203 = por %p201, %p202
    %p205 = scmp.ne.s32.totalorder %s188, %s204
    %p206 = scmp.eq.s32.totalorder %s32, 0
    %p207 = por %p205, %p206
    %s208 = ssub.s32 %s34, %s41
    %p209 = scmp.eq.s32.totalorder %s208, 0
    %s211 = sadd.s32 %s210, 1
    %s212 = scalar_select %p209, %s210, %s211
    %p215 = pneg %p209
    %p216 = scmp.eq.s32.totalorder %s26, 3
    %p217 = por %p215, %p216
    %p218 = scmp.ne.s32.totalorder %s210, %s213
    %p219 = scmp.eq.s32.totalorder %s26, 0
    %p220 = por %p218, %p219
    %p221 = scmp.ne.s32.totalorder %s210, %s213
    %p222 = scmp.eq.s32.totalorder %s31, 3
    %p223 = por %p221, %p222
    %p224 = scmp.ne.s32.totalorder %s213, %s214
    %p225 = scmp.eq.s32.totalorder %s31, 0
    %p226 = por %p224, %p225
    %p227 = scmp.ne.s32.totalorder %s213, %s214
    %p228 = scmp.eq.s32.totalorder %s32, 3
    %p229 = por %p227, %p228
    %p231 = scmp.ne.s32.totalorder %s214, %s230
    %p232 = scmp.eq.s32.totalorder %s32, 0
    %p233 = por %p231, %p232
    %s234 = ssub.s32 %s34, %s41
    %p235 = scmp.eq.s32.totalorder %s234, 0
    %s237 = sadd.s32 %s236, 1
    %s238 = scalar_select %p235, %s236, %s237
    %p241 = pneg %p235
    %p242 = scmp.eq.s32.totalorder %s26, 3
    %p243 = por %p241, %p242
    %p244 = scmp.ne.s32.totalorder %s236, %s239
    %p245 = scmp.eq.s32.totalorder %s26, 0
    %p246 = por %p244, %p245
    %p247 = scmp.ne.s32.totalorder %s236, %s239
    %p248 = scmp.eq.s32.totalorder %s31, 3
    %p249 = por %p247, %p248
    %p250 = scmp.ne.s32.totalorder %s239, %s240
    %p251 = scmp.eq.s32.totalorder %s31, 0
    %p252 = por %p250, %p251
    %p253 = scmp.ne.s32.totalorder %s239, %s240
    %p254 = scmp.eq.s32.totalorder %s32, 3
    %p255 = por %p253, %p254
    %p257 = scmp.ne.s32.totalorder %s240, %s256
    %p258 = scmp.eq.s32.totalorder %s32, 0
    %p259 = por %p257, %p258
    %s260 = ssub.s32 %s34, %s41
    %p261 = scmp.eq.s32.totalorder %s260, 0
    %s263 = sadd.s32 %s262, 1
    %s264 = scalar_select %p261, %s262, %s263
    %p267 = pneg %p261
    %p268 = scmp.eq.s32.totalorder %s26, 3
    %p269 = por %p267, %p268
    %p270 = scmp.ne.s32.totalorder %s262, %s265
    %p271 = scmp.eq.s32.totalorder %s26, 0
    %p272 = por %p270, %p271
    %p273 = scmp.ne.s32.totalorder %s262, %s265
    %p274 = scmp.eq.s32.totalorder %s31, 3
    %p275 = por %p273, %p274
    %p276 = scmp.ne.s32.totalorder %s265, %s266
    %p277 = scmp.eq.s32.totalorder %s31, 0
    %p278 = por %p276, %p277
    %p279 = scmp.ne.s32.totalorder %s265, %s266
    %p280 = scmp.eq.s32.totalorder %s32, 3
    %p281 = por %p279, %p280
    %p283 = scmp.ne.s32.totalorder %s266, %s282
    %p284 = scmp.eq.s32.totalorder %s32, 0
    %p285 = por %p283, %p284
    %s286 = ssub.s32 %s34, %s41
    %p287 = scmp.eq.s32.totalorder %s286, 0
    %s289 = sadd.s32 %s288, 1
    %s290 = scalar_select %p287, %s288, %s289
    %p293 = pneg %p287
    %p294 = scmp.eq.s32.totalorder %s26, 3
    %p295 = por %p293, %p294
    %p296 = scmp.ne.s32.totalorder %s288, %s291
    %p297 = scmp.eq.s32.totalorder %s26, 0
    %p298 = por %p296, %p297
    %p299 = scmp.ne.s32.totalorder %s288, %s291
    %p300 = scmp.eq.s32.totalorder %s31, 3
    %p301 = por %p299, %p300
    %p302 = scmp.ne.s32.totalorder %s291, %s292
    %p303 = scmp.eq.s32.totalorder %s31, 0
    %p304 = por %p302, %p303
    %p305 = scmp.ne.s32.totalorder %s291, %s292
    %p306 = scmp.eq.s32.totalorder %s32, 3
    %p307 = por %p305, %p306
    %p309 = scmp.ne.s32.totalorder %s292, %s308
    %p310 = scmp.eq.s32.totalorder %s32, 0
    %p311 = por %p309, %p310
    %s312 = ssub.s32 %s34, %s41
    %p313 = scmp.eq.s32.totalorder %s312, 0
    %s315 = sadd.s32 %s314, 1
    %s316 = scalar_select %p313, %s314, %s315
    %p319 = pneg %p313
    %p320 = scmp.eq.s32.totalorder %s26, 3
    %p321 = por %p319, %p320
    %p322 = scmp.ne.s32.totalorder %s314, %s317
    %p323 = scmp.eq.s32.totalorder %s26, 0
    %p324 = por %p322, %p323
    %p325 = scmp.ne.s32.totalorder %s314, %s317
    %p326 = scmp.eq.s32.totalorder %s31, 3
    %p327 = por %p325, %p326
    %p328 = scmp.ne.s32.totalorder %s317, %s318
    %p329 = scmp.eq.s32.totalorder %s31, 0
    %p330 = por %p328, %p329
    %p331 = scmp.ne.s32.totalorder %s317, %s318
    %p332 = scmp.eq.s32.totalorder %s32, 3
    %p333 = por %p331, %p332
    %p335 = scmp.ne.s32.totalorder %s318, %s334
    %p336 = scmp.eq.s32.totalorder %s32, 0
    %p337 = por %p335, %p336
    %s338 = ssub.s32 %s34, %s41
    %p339 = scmp.eq.s32.totalorder %s338, 0
    %s341 = sadd.s32 %s340, 1
    %s342 = scalar_select %p339, %s340, %s341
    %p345 = pneg %p339
    %p346 = scmp.eq.s32.totalorder %s26, 3
    %p347 = por %p345, %p346
    %p348 = scmp.ne.s32.totalorder %s340, %s343
    %p349 = scmp.eq.s32.totalorder %s26, 0
    %p350 = por %p348, %p349
    %p351 = scmp.ne.s32.totalorder %s340, %s343
    %p352 = scmp.eq.s32.totalorder %s31, 3
    %p353 = por %p351, %p352
    %p354 = scmp.ne.s32.totalorder %s343, %s344
    %p355 = scmp.eq.s32.totalorder %s31, 0
    %p356 = por %p354, %p355
    %p357 = scmp.ne.s32.totalorder %s343, %s344
    %p358 = scmp.eq.s32.totalorder %s32, 3
    %p359 = por %p357, %p358
    %p361 = scmp.ne.s32.totalorder %s344, %s360
    %p362 = scmp.eq.s32.totalorder %s32, 0
    %p363 = por %p361, %p362
    %s364 = ssub.s32 %s34, %s41
    %p365 = scmp.eq.s32.totalorder %s364, 0
    %s367 = sadd.s32 %s366, 1
    %s368 = scalar_select %p365, %s366, %s367
    %p371 = pneg %p365
    %p372 = scmp.eq.s32.totalorder %s26, 3
    %p373 = por %p371, %p372
    %p374 = scmp.ne.s32.totalorder %s366, %s369
    %p375 = scmp.eq.s32.totalorder %s26, 0
    %p376 = por %p374, %p375
    %p377 = scmp.ne.s32.totalorder %s366, %s369
    %p378 = scmp.eq.s32.totalorder %s31, 3
    %p379 = por %p377, %p378
    %p380 = scmp.ne.s32.totalorder %s369, %s370
    %p381 = scmp.eq.s32.totalorder %s31, 0
    %p382 = por %p380, %p381
    %p383 = scmp.ne.s32.totalorder %s369, %s370
    %p384 = scmp.eq.s32.totalorder %s32, 3
    %p385 = por %p383, %p384
    %p387 = scmp.ne.s32.totalorder %s370, %s386
    %p388 = scmp.eq.s32.totalorder %s32, 0
    %p389 = por %p387, %p388
    %s390 = ssub.s32 %s34, %s41
    %p391 = scmp.eq.s32.totalorder %s390, 0
    %s393 = sadd.s32 %s392, 1
    %s394 = scalar_select %p391, %s392, %s393
    %p397 = pneg %p391
    %p398 = scmp.eq.s32.totalorder %s26, 3
    %p399 = por %p397, %p398
    %p400 = scmp.ne.s32.totalorder %s392, %s395
    %p401 = scmp.eq.s32.totalorder %s26, 0
    %p402 = por %p400, %p401
    %p403 = scmp.ne.s32.totalorder %s392, %s395
    %p404 = scmp.eq.s32.totalorder %s31, 3
    %p405 = por %p403, %p404
    %p406 = scmp.ne.s32.totalorder %s395, %s396
    %p407 = scmp.eq.s32.totalorder %s31, 0
    %p408 = por %p406, %p407
    %p409 = scmp.ne.s32.totalorder %s395, %s396
    %p410 = scmp.eq.s32.totalorder %s32, 3
    %p411 = por %p409, %p410
    %p413 = scmp.ne.s32.totalorder %s396, %s412
    %p414 = scmp.eq.s32.totalorder %s32, 0
    %p415 = por %p413, %p414
    %s416 = ssub.s32 %s34, %s41
    %p417 = scmp.eq.s32.totalorder %s416, 0
    %s419 = sadd.s32 %s418, 1
    %s420 = scalar_select %p417, %s418, %s419
    %p423 = pneg %p417
    %p424 = scmp.eq.s32.totalorder %s26, 3
    %p425 = por %p423, %p424
    %p426 = scmp.ne.s32.totalorder %s418, %s421
    %p427 = scmp.eq.s32.totalorder %s26, 0
    %p428 = por %p426, %p427
    %p429 = scmp.ne.s32.totalorder %s418, %s421
    %p430 = scmp.eq.s32.totalorder %s31, 3
    %p431 = por %p429, %p430
    %p432 = scmp.ne.s32.totalorder %s421, %s422
    %p433 = scmp.eq.s32.totalorder %s31, 0
    %p434 = por %p432, %p433
    %p435 = scmp.ne.s32.totalorder %s421, %s422
    %p436 = scmp.eq.s32.totalorder %s32, 3
    %p437 = por %p435, %p436
    %p439 = scmp.ne.s32.totalorder %s422, %s438
    %p440 = scmp.eq.s32.totalorder %s32, 0
    %p441 = por %p439, %p440
    %s442 = ssub.s32 %s34, %s41
    %p443 = scmp.eq.s32.totalorder %s442, 0
    %s445 = sadd.s32 %s444, 1
    %s446 = scalar_select %p443, %s444, %s445
    %p449 = pneg %p443
    %p450 = scmp.eq.s32.totalorder %s26, 3
    %p451 = por %p449, %p450
    %p452 = scmp.ne.s32.totalorder %s444, %s447
    %p453 = scmp.eq.s32.totalorder %s26, 0
    %p454 = por %p452, %p453
    %p455 = scmp.ne.s32.totalorder %s444, %s447
    %p456 = scmp.eq.s32.totalorder %s31, 3
    %p457 = por %p455, %p456
    %p458 = scmp.ne.s32.totalorder %s447, %s448
    %p459 = scmp.eq.s32.totalorder %s31, 0
    %p460 = por %p458, %p459
    %p461 = scmp.ne.s32.totalorder %s447, %s448
    %p462 = scmp.eq.s32.totalorder %s32, 3
    %p463 = por %p461, %p462
    %p465 = scmp.ne.s32.totalorder %s448, %s464
    %p466 = scmp.eq.s32.totalorder %s32, 0
    %p467 = por %p465, %p466
    %s468 = ssub.s32 %s34, %s41
    %p469 = scmp.eq.s32.totalorder %s468, 0
    %s471 = sadd.s32 %s470, 1
    %s472 = scalar_select %p469, %s470, %s471
    %p475 = pneg %p469
    %p476 = scmp.eq.s32.totalorder %s26, 3
    %p477 = por %p475, %p476
    %p478 = scmp.ne.s32.totalorder %s470, %s473
    %p479 = scmp.eq.s32.totalorder %s26, 0
    %p480 = por %p478, %p479
    %p481 = scmp.ne.s32.totalorder %s470, %s473
    %p482 = scmp.eq.s32.totalorder %s31, 3
    %p483 = por %p481, %p482
    %p484 = scmp.ne.s32.totalorder %s473, %s474
    %p485 = scmp.eq.s32.totalorder %s31, 0
    %p486 = por %p484, %p485
    %p487 = scmp.ne.s32.totalorder %s473, %s474
    %p488 = scmp.eq.s32.totalorder %s32, 3
    %p489 = por %p487, %p488
    %p491 = scmp.ne.s32.totalorder %s474, %s490
    %p492 = scmp.eq.s32.totalorder %s32, 0
    %p493 = por %p491, %p492
    %s495 = sadd.s32 %s494, 1
    %p498 = scmp.eq.s32.totalorder %s26, 3
    %p499 = scmp.ne.s32.totalorder %s494, %s496
    %p500 = scmp.eq.s32.totalorder %s26, 0
    %p501 = por %p499, %p500
    %p502 = scmp.ne.s32.totalorder %s494, %s496
    %p503 = scmp.eq.s32.totalorder %s31, 3
    %p504 = por %p502, %p503
    %p505 = scmp.ne.s32.totalorder %s496, %s497
    %p506 = scmp.eq.s32.totalorder %s31, 0
    %p507 = por %p505, %p506
    %p508 = scmp.ne.s32.totalorder %s496, %s497
    %p509 = scmp.eq.s32.totalorder %s32, 3
    %p510 = por %p508, %p509
    %p512 = scmp.ne.s32.totalorder %s497, %s511
    %p513 = scmp.eq.s32.totalorder %s32, 0
    %p514 = por %p512, %p513
    %s516 = sadd.s32 %s515, 1
    %p519 = scmp.eq.s32.totalorder %s26, 3
    %p520 = scmp.ne.s32.totalorder %s515, %s517
    %p521 = scmp.eq.s32.totalorder %s26, 0
    %p522 = por %p520, %p521
    %p523 = scmp.ne.s32.totalorder %s515, %s517
    %p524 = scmp.eq.s32.totalorder %s31, 3
    %p525 = por %p523, %p524
    %p526 = scmp.ne.s32.totalorder %s517, %s518
    %p527 = scmp.eq.s32.totalorder %s31, 0
    %p528 = por %p526, %p527
    %p529 = scmp.ne.s32.totalorder %s517, %s518
    %p530 = scmp.eq.s32.totalorder %s32, 3
    %p531 = por %p529, %p530
    %p533 = scmp.ne.s32.totalorder %s518, %s532
    %p534 = scmp.eq.s32.totalorder %s32, 0
    %p535 = por %p533, %p534
    %s536 = ssub.s32 %s33, %s45
    %p537 = scmp.eq.s32.totalorder %s536, 0
    %s539 = sadd.s32 %s538, 1
    %s540 = scalar_select %p537, %s538, %s539
    %p543 = pneg %p537
    %p544 = scmp.eq.s32.totalorder %s26, 3
    %p545 = por %p543, %p544
    %p546 = scmp.ne.s32.totalorder %s538, %s541
    %p547 = scmp.eq.s32.totalorder %s26, 0
    %p548 = por %p546, %p547
    %p549 = scmp.ne.s32.totalorder %s538, %s541
    %p550 = scmp.eq.s32.totalorder %s31, 3
    %p551 = por %p549, %p550
    %p552 = scmp.ne.s32.totalorder %s541, %s542
    %p553 = scmp.eq.s32.totalorder %s31, 0
    %p554 = por %p552, %p553
    %p555 = scmp.ne.s32.totalorder %s541, %s542
    %p556 = scmp.eq.s32.totalorder %s32, 3
    %p557 = por %p555, %p556
    %p559 = scmp.ne.s32.totalorder %s542, %s558
    %p560 = scmp.eq.s32.totalorder %s32, 0
    %p561 = por %p559, %p560
    %p562 = scmp.le.s32.totalorder 1, %s26
    %p563 = scmp.lt.s32.totalorder %s26, 5
    %p564 = pnand %p562, %p563
    %p565 = pneg %p564
    // Predicated region
    $region9: #{transformer_forward.1} parent=5 // pred_check
      _
    $region10: #{transformer_forward.1} parent=5 // pred_check_branch
      %567 = sbr.rel (%p564) target = $region12
    $region11: #{transformer_forward.1} parent=5 // pred_region
      %s568 = ssub.s32 %s26, 1
      // Predicated region
      $region13: #{transformer_forward.1} parent=11 // pred_check
        %p569 = pneg %p111
      $region14: #{transformer_forward.1} parent=11 // pred_check_branch
        %571 = sbr.rel (%p569) target = $region16
      $region15: #{transformer_forward.1} parent=11 // pred_region
        _
      $region16: #{transformer_forward.1} parent=11 // pred_fallthru
        _
      // Predicated region
      $region17: #{transformer_forward.1} parent=11 // pred_check
        %p572 = pneg %p132
      $region18: #{transformer_forward.1} parent=11 // pred_check_branch
        %574 = sbr.rel (%p572) target = $region20
      $region19: #{transformer_forward.1} parent=11 // pred_region
        _
      $region20: #{transformer_forward.1} parent=11 // pred_fallthru
        _
      // Predicated region
      $region21: #{transformer_forward.1} parent=11 // pred_check
        %p575 = pneg %p153
      $region22: #{transformer_forward.1} parent=11 // pred_check_branch
        %577 = sbr.rel (%p575) target = $region24
      $region23: #{transformer_forward.1} parent=11 // pred_region
        _
      $region24: #{transformer_forward.1} parent=11 // pred_fallthru
        _
      // Predicated region
      $region25: #{transformer_forward.1} parent=11 // pred_check
        %p578 = pneg %p174
      $region26: #{transformer_forward.1} parent=11 // pred_check_branch
        %580 = sbr.rel (%p578) target = $region28
      $region27: #{transformer_forward.1} parent=11 // pred_region
        _
      $region28: #{transformer_forward.1} parent=11 // pred_fallthru
        _
      // Predicated region
      $region29: #{transformer_forward.1} parent=11 // pred_check
        %p581 = pneg %p507
      $region30: #{transformer_forward.1} parent=11 // pred_check_branch
        %583 = sbr.rel (%p581) target = $region32
      $region31: #{transformer_forward.1} parent=11 // pred_region
        _
      $region32: #{transformer_forward.1} parent=11 // pred_fallthru
        _
      // Predicated region
      $region33: #{transformer_forward.1} parent=11 // pred_check
        %p584 = pneg %p528
      $region34: #{transformer_forward.1} parent=11 // pred_check_branch
        %586 = sbr.rel (%p584) target = $region36
      $region35: #{transformer_forward.1} parent=11 // pred_region
        _
      $region36: #{transformer_forward.1} parent=11 // pred_fallthru
        _
    $region12: #{transformer_forward.1} parent=5 // pred_fallthru
      _
    %p587 = scmp.lt.s32.totalorder %s26, 4
    // Predicated region
    $region37: #{transformer_forward.1} parent=5 // pred_check
      %p588 = pneg %p587
    $region38: #{transformer_forward.1} parent=5 // pred_check_branch
      %590 = sbr.rel (%p588) target = $region40
    $region39: #{transformer_forward.1} parent=5 // pred_region
      // Predicated region
      $region41: #{transformer_forward.1} parent=39 // pred_check
        %p591 = pneg %p58
      $region42: #{transformer_forward.1} parent=39 // pred_check_branch
        %593 = sbr.rel (%p591) target = $region44
      $region43: #{transformer_forward.1} parent=39 // pred_region
        %p594 = scmp.lt.s32.totalorder %s33, 1
        %s595 = scalar_select %p594, %s33, 1
        %s596 = smul.addr %s595, 8
        %s597 = scalar_lea.vmem %s0, %s596
      $region44: #{transformer_forward.1} parent=39 // pred_fallthru
        _
      // Predicated region
      $region45: #{transformer_forward.1} parent=39 // pred_check
        %p598 = pneg %p84
      $region46: #{transformer_forward.1} parent=39 // pred_check_branch
        %600 = sbr.rel (%p598) target = $region48
      $region47: #{transformer_forward.1} parent=39 // pred_region
        %p601 = scmp.lt.s32.totalorder %s33, 1
        %s602 = scalar_select %p601, %s33, 1
        %s603 = scalar_lea.vmem %s1, %s602
      $region48: #{transformer_forward.1} parent=39 // pred_fallthru
        _
      // Predicated region
      $region49: #{transformer_forward.1} parent=39 // pred_check
        %p604 = pneg %p194
      $region50: #{transformer_forward.1} parent=39 // pred_check_branch
        %606 = sbr.rel (%p604) target = $region52
      $region51: #{transformer_forward.1} parent=39 // pred_region
        %p607 = scmp.lt.s32.totalorder %s34, 1
        %s608 = scalar_select %p607, %s34, 1
        %s609 = smul.addr %s608, 4
        %s610 = smul.addr %s609, 4
        %s611 = scalar_lea.vmem %s6, %s610
      $region52: #{transformer_forward.1} parent=39 // pred_fallthru
        _
      // Predicated region
      $region53: #{transformer_forward.1} parent=39 // pred_check
        %p612 = pneg %p220
      $region54: #{transformer_forward.1} parent=39 // pred_check_branch
        %614 = sbr.rel (%p612) target = $region56
      $region55: #{transformer_forward.1} parent=39 // pred_region
        %p615 = scmp.lt.s32.totalorder %s34, 1
        %s616 = scalar_select %p615, %s34, 1
        %s617 = scalar_lea.vmem %s7, %s616
      $region56: #{transformer_forward.1} parent=39 // pred_fallthru
        _
      // Predicated region
      $region57: #{transformer_forward.1} parent=39 // pred_check
        %p618 = pneg %p246
      $region58: #{transformer_forward.1} parent=39 // pred_check_branch
        %620 = sbr.rel (%p618) target = $region60
      $region59: #{transformer_forward.1} parent=39 // pred_region
        %p621 = scmp.lt.s32.totalorder %s34, 1
        %s622 = scalar_select %p621, %s34, 1
        %s623 = smul.addr %s622, 4
        %s624 = smul.addr %s623, 4
        %s625 = scalar_lea.vmem %s8, %s624
      $region60: #{transformer_forward.1} parent=39 // pred_fallthru
        _
      // Predicated region
      $region61: #{transformer_forward.1} parent=39 // pred_check
        %p626 = pneg %p272
      $region62: #{transformer_forward.1} parent=39 // pred_check_branch
        %628 = sbr.rel (%p626) target = $region64
      $region63: #{transformer_forward.1} parent=39 // pred_region
        %p629 = scmp.lt.s32.totalorder %s34, 1
        %s630 = scalar_select %p629, %s34, 1
        %s631 = scalar_lea.vmem %s9, %s630
      $region64: #{transformer_forward.1} parent=39 // pred_fallthru
        _
      // Predicated region
      $region65: #{transformer_forward.1} parent=39 // pred_check
        %p632 = pneg %p298
      $region66: #{transformer_forward.1} parent=39 // pred_check_branch
        %634 = sbr.rel (%p632) target = $region68
      $region67: #{transformer_forward.1} parent=39 // pred_region
        %p635 = scmp.lt.s32.totalorder %s34, 1
        %s636 = scalar_select %p635, %s34, 1
        %s637 = smul.addr %s636, 64
        %s638 = smul.addr %s637, 4
        %s639 = scalar_lea.vmem %s10, %s638
      $region68: #{transformer_forward.1} parent=39 // pred_fallthru
        _
      // Predicated region
      $region69: #{transformer_forward.1} parent=39 // pred_check
        %p640 = pneg %p324
      $region70: #{transformer_forward.1} parent=39 // pred_check_branch
        %642 = sbr.rel (%p640) target = $region72
      $region71: #{transformer_forward.1} parent=39 // pred_region
        %p643 = scmp.lt.s32.totalorder %s34, 1
        %s644 = scalar_select %p643, %s34, 1
        %s645 = smul.addr %s644, 16
        %s646 = scalar_lea.vmem %s11, %s645
      $region72: #{transformer_forward.1} parent=39 // pred_fallthru
        _
      // Predicated region
      $region73: #{transformer_forward.1} parent=39 // pred_check
        %p647 = pneg %p350
      $region74: #{transformer_forward.1} parent=39 // pred_check_branch
        %649 = sbr.rel (%p647) target = $region76
      $region75: #{transformer_forward.1} parent=39 // pred_region
        %p650 = scmp.lt.s32.totalorder %s34, 1
        %s651 = scalar_select %p650, %s34, 1
        %s652 = smul.addr %s651, 256
        %s653 = smul.addr %s652, 4
        %s654 = scalar_lea.vmem %s12, %s653
      $region76: #{transformer_forward.1} parent=39 // pred_fallthru
        _
      // Predicated region
      $region77: #{transformer_forward.1} parent=39 // pred_check
        %p655 = pneg %p376
      $region78: #{transformer_forward.1} parent=39 // pred_check_branch
        %657 = sbr.rel (%p655) target = $region80
      $region79: #{transformer_forward.1} parent=39 // pred_region
        %p658 = scmp.lt.s32.totalorder %s34, 1
        %s659 = scalar_select %p658, %s34, 1
        %s660 = scalar_lea.vmem %s13, %s659
      $region80: #{transformer_forward.1} parent=39 // pred_fallthru
        _
      // Predicated region
      $region81: #{transformer_forward.1} parent=39 // pred_check
        %p661 = pneg %p402
      $region82: #{transformer_forward.1} parent=39 // pred_check_branch
        %663 = sbr.rel (%p661) target = $region84
      $region83: #{transformer_forward.1} parent=39 // pred_region
        %p664 = scmp.lt.s32.totalorder %s34, 1
        %s665 = scalar_select %p664, %s34, 1
        %s666 = scalar_lea.vmem %s14, %s665
      $region84: #{transformer_forward.1} parent=39 // pred_fallthru
        _
      // Predicated region
      $region85: #{transformer_forward.1} parent=39 // pred_check
        %p667 = pneg %p428
      $region86: #{transformer_forward.1} parent=39 // pred_check_branch
        %669 = sbr.rel (%p667) target = $region88
      $region87: #{transformer_forward.1} parent=39 // pred_region
        %p670 = scmp.lt.s32.totalorder %s34, 1
        %s671 = scalar_select %p670, %s34, 1
        %s672 = scalar_lea.vmem %s15, %s671
      $region88: #{transformer_forward.1} parent=39 // pred_fallthru
        _
      // Predicated region
      $region89: #{transformer_forward.1} parent=39 // pred_check
        %p673 = pneg %p454
      $region90: #{transformer_forward.1} parent=39 // pred_check_branch
        %675 = sbr.rel (%p673) target = $region92
      $region91: #{transformer_forward.1} parent=39 // pred_region
        %p676 = scmp.lt.s32.totalorder %s34, 1
        %s677 = scalar_select %p676, %s34, 1
        %s678 = scalar_lea.vmem %s16, %s677
      $region92: #{transformer_forward.1} parent=39 // pred_fallthru
        _
      // Predicated region
      $region93: #{transformer_forward.1} parent=39 // pred_check
        %p679 = pneg %p480
      $region94: #{transformer_forward.1} parent=39 // pred_check_branch
        %681 = sbr.rel (%p679) target = $region96
      $region95: #{transformer_forward.1} parent=39 // pred_region
        %p682 = scmp.lt.s32.totalorder %s34, 1
        %s683 = scalar_select %p682, %s34, 1
        %s684 = scalar_lea.vmem %s17, %s683
      $region96: #{transformer_forward.1} parent=39 // pred_fallthru
        _
    $region40: #{transformer_forward.1} parent=5 // pred_fallthru
      _
    %p685 = scmp.le.s32.totalorder 1, %s26
    %p686 = scmp.lt.s32.totalorder %s26, 5
    %p687 = pnand %p685, %p686
    %p688 = pneg %p687
    // Predicated region
    $region97: #{transformer_forward.1} parent=5 // pred_check
      _
    $region98: #{transformer_forward.1} parent=5 // pred_check_branch
      %690 = sbr.rel (%p687) target = $region100
    $region99: #{transformer_forward.1} parent=5 // pred_region
      %s691 = ssub.s32 %s26, 1
      %p692 = scmp.lt.s32.totalorder %s35, 1
      %s693 = scalar_select %p692, %s35, 1
      %s694 = smul.addr %s693, 8
      %s695 = scalar_lea.vmem %s0, %s694
      %p696 = pneg %p64
      %p697 = pneg %p61
      %p698 = scmp.lt.s32.totalorder %s35, 1
      %s699 = scalar_select %p698, %s35, 1
      %s700 = scalar_lea.vmem %s1, %s699
      %p701 = pneg %p90
      %p702 = pneg %p87
      %p703 = pneg %p111
      %p704 = pneg %p108
      %p705 = pneg %p132
      %p706 = pneg %p129
      %p707 = pneg %p153
      %p708 = pneg %p150
      %p709 = pneg %p174
      %p710 = pneg %p171
      %p711 = scmp.lt.s32.totalorder %s36, 1
      %s712 = scalar_select %p711, %s36, 1
      %s713 = smul.addr %s712, 4
      %s714 = smul.addr %s713, 4
      %s715 = scalar_lea.vmem %s6, %s714
      %p716 = pneg %p200
      %p717 = pneg %p197
      %p718 = scmp.lt.s32.totalorder %s36, 1
      %s719 = scalar_select %p718, %s36, 1
      %s720 = scalar_lea.vmem %s7, %s719
      %p721 = pneg %p226
      %p722 = pneg %p223
      %p723 = scmp.lt.s32.totalorder %s36, 1
      %s724 = scalar_select %p723, %s36, 1
      %s725 = smul.addr %s724, 4
      %s726 = smul.addr %s725, 4
      %s727 = scalar_lea.vmem %s8, %s726
      %p728 = pneg %p252
      %p729 = pneg %p249
      %p730 = scmp.lt.s32.totalorder %s36, 1
      %s731 = scalar_select %p730, %s36, 1
      %s732 = scalar_lea.vmem %s9, %s731
      %p733 = pneg %p278
      %p734 = pneg %p275
      %p735 = scmp.lt.s32.totalorder %s36, 1
      %s736 = scalar_select %p735, %s36, 1
      %s737 = smul.addr %s736, 64
      %s738 = smul.addr %s737, 4
      %s739 = scalar_lea.vmem %s10, %s738
      %p740 = pneg %p304
      %p741 = pneg %p301
      %p742 = scmp.lt.s32.totalorder %s36, 1
      %s743 = scalar_select %p742, %s36, 1
      %s744 = smul.addr %s743, 16
      %s745 = scalar_lea.vmem %s11, %s744
      %p746 = pneg %p330
      %p747 = pneg %p327
      %p748 = scmp.lt.s32.totalorder %s36, 1
      %s749 = scalar_select %p748, %s36, 1
      %s750 = smul.addr %s749, 256
      %s751 = smul.addr %s750, 4
      %s752 = scalar_lea.vmem %s12, %s751
      %p753 = pneg %p356
      %p754 = pneg %p353
      %p755 = scmp.lt.s32.totalorder %s36, 1
      %s756 = scalar_select %p755, %s36, 1
      %s757 = scalar_lea.vmem %s13, %s756
      %p758 = pneg %p382
      %p759 = pneg %p379
      %p760 = scmp.lt.s32.totalorder %s36, 1
      %s761 = scalar_select %p760, %s36, 1
      %s762 = scalar_lea.vmem %s14, %s761
      %p763 = pneg %p408
      %p764 = pneg %p405
      %p765 = scmp.lt.s32.totalorder %s36, 1
      %s766 = scalar_select %p765, %s36, 1
      %s767 = scalar_lea.vmem %s15, %s766
      %p768 = pneg %p434
      %p769 = pneg %p431
      %p770 = scmp.lt.s32.totalorder %s36, 1
      %s771 = scalar_select %p770, %s36, 1
      %s772 = scalar_lea.vmem %s16, %s771
      %p773 = pneg %p460
      %p774 = pneg %p457
      %p775 = scmp.lt.s32.totalorder %s36, 1
      %s776 = scalar_select %p775, %s36, 1
      %s777 = scalar_lea.vmem %s17, %s776
      %p778 = pneg %p486
      %p779 = pneg %p483
      %p780 = pneg %p507
      %p781 = pneg %p504
      %p782 = pneg %p528
      %p783 = pneg %p525
      %p784 = pneg %p554
      %p785 = pneg %p551
      %p786 = scmp.lt.s32.totalorder %s35, 1
      %s787 = scalar_select %p786, %s35, 1
      %s788 = smul.addr %s787, 8
      %s789 = scalar_lea.vmem %s20, %s788
      %p790 = scmp.lt.s32.totalorder %s35, 1
      %s791 = scalar_select %p790, %s35, 1
      %s792 = smul.addr %s791, 8
      %s793 = scalar_lea.vmem %s0, %s792
      %p794 = scmp.lt.s32.totalorder %s35, 1
      %s795 = scalar_select %p794, %s35, 1
      %s796 = scalar_lea.vmem %s1, %s795
      %p797 = scmp.lt.s32.totalorder %s36, 1
      %s798 = scalar_select %p797, %s36, 1
      %s799 = smul.addr %s798, 4
      %s800 = smul.addr %s799, 4
      %s801 = scalar_lea.vmem %s6, %s800
      %p802 = scmp.lt.s32.totalorder %s36, 1
      %s803 = scalar_select %p802, %s36, 1
      %s804 = scalar_lea.vmem %s7, %s803
      %p805 = scmp.lt.s32.totalorder %s36, 1
      %s806 = scalar_select %p805, %s36, 1
      %s807 = smul.addr %s806, 4
      %s808 = smul.addr %s807, 4
      %s809 = scalar_lea.vmem %s8, %s808
      %p810 = scmp.lt.s32.totalorder %s36, 1
      %s811 = scalar_select %p810, %s36, 1
      %s812 = scalar_lea.vmem %s9, %s811
      %p813 = scmp.lt.s32.totalorder %s36, 1
      %s814 = scalar_select %p813, %s36, 1
      %s815 = smul.addr %s814, 64
      %s816 = smul.addr %s815, 4
      %s817 = scalar_lea.vmem %s10, %s816
      %p818 = scmp.lt.s32.totalorder %s36, 1
      %s819 = scalar_select %p818, %s36, 1
      %s820 = smul.addr %s819, 16
      %s821 = scalar_lea.vmem %s11, %s820
      %p822 = scmp.lt.s32.totalorder %s36, 1
      %s823 = scalar_select %p822, %s36, 1
      %s824 = smul.addr %s823, 256
      %s825 = smul.addr %s824, 4
      %s826 = scalar_lea.vmem %s12, %s825
      %p827 = scmp.lt.s32.totalorder %s36, 1
      %s828 = scalar_select %p827, %s36, 1
      %s829 = scalar_lea.vmem %s13, %s828
      %p830 = scmp.lt.s32.totalorder %s36, 1
      %s831 = scalar_select %p830, %s36, 1
      %s832 = scalar_lea.vmem %s14, %s831
      %p833 = scmp.lt.s32.totalorder %s36, 1
      %s834 = scalar_select %p833, %s36, 1
      %s835 = scalar_lea.vmem %s15, %s834
      %p836 = scmp.lt.s32.totalorder %s36, 1
      %s837 = scalar_select %p836, %s36, 1
      %s838 = scalar_lea.vmem %s16, %s837
      %p839 = scmp.lt.s32.totalorder %s36, 1
      %s840 = scalar_select %p839, %s36, 1
      %s841 = scalar_lea.vmem %s17, %s840
      %p842 = scmp.lt.s32.totalorder %s35, 1
      %s843 = scalar_select %p842, %s35, 1
      %s844 = smul.addr %s843, 8
      %s845 = scalar_lea.vmem %s20, %s844
      %p847 = scmp.eq.s32.totalorder %s36, 0
      // Predicated region
      $region101: #{transformer_forward.1} parent=99 // pred_check
        %p848 = pneg %p847
      $region102: #{transformer_forward.1} parent=99 // pred_check_branch
        %850 = sbr.rel (%p848) target = $region104
      $region103: #{transformer_forward.1} parent=99 // pred_region
        %v851 = vld [vmem:[%s793] sm:$0xff]
        %v852 = vpack.c.bf16 %v851, %v851
        %v853 = vld [vmem:[%s2] sm:$0xf]
        %v854 = vld [vmem:[%s2 + $0x4] sm:$0xf]
        %v855 = vld [vmem:[%s3] sm:$0x1]
        %v857 = vperm.slane %v855, 0
        %v861 = vunpack.c.l.b16 %v853
        %v862 = vunpack.c.l.b16 %v854
        %v863 = vpack.c.b16 %v862, %v861
        %vm865 = vcmask 130048
        %v867 = vsel %vm865, %v852, 0
        %869 = vmatpush.bf16.msra.mxu0 0
        %870 = vmatpush.bf16.msra.mxu0 0
        %871 = vmatpush.bf16.msra.mxu0 0
        %872 = vmatpush.bf16.msra.mxu0 0
        %873 = vmatpush.bf16.msra.mxu0 0
        %874 = vmatpush.bf16.msra.mxu0 0
        %875 = vmatpush.bf16.msra.mxu0 0
        %876 = vmatpush.bf16.msra.mxu0 %v863
        %877 = vmatmul.bf16.gmra.mxu0 %v867
        %v878 = vpop.f32.mrf.mxu0
        %v879 = vadd.f32 %v857, %v878
        %v880 = vpop.f32.mrf.mxu0
        %881 = vdwg.mxu0
        %v882 = vld [vmem:[%s4] sm:$0x1]
        %v883 = vld [vmem:[%s5] sm:$0x1]
        %vm884 = vcmask 261120
        %v885 = vsel %vm884, %v879, 0.0
        %886 = vadd.xlane.f32.xlu0 %v885
        %v887 = vpop.xlane.xlu0 %886
        %v888 = vrcp.pop 32.0
        %v889 = vmul.f32 32.0, %v888
        %v890 = vsub.f32 1.0, %v889
        %v891 = vmul.f32 %v888, %v890
        %v892 = vadd.f32 %v888, %v891
        %vm893 = vweird.f32 %v888
        %v894 = vsel %vm893, %v888, %v892
        %v895 = vmul.f32 %v887, %v894
        %v896 = vsub.f32 %v879, %v895
        %v897 = vmul.f32 %v896, %v896
        %v898 = vsel %vm884, %v897, 0.0
        %899 = vadd.xlane.f32.xlu0 %v898
        %v900 = vpop.xlane.xlu0 %899
        %v901 = vmul.f32 %v900, %v894
        %v902 = vadd.f32 %v901, 1e-05
        %v903 = vrsqrt.pop %v902
        %v904 = vmul.f32 %v903, %v902
        %v905 = vmul.f32 %v904, %v903
        %v906 = vmul.f32 0.5, %v905
        %v907 = vsub.f32 1.5, %v906
        %v908 = vmul.f32 %v903, %v907
        %vm909 = vweird.f32 %v902
        %vm910 = vweird.f32 %v903
        %vm911 = vmor %vm909, %vm910
        %v912 = vsel %vm911, %v903, %v908
        %v913 = vmul.f32 %v896, %v912
        %v915 = vperm.slane %v882, 0
        %v917 = vmul.f32 %v913, %v915
        %v919 = vperm.slane %v883, 0
        %v921 = vadd.f32 %v917, %v919
        %v922 = vmax.f32 %v921, 0.0
        %v923 = vld [vmem:[%s796] sm:$0x1]
        %v925 = vperm.slane %v923, 0
        %v927 = vadd.f32 %v922, %v925
        %928 = vst.msk [vmem:[#allocation2] sm:$0xff] %vm884, %v927
      $region104: #{transformer_forward.1} parent=99 // pred_fallthru
        _
      %v929 = vld [vmem:[#allocation2] sm:$0xff]
      %v930 = vpack.c.bf16 %v929, %v929
      %v931 = vld [vmem:[%s801] sm:$0xf]
      %v932 = vld [vmem:[%s801 + $0x4] sm:$0xf]
      %v933 = vld [vmem:[%s801 + $0x8] sm:$0xf]
      %v934 = vld [vmem:[%s801 + $0xc] sm:$0xf]
      %v935 = vld [vmem:[%s804] sm:$0x1]
      %v937 = vperm.slane %v935, 0
      %v943 = vunpack.c.l.b16 %v931
      %v944 = vunpack.c.l.b16 %v932
      %v945 = vunpack.c.l.b16 %v933
      %v946 = vunpack.c.l.b16 %v934
      %v947 = vpack.c.b16 %v944, %v943
      %v948 = vpack.c.b16 %v946, %v945
      %vm951 = vcmask 261120
      %v953 = vsel %vm951, %v930, 0
      %955 = vmatpush.bf16.msra.mxu0 0
      %956 = vmatpush.bf16.msra.mxu0 0
      %957 = vmatpush.bf16.msra.mxu0 0
      %958 = vmatpush.bf16.msra.mxu0 0
      %959 = vmatpush.bf16.msra.mxu0 0
      %960 = vmatpush.bf16.msra.mxu0 0
      %961 = vmatpush.bf16.msra.mxu0 %v948
      %962 = vmatpush.bf16.msra.mxu0 %v947
      %963 = vmatmul.bf16.gmra.mxu0 %v953
      %v964 = vpop.f32.mrf.mxu0
      %v965 = vadd.f32 %v937, %v964
      %v966 = vpop.f32.mrf.mxu0
      %967 = vdwg.mxu0
      %969 = vrot.lane.b32.xlu0 %v965, 96
      %v970 = vpop.permute.xlu0 %969
      %vm971 = vcmask 31744
      %v972 = vsel %vm971, %v965, 0
      %v974 = vsel %vm971, %v970, 0
      %976 = vmatpush.xpose.msra.mxu0 0.0
      %977 = vmatpush.xpose.msra.mxu0 0.0
      %978 = vmatpush.xpose.msra.mxu0 0.0
      %979 = vmatpush.xpose.msra.mxu0 0.0
      %980 = vmatpush.xpose.msra.mxu0 0.0
      %981 = vmatpush.xpose.msra.mxu0 0.0
      %982 = vmatpush.xpose.msra.mxu0 0.0
      %983 = vmatpush.xpose.msra.mxu0 0.0
      %984 = vmatpush.xpose.msra.mxu0 0.0
      %985 = vmatpush.xpose.msra.mxu0 0.0
      %986 = vmatpush.xpose.msra.mxu0 0.0
      %987 = vmatpush.xpose.msra.mxu0 0.0
      %988 = vmatpush.xpose.msra.mxu0 0.0
      %989 = vmatpush.xpose.msra.mxu0 0.0
      %990 = vmatpush.xpose.msra.mxu0 0.0
      %991 = vmatpush.xpose.msra.mxu0 %v974
      %992 = vmatmul.f32.gmra.mxu0 %v972
      %v993 = vpop.f32.mrf.mxu0
      %v994 = vadd.f32 0.0, %v993
      %995 = vdwg.mxu0
      %996 = vrot.lane.b32.xlu0 %v965, 124
      %v997 = vpop.permute.xlu0 %996
      %998 = vrot.lane.b32.xlu0 %v965, 92
      %v999 = vpop.permute.xlu0 %998
      %v1000 = vsel %vm971, %v997, 0
      %v1002 = vsel %vm971, %v999, 0
      %1004 = vmatpush.xpose.msra.mxu0 0.0
      %1005 = vmatpush.xpose.msra.mxu0 0.0
      %1006 = vmatpush.xpose.msra.mxu0 0.0
      %1007 = vmatpush.xpose.msra.mxu0 0.0
      %1008 = vmatpush.xpose.msra.mxu0 0.0
      %1009 = vmatpush.xpose.msra.mxu0 0.0
      %1010 = vmatpush.xpose.msra.mxu0 0.0
      %1011 = vmatpush.xpose.msra.mxu0 0.0
      %1012 = vmatpush.xpose.msra.mxu0 0.0
      %1013 = vmatpush.xpose.msra.mxu0 0.0
      %1014 = vmatpush.xpose.msra.mxu0 0.0
      %1015 = vmatpush.xpose.msra.mxu0 0.0
      %1016 = vmatpush.xpose.msra.mxu0 0.0
      %1017 = vmatpush.xpose.msra.mxu0 0.0
      %1018 = vmatpush.xpose.msra.mxu0 0.0
      %1019 = vmatpush.xpose.msra.mxu0 %v1002
      %1020 = vmatmul.f32.gmra.mxu0 %v1000
      %v1021 = vpop.f32.mrf.mxu0
      %v1022 = vadd.f32 0.0, %v1021
      %1023 = vdwg.mxu0
      %1024 = vrot.lane.b32.xlu0 %v965, 120
      %v1025 = vpop.permute.xlu0 %1024
      %1026 = vrot.lane.b32.xlu0 %v965, 88
      %v1027 = vpop.permute.xlu0 %1026
      %v1028 = vsel %vm971, %v1025, 0
      %v1030 = vsel %vm971, %v1027, 0
      %1032 = vmatpush.xpose.msra.mxu0 0.0
      %1033 = vmatpush.xpose.msra.mxu0 0.0
      %1034 = vmatpush.xpose.msra.mxu0 0.0
      %1035 = vmatpush.xpose.msra.mxu0 0.0
      %1036 = vmatpush.xpose.msra.mxu0 0.0
      %1037 = vmatpush.xpose.msra.mxu0 0.0
      %1038 = vmatpush.xpose.msra.mxu0 0.0
      %1039 = vmatpush.xpose.msra.mxu0 0.0
      %1040 = vmatpush.xpose.msra.mxu0 0.0
      %1041 = vmatpush.xpose.msra.mxu0 0.0
      %1042 = vmatpush.xpose.msra.mxu0 0.0
      %1043 = vmatpush.xpose.msra.mxu0 0.0
      %1044 = vmatpush.xpose.msra.mxu0 0.0
      %1045 = vmatpush.xpose.msra.mxu0 0.0
      %1046 = vmatpush.xpose.msra.mxu0 0.0
      %1047 = vmatpush.xpose.msra.mxu0 %v1030
      %1048 = vmatmul.f32.gmra.mxu0 %v1028
      %v1049 = vpop.f32.mrf.mxu0
      %v1050 = vadd.f32 0.0, %v1049
      %1051 = vdwg.mxu0
      %1052 = vrot.lane.b32.xlu0 %v965, 116
      %v1053 = vpop.permute.xlu0 %1052
      %1054 = vrot.lane.b32.xlu0 %v965, 84
      %v1055 = vpop.permute.xlu0 %1054
      %v1056 = vsel %vm971, %v1053, 0
      %v1058 = vsel %vm971, %v1055, 0
      %1060 = vmatpush.xpose.msra.mxu0 0.0
      %1061 = vmatpush.xpose.msra.mxu0 0.0
      %1062 = vmatpush.xpose.msra.mxu0 0.0
      %1063 = vmatpush.xpose.msra.mxu0 0.0
      %1064 = vmatpush.xpose.msra.mxu0 0.0
      %1065 = vmatpush.xpose.msra.mxu0 0.0
      %1066 = vmatpush.xpose.msra.mxu0 0.0
      %1067 = vmatpush.xpose.msra.mxu0 0.0
      %1068 = vmatpush.xpose.msra.mxu0 0.0
      %1069 = vmatpush.xpose.msra.mxu0 0.0
      %1070 = vmatpush.xpose.msra.mxu0 0.0
      %1071 = vmatpush.xpose.msra.mxu0 0.0
      %1072 = vmatpush.xpose.msra.mxu0 0.0
      %1073 = vmatpush.xpose.msra.mxu0 0.0
      %1074 = vmatpush.xpose.msra.mxu0 0.0
      %1075 = vmatpush.xpose.msra.mxu0 %v1058
      %1076 = vmatmul.f32.gmra.mxu0 %v1056
      %v1077 = vpop.f32.mrf.mxu0
      %v1078 = vadd.f32 0.0, %v1077
      %1079 = vdwg.mxu0
      %1080 = vrot.lane.b32.xlu0 %v965, 112
      %v1081 = vpop.permute.xlu0 %1080
      %1082 = vrot.lane.b32.xlu0 %v965, 80
      %v1083 = vpop.permute.xlu0 %1082
      %v1084 = vsel %vm971, %v1081, 0
      %v1086 = vsel %vm971, %v1083, 0
      %1088 = vmatpush.xpose.msra.mxu0 0.0
      %1089 = vmatpush.xpose.msra.mxu0 0.0
      %1090 = vmatpush.xpose.msra.mxu0 0.0
      %1091 = vmatpush.xpose.msra.mxu0 0.0
      %1092 = vmatpush.xpose.msra.mxu0 0.0
      %1093 = vmatpush.xpose.msra.mxu0 0.0
      %1094 = vmatpush.xpose.msra.mxu0 0.0
      %1095 = vmatpush.xpose.msra.mxu0 0.0
      %1096 = vmatpush.xpose.msra.mxu0 0.0
      %1097 = vmatpush.xpose.msra.mxu0 0.0
      %1098 = vmatpush.xpose.msra.mxu0 0.0
      %1099 = vmatpush.xpose.msra.mxu0 0.0
      %1100 = vmatpush.xpose.msra.mxu0 0.0
      %1101 = vmatpush.xpose.msra.mxu0 0.0
      %1102 = vmatpush.xpose.msra.mxu0 0.0
      %1103 = vmatpush.xpose.msra.mxu0 %v1086
      %1104 = vmatmul.f32.gmra.mxu0 %v1084
      %v1105 = vpop.f32.mrf.mxu0
      %v1106 = vadd.f32 0.0, %v1105
      %1107 = vdwg.mxu0
      %1108 = vrot.lane.b32.xlu0 %v965, 108
      %v1109 = vpop.permute.xlu0 %1108
      %1110 = vrot.lane.b32.xlu0 %v965, 76
      %v1111 = vpop.permute.xlu0 %1110
      %v1112 = vsel %vm971, %v1109, 0
      %v1114 = vsel %vm971, %v1111, 0
      %1116 = vmatpush.xpose.msra.mxu0 0.0
      %1117 = vmatpush.xpose.msra.mxu0 0.0
      %1118 = vmatpush.xpose.msra.mxu0 0.0
      %1119 = vmatpush.xpose.msra.mxu0 0.0
      %1120 = vmatpush.xpose.msra.mxu0 0.0
      %1121 = vmatpush.xpose.msra.mxu0 0.0
      %1122 = vmatpush.xpose.msra.mxu0 0.0
      %1123 = vmatpush.xpose.msra.mxu0 0.0
      %1124 = vmatpush.xpose.msra.mxu0 0.0
      %1125 = vmatpush.xpose.msra.mxu0 0.0
      %1126 = vmatpush.xpose.msra.mxu0 0.0
      %1127 = vmatpush.xpose.msra.mxu0 0.0
      %1128 = vmatpush.xpose.msra.mxu0 0.0
      %1129 = vmatpush.xpose.msra.mxu0 0.0
      %1130 = vmatpush.xpose.msra.mxu0 0.0
      %1131 = vmatpush.xpose.msra.mxu0 %v1114
      %1132 = vmatmul.f32.gmra.mxu0 %v1112
      %v1133 = vpop.f32.mrf.mxu0
      %v1134 = vadd.f32 0.0, %v1133
      %1135 = vdwg.mxu0
      %1136 = vrot.lane.b32.xlu0 %v965, 104
      %v1137 = vpop.permute.xlu0 %1136
      %1138 = vrot.lane.b32.xlu0 %v965, 72
      %v1139 = vpop.permute.xlu0 %1138
      %v1140 = vsel %vm971, %v1137, 0
      %v1142 = vsel %vm971, %v1139, 0
      %1144 = vmatpush.xpose.msra.mxu0 0.0
      %1145 = vmatpush.xpose.msra.mxu0 0.0
      %1146 = vmatpush.xpose.msra.mxu0 0.0
      %1147 = vmatpush.xpose.msra.mxu0 0.0
      %1148 = vmatpush.xpose.msra.mxu0 0.0
      %1149 = vmatpush.xpose.msra.mxu0 0.0
      %1150 = vmatpush.xpose.msra.mxu0 0.0
      %1151 = vmatpush.xpose.msra.mxu0 0.0
      %1152 = vmatpush.xpose.msra.mxu0 0.0
      %1153 = vmatpush.xpose.msra.mxu0 0.0
      %1154 = vmatpush.xpose.msra.mxu0 0.0
      %1155 = vmatpush.xpose.msra.mxu0 0.0
      %1156 = vmatpush.xpose.msra.mxu0 0.0
      %1157 = vmatpush.xpose.msra.mxu0 0.0
      %1158 = vmatpush.xpose.msra.mxu0 0.0
      %1159 = vmatpush.xpose.msra.mxu0 %v1142
      %1160 = vmatmul.f32.gmra.mxu0 %v1140
      %v1161 = vpop.f32.mrf.mxu0
      %v1162 = vadd.f32 0.0, %v1161
      %1163 = vdwg.mxu0
      %1164 = vrot.lane.b32.xlu0 %v965, 100
      %v1165 = vpop.permute.xlu0 %1164
      %1166 = vrot.lane.b32.xlu0 %v965, 68
      %v1167 = vpop.permute.xlu0 %1166
      %v1168 = vsel %vm971, %v1165, 0
      %v1170 = vsel %vm971, %v1167, 0
      %1172 = vmatpush.xpose.msra.mxu0 0.0
      %1173 = vmatpush.xpose.msra.mxu0 0.0
      %1174 = vmatpush.xpose.msra.mxu0 0.0
      %1175 = vmatpush.xpose.msra.mxu0 0.0
      %1176 = vmatpush.xpose.msra.mxu0 0.0
      %1177 = vmatpush.xpose.msra.mxu0 0.0
      %1178 = vmatpush.xpose.msra.mxu0 0.0
      %1179 = vmatpush.xpose.msra.mxu0 0.0
      %1180 = vmatpush.xpose.msra.mxu0 0.0
      %1181 = vmatpush.xpose.msra.mxu0 0.0
      %1182 = vmatpush.xpose.msra.mxu0 0.0
      %1183 = vmatpush.xpose.msra.mxu0 0.0
      %1184 = vmatpush.xpose.msra.mxu0 0.0
      %1185 = vmatpush.xpose.msra.mxu0 0.0
      %1186 = vmatpush.xpose.msra.mxu0 0.0
      %1187 = vmatpush.xpose.msra.mxu0 %v1170
      %1188 = vmatmul.f32.gmra.mxu0 %v1168
      %v1189 = vpop.f32.mrf.mxu0
      %v1190 = vadd.f32 0.0, %v1189
      %1191 = vdwg.mxu0
      %vm1192 = vcmask 64512
      %v1193 = vsel %vm1192, %v994, -inf
      %1194 = vmax.xlane.f32.xlu0 %v1193
      %v1195 = vpop.xlane.xlu0 %1194
      %v1196 = vsel %vm1192, %v1022, -inf
      %1197 = vmax.xlane.f32.xlu0 %v1196
      %v1198 = vpop.xlane.xlu0 %1197
      %v1199 = vsel %vm1192, %v1050, -inf
      %1200 = vmax.xlane.f32.xlu0 %v1199
      %v1201 = vpop.xlane.xlu0 %1200
      %v1202 = vsel %vm1192, %v1078, -inf
      %1203 = vmax.xlane.f32.xlu0 %v1202
      %v1204 = vpop.xlane.xlu0 %1203
      %v1205 = vsel %vm1192, %v1106, -inf
      %1206 = vmax.xlane.f32.xlu0 %v1205
      %v1207 = vpop.xlane.xlu0 %1206
      %v1208 = vsel %vm1192, %v1134, -inf
      %1209 = vmax.xlane.f32.xlu0 %v1208
      %v1210 = vpop.xlane.xlu0 %1209
      %v1211 = vsel %vm1192, %v1162, -inf
      %1212 = vmax.xlane.f32.xlu0 %v1211
      %v1213 = vpop.xlane.xlu0 %1212
      %v1214 = vsel %vm1192, %v1190, -inf
      %1215 = vmax.xlane.f32.xlu0 %v1214
      %v1216 = vpop.xlane.xlu0 %1215
      %v1217 = vsub.f32 %v994, %v1195
      %v1218 = vsub.f32 %v1022, %v1198
      %v1219 = vsub.f32 %v1050, %v1201
      %v1220 = vsub.f32 %v1078, %v1204
      %v1221 = vsub.f32 %v1106, %v1207
      %v1222 = vsub.f32 %v1134, %v1210
      %v1223 = vsub.f32 %v1162, %v1213
      %v1224 = vsub.f32 %v1190, %v1216
      %v1225 = vmul.f32 %v1217, 1.442695
      %v1226 = vpow.pop %v1225
      %v1227 = vmul.f32 %v1218, 1.442695
      %v1228 = vpow.pop %v1227
      %v1229 = vmul.f32 %v1219, 1.442695
      %v1230 = vpow.pop %v1229
      %v1231 = vmul.f32 %v1220, 1.442695
      %v1232 = vpow.pop %v1231
      %v1233 = vmul.f32 %v1221, 1.442695
      %v1234 = vpow.pop %v1233
      %v1235 = vmul.f32 %v1222, 1.442695
      %v1236 = vpow.pop %v1235
      %v1237 = vmul.f32 %v1223, 1.442695
      %v1238 = vpow.pop %v1237
      %v1239 = vmul.f32 %v1224, 1.442695
      %v1240 = vpow.pop %v1239
      %v1241 = vsel %vm1192, %v1226, 0.0
      %1242 = vadd.xlane.f32.xlu0 %v1241
      %v1243 = vpop.xlane.xlu0 %1242
      %v1244 = vsel %vm1192, %v1228, 0.0
      %1245 = vadd.xlane.f32.xlu0 %v1244
      %v1246 = vpop.xlane.xlu0 %1245
      %v1247 = vsel %vm1192, %v1230, 0.0
      %1248 = vadd.xlane.f32.xlu0 %v1247
      %v1249 = vpop.xlane.xlu0 %1248
      %v1250 = vsel %vm1192, %v1232, 0.0
      %1251 = vadd.xlane.f32.xlu0 %v1250
      %v1252 = vpop.xlane.xlu0 %1251
      %v1253 = vsel %vm1192, %v1234, 0.0
      %1254 = vadd.xlane.f32.xlu0 %v1253
      %v1255 = vpop.xlane.xlu0 %1254
      %v1256 = vsel %vm1192, %v1236, 0.0
      %1257 = vadd.xlane.f32.xlu0 %v1256
      %v1258 = vpop.xlane.xlu0 %1257
      %v1259 = vsel %vm1192, %v1238, 0.0
      %1260 = vadd.xlane.f32.xlu0 %v1259
      %v1261 = vpop.xlane.xlu0 %1260
      %v1262 = vsel %vm1192, %v1240, 0.0
      %1263 = vadd.xlane.f32.xlu0 %v1262
      %v1264 = vpop.xlane.xlu0 %1263
      %v1265 = vrcp.pop %v1243
      %v1266 = vrcp.pop %v1246
      %v1267 = vrcp.pop %v1249
      %v1268 = vrcp.pop %v1252
      %v1269 = vrcp.pop %v1255
      %v1270 = vrcp.pop %v1258
      %v1271 = vrcp.pop %v1261
      %v1272 = vrcp.pop %v1264
      %v1273 = vmul.f32 %v1226, %v1265
      %v1274 = vmul.f32 %v1228, %v1266
      %v1275 = vmul.f32 %v1230, %v1267
      %v1276 = vmul.f32 %v1232, %v1268
      %v1277 = vmul.f32 %v1234, %v1269
      %v1278 = vmul.f32 %v1236, %v1270
      %v1279 = vmul.f32 %v1238, %v1271
      %v1280 = vmul.f32 %v1240, %v1272
      %1281 = vrot.lane.b32.xlu0 %v965, 64
      %v1282 = vpop.permute.xlu0 %1281
      %v1285 = vsel %vm1192, %v1273, 0
      %1287 = vmatpush.msra.mxu0 0.0
      %1288 = vmatpush.msra.mxu0 0.0
      %1289 = vmatpush.msra.mxu0 0.0
      %1290 = vmatpush.msra.mxu0 0.0
      %1291 = vmatpush.msra.mxu0 0.0
      %1292 = vmatpush.msra.mxu0 0.0
      %1293 = vmatpush.msra.mxu0 0.0
      %1294 = vmatpush.msra.mxu0 0.0
      %1295 = vmatpush.msra.mxu0 0.0
      %1296 = vmatpush.msra.mxu0 0.0
      %1297 = vmatpush.msra.mxu0 0.0
      %1298 = vmatpush.msra.mxu0 0.0
      %1299 = vmatpush.msra.mxu0 0.0
      %1300 = vmatpush.msra.mxu0 0.0
      %1301 = vmatpush.msra.mxu0 0.0
      %1302 = vmatpush.msra.mxu0 %v1282
      %1303 = vmatmul.f32.gmra.mxu0 %v1285
      %v1304 = vpop.f32.mrf.mxu0
      %v1305 = vadd.f32 0.0, %v1304
      %1306 = vdwg.mxu0
      %1307 = vrot.lane.b32.xlu0 %v965, 60
      %v1308 = vpop.permute.xlu0 %1307
      %v1311 = vsel %vm1192, %v1274, 0
      %1313 = vmatpush.msra.mxu0 0.0
      %1314 = vmatpush.msra.mxu0 0.0
      %1315 = vmatpush.msra.mxu0 0.0
      %1316 = vmatpush.msra.mxu0 0.0
      %1317 = vmatpush.msra.mxu0 0.0
      %1318 = vmatpush.msra.mxu0 0.0
      %1319 = vmatpush.msra.mxu0 0.0
      %1320 = vmatpush.msra.mxu0 0.0
      %1321 = vmatpush.msra.mxu0 0.0
      %1322 = vmatpush.msra.mxu0 0.0
      %1323 = vmatpush.msra.mxu0 0.0
      %1324 = vmatpush.msra.mxu0 0.0
      %1325 = vmatpush.msra.mxu0 0.0
      %1326 = vmatpush.msra.mxu0 0.0
      %1327 = vmatpush.msra.mxu0 0.0
      %1328 = vmatpush.msra.mxu0 %v1308
      %1329 = vmatmul.f32.gmra.mxu0 %v1311
      %v1330 = vpop.f32.mrf.mxu0
      %v1331 = vadd.f32 0.0, %v1330
      %1332 = vdwg.mxu0
      %1333 = vrot.lane.b32.xlu0 %v965, 56
      %v1334 = vpop.permute.xlu0 %1333
      %v1337 = vsel %vm1192, %v1275, 0
      %1339 = vmatpush.msra.mxu0 0.0
      %1340 = vmatpush.msra.mxu0 0.0
      %1341 = vmatpush.msra.mxu0 0.0
      %1342 = vmatpush.msra.mxu0 0.0
      %1343 = vmatpush.msra.mxu0 0.0
      %1344 = vmatpush.msra.mxu0 0.0
      %1345 = vmatpush.msra.mxu0 0.0
      %1346 = vmatpush.msra.mxu0 0.0
      %1347 = vmatpush.msra.mxu0 0.0
      %1348 = vmatpush.msra.mxu0 0.0
      %1349 = vmatpush.msra.mxu0 0.0
      %1350 = vmatpush.msra.mxu0 0.0
      %1351 = vmatpush.msra.mxu0 0.0
      %1352 = vmatpush.msra.mxu0 0.0
      %1353 = vmatpush.msra.mxu0 0.0
      %1354 = vmatpush.msra.mxu0 %v1334
      %1355 = vmatmul.f32.gmra.mxu0 %v1337
      %v1356 = vpop.f32.mrf.mxu0
      %v1357 = vadd.f32 0.0, %v1356
      %1358 = vdwg.mxu0
      %1359 = vrot.lane.b32.xlu0 %v965, 52
      %v1360 = vpop.permute.xlu0 %1359
      %v1363 = vsel %vm1192, %v1276, 0
      %1365 = vmatpush.msra.mxu0 0.0
      %1366 = vmatpush.msra.mxu0 0.0
      %1367 = vmatpush.msra.mxu0 0.0
      %1368 = vmatpush.msra.mxu0 0.0
      %1369 = vmatpush.msra.mxu0 0.0
      %1370 = vmatpush.msra.mxu0 0.0
      %1371 = vmatpush.msra.mxu0 0.0
      %1372 = vmatpush.msra.mxu0 0.0
      %1373 = vmatpush.msra.mxu0 0.0
      %1374 = vmatpush.msra.mxu0 0.0
      %1375 = vmatpush.msra.mxu0 0.0
      %1376 = vmatpush.msra.mxu0 0.0
      %1377 = vmatpush.msra.mxu0 0.0
      %1378 = vmatpush.msra.mxu0 0.0
      %1379 = vmatpush.msra.mxu0 0.0
      %1380 = vmatpush.msra.mxu0 %v1360
      %1381 = vmatmul.f32.gmra.mxu0 %v1363
      %v1382 = vpop.f32.mrf.mxu0
      %v1383 = vadd.f32 0.0, %v1382
      %1384 = vdwg.mxu0
      %1385 = vrot.lane.b32.xlu0 %v965, 48
      %v1386 = vpop.permute.xlu0 %1385
      %v1389 = vsel %vm1192, %v1277, 0
      %1391 = vmatpush.msra.mxu0 0.0
      %1392 = vmatpush.msra.mxu0 0.0
      %1393 = vmatpush.msra.mxu0 0.0
      %1394 = vmatpush.msra.mxu0 0.0
      %1395 = vmatpush.msra.mxu0 0.0
      %1396 = vmatpush.msra.mxu0 0.0
      %1397 = vmatpush.msra.mxu0 0.0
      %1398 = vmatpush.msra.mxu0 0.0
      %1399 = vmatpush.msra.mxu0 0.0
      %1400 = vmatpush.msra.mxu0 0.0
      %1401 = vmatpush.msra.mxu0 0.0
      %1402 = vmatpush.msra.mxu0 0.0
      %1403 = vmatpush.msra.mxu0 0.0
      %1404 = vmatpush.msra.mxu0 0.0
      %1405 = vmatpush.msra.mxu0 0.0
      %1406 = vmatpush.msra.mxu0 %v1386
      %1407 = vmatmul.f32.gmra.mxu0 %v1389
      %v1408 = vpop.f32.mrf.mxu0
      %v1409 = vadd.f32 0.0, %v1408
      %1410 = vdwg.mxu0
      %1411 = vrot.lane.b32.xlu0 %v965, 44
      %v1412 = vpop.permute.xlu0 %1411
      %v1415 = vsel %vm1192, %v1278, 0
      %1417 = vmatpush.msra.mxu0 0.0
      %1418 = vmatpush.msra.mxu0 0.0
      %1419 = vmatpush.msra.mxu0 0.0
      %1420 = vmatpush.msra.mxu0 0.0
      %1421 = vmatpush.msra.mxu0 0.0
      %1422 = vmatpush.msra.mxu0 0.0
      %1423 = vmatpush.msra.mxu0 0.0
      %1424 = vmatpush.msra.mxu0 0.0
      %1425 = vmatpush.msra.mxu0 0.0
      %1426 = vmatpush.msra.mxu0 0.0
      %1427 = vmatpush.msra.mxu0 0.0
      %1428 = vmatpush.msra.mxu0 0.0
      %1429 = vmatpush.msra.mxu0 0.0
      %1430 = vmatpush.msra.mxu0 0.0
      %1431 = vmatpush.msra.mxu0 0.0
      %1432 = vmatpush.msra.mxu0 %v1412
      %1433 = vmatmul.f32.gmra.mxu0 %v1415
      %v1434 = vpop.f32.mrf.mxu0
      %v1435 = vadd.f32 0.0, %v1434
      %1436 = vdwg.mxu0
      %1437 = vrot.lane.b32.xlu0 %v965, 40
      %v1438 = vpop.permute.xlu0 %1437
      %v1441 = vsel %vm1192, %v1279, 0
      %1443 = vmatpush.msra.mxu0 0.0
      %1444 = vmatpush.msra.mxu0 0.0
      %1445 = vmatpush.msra.mxu0 0.0
      %1446 = vmatpush.msra.mxu0 0.0
      %1447 = vmatpush.msra.mxu0 0.0
      %1448 = vmatpush.msra.mxu0 0.0
      %1449 = vmatpush.msra.mxu0 0.0
      %1450 = vmatpush.msra.mxu0 0.0
      %1451 = vmatpush.msra.mxu0 0.0
      %1452 = vmatpush.msra.mxu0 0.0
      %1453 = vmatpush.msra.mxu0 0.0
      %1454 = vmatpush.msra.mxu0 0.0
      %1455 = vmatpush.msra.mxu0 0.0
      %1456 = vmatpush.msra.mxu0 0.0
      %1457 = vmatpush.msra.mxu0 0.0
      %1458 = vmatpush.msra.mxu0 %v1438
      %1459 = vmatmul.f32.gmra.mxu0 %v1441
      %v1460 = vpop.f32.mrf.mxu0
      %v1461 = vadd.f32 0.0, %v1460
      %1462 = vdwg.mxu0
      %1463 = vrot.lane.b32.xlu0 %v965, 36
      %v1464 = vpop.permute.xlu0 %1463
      %v1467 = vsel %vm1192, %v1280, 0
      %1469 = vmatpush.msra.mxu0 0.0
      %1470 = vmatpush.msra.mxu0 0.0
      %1471 = vmatpush.msra.mxu0 0.0
      %1472 = vmatpush.msra.mxu0 0.0
      %1473 = vmatpush.msra.mxu0 0.0
      %1474 = vmatpush.msra.mxu0 0.0
      %1475 = vmatpush.msra.mxu0 0.0
      %1476 = vmatpush.msra.mxu0 0.0
      %1477 = vmatpush.msra.mxu0 0.0
      %1478 = vmatpush.msra.mxu0 0.0
      %1479 = vmatpush.msra.mxu0 0.0
      %1480 = vmatpush.msra.mxu0 0.0
      %1481 = vmatpush.msra.mxu0 0.0
      %1482 = vmatpush.msra.mxu0 0.0
      %1483 = vmatpush.msra.mxu0 0.0
      %1484 = vmatpush.msra.mxu0 %v1464
      %1485 = vmatmul.f32.gmra.mxu0 %v1467
      %v1486 = vpop.f32.mrf.mxu0
      %v1487 = vadd.f32 0.0, %v1486
      %1488 = vdwg.mxu0
      %1490 = vrot.lane.b32.xlu0 %v1331, 4
      %v1491 = vpop.permute.xlu0 %1490
      %1494 = vrot.lane.b32.xlu0 %v1357, 8
      %v1495 = vpop.permute.xlu0 %1494
      %1498 = vrot.lane.b32.xlu0 %v1383, 12
      %v1499 = vpop.permute.xlu0 %1498
      %1502 = vrot.lane.b32.xlu0 %v1409, 16
      %v1503 = vpop.permute.xlu0 %1502
      %1506 = vrot.lane.b32.xlu0 %v1435, 20
      %v1507 = vpop.permute.xlu0 %1506
      %1510 = vrot.lane.b32.xlu0 %v1461, 24
      %v1511 = vpop.permute.xlu0 %1510
      %1514 = vrot.lane.b32.xlu0 %v1487, 28
      %v1515 = vpop.permute.xlu0 %1514
      %v1517 = vsel %vm971, %v1305, %v1491
      %v1518 = vsel %vm1192, %v1517, %v1495
      %vm1519 = vcmask 97280
      %v1520 = vsel %vm1519, %v1518, %v1499
      %vm1521 = vcmask 130048
      %v1522 = vsel %vm1521, %v1520, %v1503
      %vm1523 = vcmask 162816
      %v1524 = vsel %vm1523, %v1522, %v1507
      %vm1525 = vcmask 195584
      %v1526 = vsel %vm1525, %v1524, %v1511
      %vm1527 = vcmask 228352
      %v1528 = vsel %vm1527, %v1526, %v1515
      %v1529 = vpack.c.bf16 %v1528, %v1528
      %v1530 = vld [vmem:[%s809] sm:$0xf]
      %v1531 = vld [vmem:[%s809 + $0x4] sm:$0xf]
      %v1532 = vld [vmem:[%s809 + $0x8] sm:$0xf]
      %v1533 = vld [vmem:[%s809 + $0xc] sm:$0xf]
      %v1534 = vld [vmem:[%s812] sm:$0x1]
      %v1536 = vperm.slane %v1534, 0
      %v1542 = vunpack.c.l.b16 %v1530
      %v1543 = vunpack.c.l.b16 %v1531
      %v1544 = vunpack.c.l.b16 %v1532
      %v1545 = vunpack.c.l.b16 %v1533
      %v1546 = vpack.c.b16 %v1543, %v1542
      %v1547 = vpack.c.b16 %v1545, %v1544
      %v1551 = vsel %vm951, %v1529, 0
      %1553 = vmatpush.bf16.msra.mxu0 0
      %1554 = vmatpush.bf16.msra.mxu0 0
      %1555 = vmatpush.bf16.msra.mxu0 0
      %1556 = vmatpush.bf16.msra.mxu0 0
      %1557 = vmatpush.bf16.msra.mxu0 0
      %1558 = vmatpush.bf16.msra.mxu0 0
      %1559 = vmatpush.bf16.msra.mxu0 %v1547
      %1560 = vmatpush.bf16.msra.mxu0 %v1546
      %1561 = vmatmul.bf16.gmra.mxu0 %v1551
      %v1562 = vpop.f32.mrf.mxu0
      %v1563 = vadd.f32 %v1536, %v1562
      %v1564 = vpop.f32.mrf.mxu0
      %1565 = vdwg.mxu0
      %v1566 = vadd.f32 %v929, %v1563
      %v1567 = vld [vmem:[%s832] sm:$0x1]
      %v1568 = vld [vmem:[%s835] sm:$0x1]
      %v1569 = vsel %vm951, %v1566, 0.0
      %1570 = vadd.xlane.f32.xlu0 %v1569
      %v1571 = vpop.xlane.xlu0 %1570
      %v1572 = vrcp.pop 32.0
      %v1573 = vmul.f32 32.0, %v1572
      %v1574 = vsub.f32 1.0, %v1573
      %v1575 = vmul.f32 %v1572, %v1574
      %v1576 = vadd.f32 %v1572, %v1575
      %vm1577 = vweird.f32 %v1572
      %v1578 = vsel %vm1577, %v1572, %v1576
      %v1579 = vmul.f32 %v1571, %v1578
      %v1580 = vsub.f32 %v1566, %v1579
      %v1581 = vmul.f32 %v1580, %v1580
      %v1582 = vsel %vm951, %v1581, 0.0
      %1583 = vadd.xlane.f32.xlu0 %v1582
      %v1584 = vpop.xlane.xlu0 %1583
      %v1585 = vmul.f32 %v1584, %v1578
      %v1586 = vadd.f32 %v1585, 1e-05
      %v1587 = vrsqrt.pop %v1586
      %v1588 = vmul.f32 %v1587, %v1586
      %v1589 = vmul.f32 %v1588, %v1587
      %v1590 = vmul.f32 0.5, %v1589
      %v1591 = vsub.f32 1.5, %v1590
      %v1592 = vmul.f32 %v1587, %v1591
      %vm1593 = vweird.f32 %v1586
      %vm1594 = vweird.f32 %v1587
      %vm1595 = vmor %vm1593, %vm1594
      %v1596 = vsel %vm1595, %v1587, %v1592
      %v1597 = vmul.f32 %v1580, %v1596
      %v1599 = vperm.slane %v1567, 0
      %v1601 = vmul.f32 %v1597, %v1599
      %v1603 = vperm.slane %v1568, 0
      %v1605 = vadd.f32 %v1601, %v1603
      %v1606 = vpack.c.bf16 %v1605, %v1605
      %v1607 = vld [vmem:[%s817] sm:$0xff]
      %v1608 = vld [vmem:[%s817 + $0x8] sm:$0xff]
      %v1609 = vld [vmem:[%s817 + $0x10] sm:$0xff]
      %v1610 = vld [vmem:[%s817 + $0x18] sm:$0xff]
      %v1611 = vld [vmem:[%s817 + $0x20] sm:$0xff]
      %v1612 = vld [vmem:[%s817 + $0x28] sm:$0xff]
      %v1613 = vld [vmem:[%s817 + $0x30] sm:$0xff]
      %v1614 = vld [vmem:[%s817 + $0x38] sm:$0xff]
      %v1615 = vld [vmem:[%s817 + $0x40] sm:$0xff]
      %v1616 = vld [vmem:[%s817 + $0x48] sm:$0xff]
      %v1617 = vld [vmem:[%s817 + $0x50] sm:$0xff]
      %v1618 = vld [vmem:[%s817 + $0x58] sm:$0xff]
      %v1619 = vld [vmem:[%s817 + $0x60] sm:$0xff]
      %v1620 = vld [vmem:[%s817 + $0x68] sm:$0xff]
      %v1621 = vld [vmem:[%s817 + $0x70] sm:$0xff]
      %v1622 = vld [vmem:[%s817 + $0x78] sm:$0xff]
      %v1623 = vld [vmem:[%s817 + $0x80] sm:$0xff]
      %v1624 = vld [vmem:[%s817 + $0x88] sm:$0xff]
      %v1625 = vld [vmem:[%s817 + $0x90] sm:$0xff]
      %v1626 = vld [vmem:[%s817 + $0x98] sm:$0xff]
      %v1627 = vld [vmem:[%s817 + $0xa0] sm:$0xff]
      %v1628 = vld [vmem:[%s817 + $0xa8] sm:$0xff]
      %v1629 = vld [vmem:[%s817 + $0xb0] sm:$0xff]
      %v1630 = vld [vmem:[%s817 + $0xb8] sm:$0xff]
      %v1631 = vld [vmem:[%s817 + $0xc0] sm:$0xff]
      %v1632 = vld [vmem:[%s817 + $0xc8] sm:$0xff]
      %v1633 = vld [vmem:[%s817 + $0xd0] sm:$0xff]
      %v1634 = vld [vmem:[%s817 + $0xd8] sm:$0xff]
      %v1635 = vld [vmem:[%s817 + $0xe0] sm:$0xff]
      %v1636 = vld [vmem:[%s817 + $0xe8] sm:$0xff]
      %v1637 = vld [vmem:[%s817 + $0xf0] sm:$0xff]
      %v1638 = vld [vmem:[%s817 + $0xf8] sm:$0xff]
      %v1639 = vld [vmem:[%s821] sm:$0xff]
      %v1640 = vld [vmem:[%s821 + $0x8] sm:$0xff]
      %v1643 = vperm.slane %v1639, 0
      %v1644 = vperm.slane %v1639, 1
      %v1645 = vperm.slane %v1639, 2
      %v1646 = vperm.slane %v1639, 3
      %v1647 = vperm.slane %v1639, 4
      %v1648 = vperm.slane %v1639, 5
      %v1649 = vperm.slane %v1639, 6
      %v1650 = vperm.slane %v1639, 7
      %v1651 = vperm.slane %v1640, 0
      %v1652 = vperm.slane %v1640, 1
      %v1653 = vperm.slane %v1640, 2
      %v1654 = vperm.slane %v1640, 3
      %v1655 = vperm.slane %v1640, 4
      %v1656 = vperm.slane %v1640, 5
      %v1657 = vperm.slane %v1640, 6
      %v1658 = vperm.slane %v1640, 7
      %v1707 = vunpack.c.l.b16 %v1607
      %v1708 = vunpack.c.h.b16 %v1607
      %v1709 = vunpack.c.l.b16 %v1608
      %v1710 = vunpack.c.h.b16 %v1608
      %v1711 = vunpack.c.l.b16 %v1609
      %v1712 = vunpack.c.h.b16 %v1609
      %v1713 = vunpack.c.l.b16 %v1610
      %v1714 = vunpack.c.h.b16 %v1610
      %v1715 = vunpack.c.l.b16 %v1611
      %v1716 = vunpack.c.h.b16 %v1611
      %v1717 = vunpack.c.l.b16 %v1612
      %v1718 = vunpack.c.h.b16 %v1612
      %v1719 = vunpack.c.l.b16 %v1613
      %v1720 = vunpack.c.h.b16 %v1613
      %v1721 = vunpack.c.l.b16 %v1614
      %v1722 = vunpack.c.h.b16 %v1614
      %v1723 = vunpack.c.l.b16 %v1615
      %v1724 = vunpack.c.h.b16 %v1615
      %v1725 = vunpack.c.l.b16 %v1616
      %v1726 = vunpack.c.h.b16 %v1616
      %v1727 = vunpack.c.l.b16 %v1617
      %v1728 = vunpack.c.h.b16 %v1617
      %v1729 = vunpack.c.l.b16 %v1618
      %v1730 = vunpack.c.h.b16 %v1618
      %v1731 = vunpack.c.l.b16 %v1619
      %v1732 = vunpack.c.h.b16 %v1619
      %v1733 = vunpack.c.l.b16 %v1620
      %v1734 = vunpack.c.h.b16 %v1620
      %v1735 = vunpack.c.l.b16 %v1621
      %v1736 = vunpack.c.h.b16 %v1621
      %v1737 = vunpack.c.l.b16 %v1622
      %v1738 = vunpack.c.h.b16 %v1622
      %v1739 = vunpack.c.l.b16 %v1623
      %v1740 = vunpack.c.h.b16 %v1623
      %v1741 = vunpack.c.l.b16 %v1624
      %v1742 = vunpack.c.h.b16 %v1624
      %v1743 = vunpack.c.l.b16 %v1625
      %v1744 = vunpack.c.h.b16 %v1625
      %v1745 = vunpack.c.l.b16 %v1626
      %v1746 = vunpack.c.h.b16 %v1626
      %v1747 = vunpack.c.l.b16 %v1627
      %v1748 = vunpack.c.h.b16 %v1627
      %v1749 = vunpack.c.l.b16 %v1628
      %v1750 = vunpack.c.h.b16 %v1628
      %v1751 = vunpack.c.l.b16 %v1629
      %v1752 = vunpack.c.h.b16 %v1629
      %v1753 = vunpack.c.l.b16 %v1630
      %v1754 = vunpack.c.h.b16 %v1630
      %v1755 = vunpack.c.l.b16 %v1631
      %v1756 = vunpack.c.h.b16 %v1631
      %v1757 = vunpack.c.l.b16 %v1632
      %v1758 = vunpack.c.h.b16 %v1632
      %v1759 = vunpack.c.l.b16 %v1633
      %v1760 = vunpack.c.h.b16 %v1633
      %v1761 = vunpack.c.l.b16 %v1634
      %v1762 = vunpack.c.h.b16 %v1634
      %v1763 = vunpack.c.l.b16 %v1635
      %v1764 = vunpack.c.h.b16 %v1635
      %v1765 = vunpack.c.l.b16 %v1636
      %v1766 = vunpack.c.h.b16 %v1636
      %v1767 = vunpack.c.l.b16 %v1637
      %v1768 = vunpack.c.h.b16 %v1637
      %v1769 = vunpack.c.l.b16 %v1638
      %v1770 = vunpack.c.h.b16 %v1638
      %v1771 = vpack.c.b16 %v1723, %v1707
      %v1772 = vpack.c.b16 %v1724, %v1708
      %v1773 = vpack.c.b16 %v1725, %v1709
      %v1774 = vpack.c.b16 %v1726, %v1710
      %v1775 = vpack.c.b16 %v1727, %v1711
      %v1776 = vpack.c.b16 %v1728, %v1712
      %v1777 = vpack.c.b16 %v1729, %v1713
      %v1778 = vpack.c.b16 %v1730, %v1714
      %v1779 = vpack.c.b16 %v1731, %v1715
      %v1780 = vpack.c.b16 %v1732, %v1716
      %v1781 = vpack.c.b16 %v1733, %v1717
      %v1782 = vpack.c.b16 %v1734, %v1718
      %v1783 = vpack.c.b16 %v1735, %v1719
      %v1784 = vpack.c.b16 %v1736, %v1720
      %v1785 = vpack.c.b16 %v1737, %v1721
      %v1786 = vpack.c.b16 %v1738, %v1722
      %v1787 = vpack.c.b16 %v1755, %v1739
      %v1788 = vpack.c.b16 %v1756, %v1740
      %v1789 = vpack.c.b16 %v1757, %v1741
      %v1790 = vpack.c.b16 %v1758, %v1742
      %v1791 = vpack.c.b16 %v1759, %v1743
      %v1792 = vpack.c.b16 %v1760, %v1744
      %v1793 = vpack.c.b16 %v1761, %v1745
      %v1794 = vpack.c.b16 %v1762, %v1746
      %v1795 = vpack.c.b16 %v1763, %v1747
      %v1796 = vpack.c.b16 %v1764, %v1748
      %v1797 = vpack.c.b16 %v1765, %v1749
      %v1798 = vpack.c.b16 %v1766, %v1750
      %v1799 = vpack.c.b16 %v1767, %v1751
      %v1800 = vpack.c.b16 %v1768, %v1752
      %v1801 = vpack.c.b16 %v1769, %v1753
      %v1802 = vpack.c.b16 %v1770, %v1754
      %v1836 = vsel %vm951, %v1606, 0
      %1838 = vmatpush.bf16.msra.mxu0 0
      %1839 = vmatpush.bf16.msra.mxu0 0
      %1840 = vmatpush.bf16.msra.mxu0 0
      %1841 = vmatpush.bf16.msra.mxu0 0
      %1842 = vmatpush.bf16.msra.mxu0 0
      %1843 = vmatpush.bf16.msra.mxu0 0
      %1844 = vmatpush.bf16.msra.mxu0 %v1787
      %1845 = vmatpush.bf16.msra.mxu0 %v1771
      %1846 = vmatmul.bf16.gmra.mxu0 %v1836
      %v1847 = vpop.f32.mrf.mxu0
      %v1848 = vadd.f32 %v1643, %v1847
      %v1849 = vpop.f32.mrf.mxu0
      %1850 = vdwg.mxu0
      %1851 = vmatpush.bf16.msra.mxu0 0
      %1852 = vmatpush.bf16.msra.mxu0 0
      %1853 = vmatpush.bf16.msra.mxu0 0
      %1854 = vmatpush.bf16.msra.mxu0 0
      %1855 = vmatpush.bf16.msra.mxu0 0
      %1856 = vmatpush.bf16.msra.mxu0 0
      %1857 = vmatpush.bf16.msra.mxu0 %v1788
      %1858 = vmatpush.bf16.msra.mxu0 %v1772
      %1859 = vmatmul.bf16.gmra.mxu0 %v1836
      %v1860 = vpop.f32.mrf.mxu0
      %v1861 = vadd.f32 %v1644, %v1860
      %v1862 = vpop.f32.mrf.mxu0
      %1863 = vdwg.mxu0
      %1864 = vmatpush.bf16.msra.mxu0 0
      %1865 = vmatpush.bf16.msra.mxu0 0
      %1866 = vmatpush.bf16.msra.mxu0 0
      %1867 = vmatpush.bf16.msra.mxu0 0
      %1868 = vmatpush.bf16.msra.mxu0 0
      %1869 = vmatpush.bf16.msra.mxu0 0
      %1870 = vmatpush.bf16.msra.mxu0 %v1789
      %1871 = vmatpush.bf16.msra.mxu0 %v1773
      %1872 = vmatmul.bf16.gmra.mxu0 %v1836
      %v1873 = vpop.f32.mrf.mxu0
      %v1874 = vadd.f32 %v1645, %v1873
      %v1875 = vpop.f32.mrf.mxu0
      %1876 = vdwg.mxu0
      %1877 = vmatpush.bf16.msra.mxu0 0
      %1878 = vmatpush.bf16.msra.mxu0 0
      %1879 = vmatpush.bf16.msra.mxu0 0
      %1880 = vmatpush.bf16.msra.mxu0 0
      %1881 = vmatpush.bf16.msra.mxu0 0
      %1882 = vmatpush.bf16.msra.mxu0 0
      %1883 = vmatpush.bf16.msra.mxu0 %v1790
      %1884 = vmatpush.bf16.msra.mxu0 %v1774
      %1885 = vmatmul.bf16.gmra.mxu0 %v1836
      %v1886 = vpop.f32.mrf.mxu0
      %v1887 = vadd.f32 %v1646, %v1886
      %v1888 = vpop.f32.mrf.mxu0
      %1889 = vdwg.mxu0
      %1890 = vmatpush.bf16.msra.mxu0 0
      %1891 = vmatpush.bf16.msra.mxu0 0
      %1892 = vmatpush.bf16.msra.mxu0 0
      %1893 = vmatpush.bf16.msra.mxu0 0
      %1894 = vmatpush.bf16.msra.mxu0 0
      %1895 = vmatpush.bf16.msra.mxu0 0
      %1896 = vmatpush.bf16.msra.mxu0 %v1791
      %1897 = vmatpush.bf16.msra.mxu0 %v1775
      %1898 = vmatmul.bf16.gmra.mxu0 %v1836
      %v1899 = vpop.f32.mrf.mxu0
      %v1900 = vadd.f32 %v1647, %v1899
      %v1901 = vpop.f32.mrf.mxu0
      %1902 = vdwg.mxu0
      %1903 = vmatpush.bf16.msra.mxu0 0
      %1904 = vmatpush.bf16.msra.mxu0 0
      %1905 = vmatpush.bf16.msra.mxu0 0
      %1906 = vmatpush.bf16.msra.mxu0 0
      %1907 = vmatpush.bf16.msra.mxu0 0
      %1908 = vmatpush.bf16.msra.mxu0 0
      %1909 = vmatpush.bf16.msra.mxu0 %v1792
      %1910 = vmatpush.bf16.msra.mxu0 %v1776
      %1911 = vmatmul.bf16.gmra.mxu0 %v1836
      %v1912 = vpop.f32.mrf.mxu0
      %v1913 = vadd.f32 %v1648, %v1912
      %v1914 = vpop.f32.mrf.mxu0
      %1915 = vdwg.mxu0
      %1916 = vmatpush.bf16.msra.mxu0 0
      %1917 = vmatpush.bf16.msra.mxu0 0
      %1918 = vmatpush.bf16.msra.mxu0 0
      %1919 = vmatpush.bf16.msra.mxu0 0
      %1920 = vmatpush.bf16.msra.mxu0 0
      %1921 = vmatpush.bf16.msra.mxu0 0
      %1922 = vmatpush.bf16.msra.mxu0 %v1793
      %1923 = vmatpush.bf16.msra.mxu0 %v1777
      %1924 = vmatmul.bf16.gmra.mxu0 %v1836
      %v1925 = vpop.f32.mrf.mxu0
      %v1926 = vadd.f32 %v1649, %v1925
      %v1927 = vpop.f32.mrf.mxu0
      %1928 = vdwg.mxu0
      %1929 = vmatpush.bf16.msra.mxu0 0
      %1930 = vmatpush.bf16.msra.mxu0 0
      %1931 = vmatpush.bf16.msra.mxu0 0
      %1932 = vmatpush.bf16.msra.mxu0 0
      %1933 = vmatpush.bf16.msra.mxu0 0
      %1934 = vmatpush.bf16.msra.mxu0 0
      %1935 = vmatpush.bf16.msra.mxu0 %v1794
      %1936 = vmatpush.bf16.msra.mxu0 %v1778
      %1937 = vmatmul.bf16.gmra.mxu0 %v1836
      %v1938 = vpop.f32.mrf.mxu0
      %v1939 = vadd.f32 %v1650, %v1938
      %v1940 = vpop.f32.mrf.mxu0
      %1941 = vdwg.mxu0
      %1942 = vmatpush.bf16.msra.mxu0 0
      %1943 = vmatpush.bf16.msra.mxu0 0
      %1944 = vmatpush.bf16.msra.mxu0 0
      %1945 = vmatpush.bf16.msra.mxu0 0
      %1946 = vmatpush.bf16.msra.mxu0 0
      %1947 = vmatpush.bf16.msra.mxu0 0
      %1948 = vmatpush.bf16.msra.mxu0 %v1795
      %1949 = vmatpush.bf16.msra.mxu0 %v1779
      %1950 = vmatmul.bf16.gmra.mxu0 %v1836
      %v1951 = vpop.f32.mrf.mxu0
      %v1952 = vadd.f32 %v1651, %v1951
      %v1953 = vpop.f32.mrf.mxu0
      %1954 = vdwg.mxu0
      %1955 = vmatpush.bf16.msra.mxu0 0
      %1956 = vmatpush.bf16.msra.mxu0 0
      %1957 = vmatpush.bf16.msra.mxu0 0
      %1958 = vmatpush.bf16.msra.mxu0 0
      %1959 = vmatpush.bf16.msra.mxu0 0
      %1960 = vmatpush.bf16.msra.mxu0 0
      %1961 = vmatpush.bf16.msra.mxu0 %v1796
      %1962 = vmatpush.bf16.msra.mxu0 %v1780
      %1963 = vmatmul.bf16.gmra.mxu0 %v1836
      %v1964 = vpop.f32.mrf.mxu0
      %v1965 = vadd.f32 %v1652, %v1964
      %v1966 = vpop.f32.mrf.mxu0
      %1967 = vdwg.mxu0
      %1968 = vmatpush.bf16.msra.mxu0 0
      %1969 = vmatpush.bf16.msra.mxu0 0
      %1970 = vmatpush.bf16.msra.mxu0 0
      %1971 = vmatpush.bf16.msra.mxu0 0
      %1972 = vmatpush.bf16.msra.mxu0 0
      %1973 = vmatpush.bf16.msra.mxu0 0
      %1974 = vmatpush.bf16.msra.mxu0 %v1797
      %1975 = vmatpush.bf16.msra.mxu0 %v1781
      %1976 = vmatmul.bf16.gmra.mxu0 %v1836
      %v1977 = vpop.f32.mrf.mxu0
      %v1978 = vadd.f32 %v1653, %v1977
      %v1979 = vpop.f32.mrf.mxu0
      %1980 = vdwg.mxu0
      %1981 = vmatpush.bf16.msra.mxu0 0
      %1982 = vmatpush.bf16.msra.mxu0 0
      %1983 = vmatpush.bf16.msra.mxu0 0
      %1984 = vmatpush.bf16.msra.mxu0 0
      %1985 = vmatpush.bf16.msra.mxu0 0
      %1986 = vmatpush.bf16.msra.mxu0 0
      %1987 = vmatpush.bf16.msra.mxu0 %v1798
      %1988 = vmatpush.bf16.msra.mxu0 %v1782
      %1989 = vmatmul.bf16.gmra.mxu0 %v1836
      %v1990 = vpop.f32.mrf.mxu0
      %v1991 = vadd.f32 %v1654, %v1990
      %v1992 = vpop.f32.mrf.mxu0
      %1993 = vdwg.mxu0
      %1994 = vmatpush.bf16.msra.mxu0 0
      %1995 = vmatpush.bf16.msra.mxu0 0
      %1996 = vmatpush.bf16.msra.mxu0 0
      %1997 = vmatpush.bf16.msra.mxu0 0
      %1998 = vmatpush.bf16.msra.mxu0 0
      %1999 = vmatpush.bf16.msra.mxu0 0
      %2000 = vmatpush.bf16.msra.mxu0 %v1799
      %2001 = vmatpush.bf16.msra.mxu0 %v1783
      %2002 = vmatmul.bf16.gmra.mxu0 %v1836
      %v2003 = vpop.f32.mrf.mxu0
      %v2004 = vadd.f32 %v1655, %v2003
      %v2005 = vpop.f32.mrf.mxu0
      %2006 = vdwg.mxu0
      %2007 = vmatpush.bf16.msra.mxu0 0
      %2008 = vmatpush.bf16.msra.mxu0 0
      %2009 = vmatpush.bf16.msra.mxu0 0
      %2010 = vmatpush.bf16.msra.mxu0 0
      %2011 = vmatpush.bf16.msra.mxu0 0
      %2012 = vmatpush.bf16.msra.mxu0 0
      %2013 = vmatpush.bf16.msra.mxu0 %v1800
      %2014 = vmatpush.bf16.msra.mxu0 %v1784
      %2015 = vmatmul.bf16.gmra.mxu0 %v1836
      %v2016 = vpop.f32.mrf.mxu0
      %v2017 = vadd.f32 %v1656, %v2016
      %v2018 = vpop.f32.mrf.mxu0
      %2019 = vdwg.mxu0
      %2020 = vmatpush.bf16.msra.mxu0 0
      %2021 = vmatpush.bf16.msra.mxu0 0
      %2022 = vmatpush.bf16.msra.mxu0 0
      %2023 = vmatpush.bf16.msra.mxu0 0
      %2024 = vmatpush.bf16.msra.mxu0 0
      %2025 = vmatpush.bf16.msra.mxu0 0
      %2026 = vmatpush.bf16.msra.mxu0 %v1801
      %2027 = vmatpush.bf16.msra.mxu0 %v1785
      %2028 = vmatmul.bf16.gmra.mxu0 %v1836
      %v2029 = vpop.f32.mrf.mxu0
      %v2030 = vadd.f32 %v1657, %v2029
      %v2031 = vpop.f32.mrf.mxu0
      %2032 = vdwg.mxu0
      %2033 = vmatpush.bf16.msra.mxu0 0
      %2034 = vmatpush.bf16.msra.mxu0 0
      %2035 = vmatpush.bf16.msra.mxu0 0
      %2036 = vmatpush.bf16.msra.mxu0 0
      %2037 = vmatpush.bf16.msra.mxu0 0
      %2038 = vmatpush.bf16.msra.mxu0 0
      %2039 = vmatpush.bf16.msra.mxu0 %v1802
      %2040 = vmatpush.bf16.msra.mxu0 %v1786
      %2041 = vmatmul.bf16.gmra.mxu0 %v1836
      %v2042 = vpop.f32.mrf.mxu0
      %v2043 = vadd.f32 %v1658, %v2042
      %v2044 = vpop.f32.mrf.mxu0
      %2045 = vdwg.mxu0
      %v2046 = vmax.f32 %v1848, 0.0
      %v2047 = vmax.f32 %v1861, 0.0
      %v2048 = vmax.f32 %v1874, 0.0
      %v2049 = vmax.f32 %v1887, 0.0
      %v2050 = vmax.f32 %v1900, 0.0
      %v2051 = vmax.f32 %v1913, 0.0
      %v2052 = vmax.f32 %v1926, 0.0
      %v2053 = vmax.f32 %v1939, 0.0
      %v2054 = vmax.f32 %v1952, 0.0
      %v2055 = vmax.f32 %v1965, 0.0
      %v2056 = vmax.f32 %v1978, 0.0
      %v2057 = vmax.f32 %v1991, 0.0
      %v2058 = vmax.f32 %v2004, 0.0
      %v2059 = vmax.f32 %v2017, 0.0
      %v2060 = vmax.f32 %v2030, 0.0
      %v2061 = vmax.f32 %v2043, 0.0
      %v2062 = vpack.c.bf16 %v2046, %v2046
      %v2063 = vpack.c.bf16 %v2047, %v2047
      %v2064 = vpack.c.bf16 %v2048, %v2048
      %v2065 = vpack.c.bf16 %v2049, %v2049
      %v2066 = vpack.c.bf16 %v2050, %v2050
      %v2067 = vpack.c.bf16 %v2051, %v2051
      %v2068 = vpack.c.bf16 %v2052, %v2052
      %v2069 = vpack.c.bf16 %v2053, %v2053
      %v2070 = vpack.c.bf16 %v2054, %v2054
      %v2071 = vpack.c.bf16 %v2055, %v2055
      %v2072 = vpack.c.bf16 %v2056, %v2056
      %v2073 = vpack.c.bf16 %v2057, %v2057
      %v2074 = vpack.c.bf16 %v2058, %v2058
      %v2075 = vpack.c.bf16 %v2059, %v2059
      %v2076 = vpack.c.bf16 %v2060, %v2060
      %v2077 = vpack.c.bf16 %v2061, %v2061
      %v2078 = vld [vmem:[%s826] sm:$0xf]
      %v2079 = vld [vmem:[%s826 + $0x4] sm:$0xf]
      %v2080 = vld [vmem:[%s826 + $0x8] sm:$0xf]
      %v2081 = vld [vmem:[%s826 + $0xc] sm:$0xf]
      %v2082 = vld [vmem:[%s826 + $0x10] sm:$0xf]
      %v2083 = vld [vmem:[%s826 + $0x14] sm:$0xf]
      %v2084 = vld [vmem:[%s826 + $0x18] sm:$0xf]
      %v2085 = vld [vmem:[%s826 + $0x1c] sm:$0xf]
      %v2086 = vld [vmem:[%s826 + $0x20] sm:$0xf]
      %v2087 = vld [vmem:[%s826 + $0x24] sm:$0xf]
      %v2088 = vld [vmem:[%s826 + $0x28] sm:$0xf]
      %v2089 = vld [vmem:[%s826 + $0x2c] sm:$0xf]
      %v2090 = vld [vmem:[%s826 + $0x30] sm:$0xf]
      %v2091 = vld [vmem:[%s826 + $0x34] sm:$0xf]
      %v2092 = vld [vmem:[%s826 + $0x38] sm:$0xf]
      %v2093 = vld [vmem:[%s826 + $0x3c] sm:$0xf]
      %v2094 = vld [vmem:[%s826 + $0x40] sm:$0xf]
      %v2095 = vld [vmem:[%s826 + $0x44] sm:$0xf]
      %v2096 = vld [vmem:[%s826 + $0x48] sm:$0xf]
      %v2097 = vld [vmem:[%s826 + $0x4c] sm:$0xf]
      %v2098 = vld [vmem:[%s826 + $0x50] sm:$0xf]
      %v2099 = vld [vmem:[%s826 + $0x54] sm:$0xf]
      %v2100 = vld [vmem:[%s826 + $0x58] sm:$0xf]
      %v2101 = vld [vmem:[%s826 + $0x5c] sm:$0xf]
      %v2102 = vld [vmem:[%s826 + $0x60] sm:$0xf]
      %v2103 = vld [vmem:[%s826 + $0x64] sm:$0xf]
      %v2104 = vld [vmem:[%s826 + $0x68] sm:$0xf]
      %v2105 = vld [vmem:[%s826 + $0x6c] sm:$0xf]
      %v2106 = vld [vmem:[%s826 + $0x70] sm:$0xf]
      %v2107 = vld [vmem:[%s826 + $0x74] sm:$0xf]
      %v2108 = vld [vmem:[%s826 + $0x78] sm:$0xf]
      %v2109 = vld [vmem:[%s826 + $0x7c] sm:$0xf]
      %v2110 = vld [vmem:[%s826 + $0x80] sm:$0xf]
      %v2111 = vld [vmem:[%s826 + $0x84] sm:$0xf]
      %v2112 = vld [vmem:[%s826 + $0x88] sm:$0xf]
      %v2113 = vld [vmem:[%s826 + $0x8c] sm:$0xf]
      %v2114 = vld [vmem:[%s826 + $0x90] sm:$0xf]
      %v2115 = vld [vmem:[%s826 + $0x94] sm:$0xf]
      %v2116 = vld [vmem:[%s826 + $0x98] sm:$0xf]
      %v2117 = vld [vmem:[%s826 + $0x9c] sm:$0xf]
      %v2118 = vld [vmem:[%s826 + $0xa0] sm:$0xf]
      %v2119 = vld [vmem:[%s826 + $0xa4] sm:$0xf]
      %v2120 = vld [vmem:[%s826 + $0xa8] sm:$0xf]
      %v2121 = vld [vmem:[%s826 + $0xac] sm:$0xf]
      %v2122 = vld [vmem:[%s826 + $0xb0] sm:$0xf]
      %v2123 = vld [vmem:[%s826 + $0xb4] sm:$0xf]
      %v2124 = vld [vmem:[%s826 + $0xb8] sm:$0xf]
      %v2125 = vld [vmem:[%s826 + $0xbc] sm:$0xf]
      %v2126 = vld [vmem:[%s826 + $0xc0] sm:$0xf]
      %v2127 = vld [vmem:[%s826 + $0xc4] sm:$0xf]
      %v2128 = vld [vmem:[%s826 + $0xc8] sm:$0xf]
      %v2129 = vld [vmem:[%s826 + $0xcc] sm:$0xf]
      %v2130 = vld [vmem:[%s826 + $0xd0] sm:$0xf]
      %v2131 = vld [vmem:[%s826 + $0xd4] sm:$0xf]
      %v2132 = vld [vmem:[%s826 + $0xd8] sm:$0xf]
      %v2133 = vld [vmem:[%s826 + $0xdc] sm:$0xf]
      %v2134 = vld [vmem:[%s826 + $0xe0] sm:$0xf]
      %v2135 = vld [vmem:[%s826 + $0xe4] sm:$0xf]
      %v2136 = vld [vmem:[%s826 + $0xe8] sm:$0xf]
      %v2137 = vld [vmem:[%s826 + $0xec] sm:$0xf]
      %v2138 = vld [vmem:[%s826 + $0xf0] sm:$0xf]
      %v2139 = vld [vmem:[%s826 + $0xf4] sm:$0xf]
      %v2140 = vld [vmem:[%s826 + $0xf8] sm:$0xf]
      %v2141 = vld [vmem:[%s826 + $0xfc] sm:$0xf]
      %v2142 = vld [vmem:[%s826 + $0x100] sm:$0xf]
      %v2143 = vld [vmem:[%s826 + $0x104] sm:$0xf]
      %v2144 = vld [vmem:[%s826 + $0x108] sm:$0xf]
      %v2145 = vld [vmem:[%s826 + $0x10c] sm:$0xf]
      %v2146 = vld [vmem:[%s826 + $0x110] sm:$0xf]
      %v2147 = vld [vmem:[%s826 + $0x114] sm:$0xf]
      %v2148 = vld [vmem:[%s826 + $0x118] sm:$0xf]
      %v2149 = vld [vmem:[%s826 + $0x11c] sm:$0xf]
      %v2150 = vld [vmem:[%s826 + $0x120] sm:$0xf]
      %v2151 = vld [vmem:[%s826 + $0x124] sm:$0xf]
      %v2152 = vld [vmem:[%s826 + $0x128] sm:$0xf]
      %v2153 = vld [vmem:[%s826 + $0x12c] sm:$0xf]
      %v2154 = vld [vmem:[%s826 + $0x130] sm:$0xf]
      %v2155 = vld [vmem:[%s826 + $0x134] sm:$0xf]
      %v2156 = vld [vmem:[%s826 + $0x138] sm:$0xf]
      %v2157 = vld [vmem:[%s826 + $0x13c] sm:$0xf]
      %v2158 = vld [vmem:[%s826 + $0x140] sm:$0xf]
      %v2159 = vld [vmem:[%s826 + $0x144] sm:$0xf]
      %v2160 = vld [vmem:[%s826 + $0x148] sm:$0xf]
      %v2161 = vld [vmem:[%s826 + $0x14c] sm:$0xf]
      %v2162 = vld [vmem:[%s826 + $0x150] sm:$0xf]
      %v2163 = vld [vmem:[%s826 + $0x154] sm:$0xf]
      %v2164 = vld [vmem:[%s826 + $0x158] sm:$0xf]
      %v2165 = vld [vmem:[%s826 + $0x15c] sm:$0xf]
      %v2166 = vld [vmem:[%s826 + $0x160] sm:$0xf]
      %v2167 = vld [vmem:[%s826 + $0x164] sm:$0xf]
      %v2168 = vld [vmem:[%s826 + $0x168] sm:$0xf]
      %v2169 = vld [vmem:[%s826 + $0x16c] sm:$0xf]
      %v2170 = vld [vmem:[%s826 + $0x170] sm:$0xf]
      %v2171 = vld [vmem:[%s826 + $0x174] sm:$0xf]
      %v2172 = vld [vmem:[%s826 + $0x178] sm:$0xf]
      %v2173 = vld [vmem:[%s826 + $0x17c] sm:$0xf]
      %v2174 = vld [vmem:[%s826 + $0x180] sm:$0xf]
      %v2175 = vld [vmem:[%s826 + $0x184] sm:$0xf]
      %v2176 = vld [vmem:[%s826 + $0x188] sm:$0xf]
      %v2177 = vld [vmem:[%s826 + $0x18c] sm:$0xf]
      %v2178 = vld [vmem:[%s826 + $0x190] sm:$0xf]
      %v2179 = vld [vmem:[%s826 + $0x194] sm:$0xf]
      %v2180 = vld [vmem:[%s826 + $0x198] sm:$0xf]
      %v2181 = vld [vmem:[%s826 + $0x19c] sm:$0xf]
      %v2182 = vld [vmem:[%s826 + $0x1a0] sm:$0xf]
      %v2183 = vld [vmem:[%s826 + $0x1a4] sm:$0xf]
      %v2184 = vld [vmem:[%s826 + $0x1a8] sm:$0xf]
      %v2185 = vld [vmem:[%s826 + $0x1ac] sm:$0xf]
      %v2186 = vld [vmem:[%s826 + $0x1b0] sm:$0xf]
      %v2187 = vld [vmem:[%s826 + $0x1b4] sm:$0xf]
      %v2188 = vld [vmem:[%s826 + $0x1b8] sm:$0xf]
      %v2189 = vld [vmem:[%s826 + $0x1bc] sm:$0xf]
      %v2190 = vld [vmem:[%s826 + $0x1c0] sm:$0xf]
      %v2191 = vld [vmem:[%s826 + $0x1c4] sm:$0xf]
      %v2192 = vld [vmem:[%s826 + $0x1c8] sm:$0xf]
      %v2193 = vld [vmem:[%s826 + $0x1cc] sm:$0xf]
      %v2194 = vld [vmem:[%s826 + $0x1d0] sm:$0xf]
      %v2195 = vld [vmem:[%s826 + $0x1d4] sm:$0xf]
      %v2196 = vld [vmem:[%s826 + $0x1d8] sm:$0xf]
      %v2197 = vld [vmem:[%s826 + $0x1dc] sm:$0xf]
      %v2198 = vld [vmem:[%s826 + $0x1e0] sm:$0xf]
      %v2199 = vld [vmem:[%s826 + $0x1e4] sm:$0xf]
      %v2200 = vld [vmem:[%s826 + $0x1e8] sm:$0xf]
      %v2201 = vld [vmem:[%s826 + $0x1ec] sm:$0xf]
      %v2202 = vld [vmem:[%s826 + $0x1f0] sm:$0xf]
      %v2203 = vld [vmem:[%s826 + $0x1f4] sm:$0xf]
      %v2204 = vld [vmem:[%s826 + $0x1f8] sm:$0xf]
      %v2205 = vld [vmem:[%s826 + $0x1fc] sm:$0xf]
      %v2206 = vld [vmem:[%s826 + $0x200] sm:$0xf]
      %v2207 = vld [vmem:[%s826 + $0x204] sm:$0xf]
      %v2208 = vld [vmem:[%s826 + $0x208] sm:$0xf]
      %v2209 = vld [vmem:[%s826 + $0x20c] sm:$0xf]
      %v2210 = vld [vmem:[%s826 + $0x210] sm:$0xf]
      %v2211 = vld [vmem:[%s826 + $0x214] sm:$0xf]
      %v2212 = vld [vmem:[%s826 + $0x218] sm:$0xf]
      %v2213 = vld [vmem:[%s826 + $0x21c] sm:$0xf]
      %v2214 = vld [vmem:[%s826 + $0x220] sm:$0xf]
      %v2215 = vld [vmem:[%s826 + $0x224] sm:$0xf]
      %v2216 = vld [vmem:[%s826 + $0x228] sm:$0xf]
      %v2217 = vld [vmem:[%s826 + $0x22c] sm:$0xf]
      %v2218 = vld [vmem:[%s826 + $0x230] sm:$0xf]
      %v2219 = vld [vmem:[%s826 + $0x234] sm:$0xf]
      %v2220 = vld [vmem:[%s826 + $0x238] sm:$0xf]
      %v2221 = vld [vmem:[%s826 + $0x23c] sm:$0xf]
      %v2222 = vld [vmem:[%s826 + $0x240] sm:$0xf]
      %v2223 = vld [vmem:[%s826 + $0x244] sm:$0xf]
      %v2224 = vld [vmem:[%s826 + $0x248] sm:$0xf]
      %v2225 = vld [vmem:[%s826 + $0x24c] sm:$0xf]
      %v2226 = vld [vmem:[%s826 + $0x250] sm:$0xf]
      %v2227 = vld [vmem:[%s826 + $0x254] sm:$0xf]
      %v2228 = vld [vmem:[%s826 + $0x258] sm:$0xf]
      %v2229 = vld [vmem:[%s826 + $0x25c] sm:$0xf]
      %v2230 = vld [vmem:[%s826 + $0x260] sm:$0xf]
      %v2231 = vld [vmem:[%s826 + $0x264] sm:$0xf]
      %v2232 = vld [vmem:[%s826 + $0x268] sm:$0xf]
      %v2233 = vld [vmem:[%s826 + $0x26c] sm:$0xf]
      %v2234 = vld [vmem:[%s826 + $0x270] sm:$0xf]
      %v2235 = vld [vmem:[%s826 + $0x274] sm:$0xf]
      %v2236 = vld [vmem:[%s826 + $0x278] sm:$0xf]
      %v2237 = vld [vmem:[%s826 + $0x27c] sm:$0xf]
      %v2238 = vld [vmem:[%s826 + $0x280] sm:$0xf]
      %v2239 = vld [vmem:[%s826 + $0x284] sm:$0xf]
      %v2240 = vld [vmem:[%s826 + $0x288] sm:$0xf]
      %v2241 = vld [vmem:[%s826 + $0x28c] sm:$0xf]
      %v2242 = vld [vmem:[%s826 + $0x290] sm:$0xf]
      %v2243 = vld [vmem:[%s826 + $0x294] sm:$0xf]
      %v2244 = vld [vmem:[%s826 + $0x298] sm:$0xf]
      %v2245 = vld [vmem:[%s826 + $0x29c] sm:$0xf]
      %v2246 = vld [vmem:[%s826 + $0x2a0] sm:$0xf]
      %v2247 = vld [vmem:[%s826 + $0x2a4] sm:$0xf]
      %v2248 = vld [vmem:[%s826 + $0x2a8] sm:$0xf]
      %v2249 = vld [vmem:[%s826 + $0x2ac] sm:$0xf]
      %v2250 = vld [vmem:[%s826 + $0x2b0] sm:$0xf]
      %v2251 = vld [vmem:[%s826 + $0x2b4] sm:$0xf]
      %v2252 = vld [vmem:[%s826 + $0x2b8] sm:$0xf]
      %v2253 = vld [vmem:[%s826 + $0x2bc] sm:$0xf]
      %v2254 = vld [vmem:[%s826 + $0x2c0] sm:$0xf]
      %v2255 = vld [vmem:[%s826 + $0x2c4] sm:$0xf]
      %v2256 = vld [vmem:[%s826 + $0x2c8] sm:$0xf]
      %v2257 = vld [vmem:[%s826 + $0x2cc] sm:$0xf]
      %v2258 = vld [vmem:[%s826 + $0x2d0] sm:$0xf]
      %v2259 = vld [vmem:[%s826 + $0x2d4] sm:$0xf]
      %v2260 = vld [vmem:[%s826 + $0x2d8] sm:$0xf]
      %v2261 = vld [vmem:[%s826 + $0x2dc] sm:$0xf]
      %v2262 = vld [vmem:[%s826 + $0x2e0] sm:$0xf]
      %v2263 = vld [vmem:[%s826 + $0x2e4] sm:$0xf]
      %v2264 = vld [vmem:[%s826 + $0x2e8] sm:$0xf]
      %v2265 = vld [vmem:[%s826 + $0x2ec] sm:$0xf]
      %v2266 = vld [vmem:[%s826 + $0x2f0] sm:$0xf]
      %v2267 = vld [vmem:[%s826 + $0x2f4] sm:$0xf]
      %v2268 = vld [vmem:[%s826 + $0x2f8] sm:$0xf]
      %v2269 = vld [vmem:[%s826 + $0x2fc] sm:$0xf]
      %v2270 = vld [vmem:[%s826 + $0x300] sm:$0xf]
      %v2271 = vld [vmem:[%s826 + $0x304] sm:$0xf]
      %v2272 = vld [vmem:[%s826 + $0x308] sm:$0xf]
      %v2273 = vld [vmem:[%s826 + $0x30c] sm:$0xf]
      %v2274 = vld [vmem:[%s826 + $0x310] sm:$0xf]
      %v2275 = vld [vmem:[%s826 + $0x314] sm:$0xf]
      %v2276 = vld [vmem:[%s826 + $0x318] sm:$0xf]
      %v2277 = vld [vmem:[%s826 + $0x31c] sm:$0xf]
      %v2278 = vld [vmem:[%s826 + $0x320] sm:$0xf]
      %v2279 = vld [vmem:[%s826 + $0x324] sm:$0xf]
      %v2280 = vld [vmem:[%s826 + $0x328] sm:$0xf]
      %v2281 = vld [vmem:[%s826 + $0x32c] sm:$0xf]
      %v2282 = vld [vmem:[%s826 + $0x330] sm:$0xf]
      %v2283 = vld [vmem:[%s826 + $0x334] sm:$0xf]
      %v2284 = vld [vmem:[%s826 + $0x338] sm:$0xf]
      %v2285 = vld [vmem:[%s826 + $0x33c] sm:$0xf]
      %v2286 = vld [vmem:[%s826 + $0x340] sm:$0xf]
      %v2287 = vld [vmem:[%s826 + $0x344] sm:$0xf]
      %v2288 = vld [vmem:[%s826 + $0x348] sm:$0xf]
      %v2289 = vld [vmem:[%s826 + $0x34c] sm:$0xf]
      %v2290 = vld [vmem:[%s826 + $0x350] sm:$0xf]
      %v2291 = vld [vmem:[%s826 + $0x354] sm:$0xf]
      %v2292 = vld [vmem:[%s826 + $0x358] sm:$0xf]
      %v2293 = vld [vmem:[%s826 + $0x35c] sm:$0xf]
      %v2294 = vld [vmem:[%s826 + $0x360] sm:$0xf]
      %v2295 = vld [vmem:[%s826 + $0x364] sm:$0xf]
      %v2296 = vld [vmem:[%s826 + $0x368] sm:$0xf]
      %v2297 = vld [vmem:[%s826 + $0x36c] sm:$0xf]
      %v2298 = vld [vmem:[%s826 + $0x370] sm:$0xf]
      %v2299 = vld [vmem:[%s826 + $0x374] sm:$0xf]
      %v2300 = vld [vmem:[%s826 + $0x378] sm:$0xf]
      %v2301 = vld [vmem:[%s826 + $0x37c] sm:$0xf]
      %v2302 = vld [vmem:[%s826 + $0x380] sm:$0xf]
      %v2303 = vld [vmem:[%s826 + $0x384] sm:$0xf]
      %v2304 = vld [vmem:[%s826 + $0x388] sm:$0xf]
      %v2305 = vld [vmem:[%s826 + $0x38c] sm:$0xf]
      %v2306 = vld [vmem:[%s826 + $0x390] sm:$0xf]
      %v2307 = vld [vmem:[%s826 + $0x394] sm:$0xf]
      %v2308 = vld [vmem:[%s826 + $0x398] sm:$0xf]
      %v2309 = vld [vmem:[%s826 + $0x39c] sm:$0xf]
      %v2310 = vld [vmem:[%s826 + $0x3a0] sm:$0xf]
      %v2311 = vld [vmem:[%s826 + $0x3a4] sm:$0xf]
      %v2312 = vld [vmem:[%s826 + $0x3a8] sm:$0xf]
      %v2313 = vld [vmem:[%s826 + $0x3ac] sm:$0xf]
      %v2314 = vld [vmem:[%s826 + $0x3b0] sm:$0xf]
      %v2315 = vld [vmem:[%s826 + $0x3b4] sm:$0xf]
      %v2316 = vld [vmem:[%s826 + $0x3b8] sm:$0xf]
      %v2317 = vld [vmem:[%s826 + $0x3bc] sm:$0xf]
      %v2318 = vld [vmem:[%s826 + $0x3c0] sm:$0xf]
      %v2319 = vld [vmem:[%s826 + $0x3c4] sm:$0xf]
      %v2320 = vld [vmem:[%s826 + $0x3c8] sm:$0xf]
      %v2321 = vld [vmem:[%s826 + $0x3cc] sm:$0xf]
      %v2322 = vld [vmem:[%s826 + $0x3d0] sm:$0xf]
      %v2323 = vld [vmem:[%s826 + $0x3d4] sm:$0xf]
      %v2324 = vld [vmem:[%s826 + $0x3d8] sm:$0xf]
      %v2325 = vld [vmem:[%s826 + $0x3dc] sm:$0xf]
      %v2326 = vld [vmem:[%s826 + $0x3e0] sm:$0xf]
      %v2327 = vld [vmem:[%s826 + $0x3e4] sm:$0xf]
      %v2328 = vld [vmem:[%s826 + $0x3e8] sm:$0xf]
      %v2329 = vld [vmem:[%s826 + $0x3ec] sm:$0xf]
      %v2330 = vld [vmem:[%s826 + $0x3f0] sm:$0xf]
      %v2331 = vld [vmem:[%s826 + $0x3f4] sm:$0xf]
      %v2332 = vld [vmem:[%s826 + $0x3f8] sm:$0xf]
      %v2333 = vld [vmem:[%s826 + $0x3fc] sm:$0xf]
      %v2334 = vld [vmem:[%s829] sm:$0x1]
      %v2336 = vperm.slane %v2334, 0
      %v2594 = vunpack.c.l.b16 %v2078
      %v2595 = vunpack.c.l.b16 %v2079
      %v2596 = vunpack.c.l.b16 %v2080
      %v2597 = vunpack.c.l.b16 %v2081
      %v2598 = vunpack.c.l.b16 %v2082
      %v2599 = vunpack.c.l.b16 %v2083
      %v2600 = vunpack.c.l.b16 %v2084
      %v2601 = vunpack.c.l.b16 %v2085
      %v2602 = vunpack.c.l.b16 %v2086
      %v2603 = vunpack.c.l.b16 %v2087
      %v2604 = vunpack.c.l.b16 %v2088
      %v2605 = vunpack.c.l.b16 %v2089
      %v2606 = vunpack.c.l.b16 %v2090
      %v2607 = vunpack.c.l.b16 %v2091
      %v2608 = vunpack.c.l.b16 %v2092
      %v2609 = vunpack.c.l.b16 %v2093
      %v2610 = vunpack.c.l.b16 %v2094
      %v2611 = vunpack.c.l.b16 %v2095
      %v2612 = vunpack.c.l.b16 %v2096
      %v2613 = vunpack.c.l.b16 %v2097
      %v2614 = vunpack.c.l.b16 %v2098
      %v2615 = vunpack.c.l.b16 %v2099
      %v2616 = vunpack.c.l.b16 %v2100
      %v2617 = vunpack.c.l.b16 %v2101
      %v2618 = vunpack.c.l.b16 %v2102
      %v2619 = vunpack.c.l.b16 %v2103
      %v2620 = vunpack.c.l.b16 %v2104
      %v2621 = vunpack.c.l.b16 %v2105
      %v2622 = vunpack.c.l.b16 %v2106
      %v2623 = vunpack.c.l.b16 %v2107
      %v2624 = vunpack.c.l.b16 %v2108
      %v2625 = vunpack.c.l.b16 %v2109
      %v2626 = vunpack.c.l.b16 %v2110
      %v2627 = vunpack.c.l.b16 %v2111
      %v2628 = vunpack.c.l.b16 %v2112
      %v2629 = vunpack.c.l.b16 %v2113
      %v2630 = vunpack.c.l.b16 %v2114
      %v2631 = vunpack.c.l.b16 %v2115
      %v2632 = vunpack.c.l.b16 %v2116
      %v2633 = vunpack.c.l.b16 %v2117
      %v2634 = vunpack.c.l.b16 %v2118
      %v2635 = vunpack.c.l.b16 %v2119
      %v2636 = vunpack.c.l.b16 %v2120
      %v2637 = vunpack.c.l.b16 %v2121
      %v2638 = vunpack.c.l.b16 %v2122
      %v2639 = vunpack.c.l.b16 %v2123
      %v2640 = vunpack.c.l.b16 %v2124
      %v2641 = vunpack.c.l.b16 %v2125
      %v2642 = vunpack.c.l.b16 %v2126
      %v2643 = vunpack.c.l.b16 %v2127
      %v2644 = vunpack.c.l.b16 %v2128
      %v2645 = vunpack.c.l.b16 %v2129
      %v2646 = vunpack.c.l.b16 %v2130
      %v2647 = vunpack.c.l.b16 %v2131
      %v2648 = vunpack.c.l.b16 %v2132
      %v2649 = vunpack.c.l.b16 %v2133
      %v2650 = vunpack.c.l.b16 %v2134
      %v2651 = vunpack.c.l.b16 %v2135
      %v2652 = vunpack.c.l.b16 %v2136
      %v2653 = vunpack.c.l.b16 %v2137
      %v2654 = vunpack.c.l.b16 %v2138
      %v2655 = vunpack.c.l.b16 %v2139
      %v2656 = vunpack.c.l.b16 %v2140
      %v2657 = vunpack.c.l.b16 %v2141
      %v2658 = vunpack.c.l.b16 %v2142
      %v2659 = vunpack.c.l.b16 %v2143
      %v2660 = vunpack.c.l.b16 %v2144
      %v2661 = vunpack.c.l.b16 %v2145
      %v2662 = vunpack.c.l.b16 %v2146
      %v2663 = vunpack.c.l.b16 %v2147
      %v2664 = vunpack.c.l.b16 %v2148
      %v2665 = vunpack.c.l.b16 %v2149
      %v2666 = vunpack.c.l.b16 %v2150
      %v2667 = vunpack.c.l.b16 %v2151
      %v2668 = vunpack.c.l.b16 %v2152
      %v2669 = vunpack.c.l.b16 %v2153
      %v2670 = vunpack.c.l.b16 %v2154
      %v2671 = vunpack.c.l.b16 %v2155
      %v2672 = vunpack.c.l.b16 %v2156
      %v2673 = vunpack.c.l.b16 %v2157
      %v2674 = vunpack.c.l.b16 %v2158
      %v2675 = vunpack.c.l.b16 %v2159
      %v2676 = vunpack.c.l.b16 %v2160
      %v2677 = vunpack.c.l.b16 %v2161
      %v2678 = vunpack.c.l.b16 %v2162
      %v2679 = vunpack.c.l.b16 %v2163
      %v2680 = vunpack.c.l.b16 %v2164
      %v2681 = vunpack.c.l.b16 %v2165
      %v2682 = vunpack.c.l.b16 %v2166
      %v2683 = vunpack.c.l.b16 %v2167
      %v2684 = vunpack.c.l.b16 %v2168
      %v2685 = vunpack.c.l.b16 %v2169
      %v2686 = vunpack.c.l.b16 %v2170
      %v2687 = vunpack.c.l.b16 %v2171
      %v2688 = vunpack.c.l.b16 %v2172
      %v2689 = vunpack.c.l.b16 %v2173
      %v2690 = vunpack.c.l.b16 %v2174
      %v2691 = vunpack.c.l.b16 %v2175
      %v2692 = vunpack.c.l.b16 %v2176
      %v2693 = vunpack.c.l.b16 %v2177
      %v2694 = vunpack.c.l.b16 %v2178
      %v2695 = vunpack.c.l.b16 %v2179
      %v2696 = vunpack.c.l.b16 %v2180
      %v2697 = vunpack.c.l.b16 %v2181
      %v2698 = vunpack.c.l.b16 %v2182
      %v2699 = vunpack.c.l.b16 %v2183
      %v2700 = vunpack.c.l.b16 %v2184
      %v2701 = vunpack.c.l.b16 %v2185
      %v2702 = vunpack.c.l.b16 %v2186
      %v2703 = vunpack.c.l.b16 %v2187
      %v2704 = vunpack.c.l.b16 %v2188
      %v2705 = vunpack.c.l.b16 %v2189
      %v2706 = vunpack.c.l.b16 %v2190
      %v2707 = vunpack.c.l.b16 %v2191
      %v2708 = vunpack.c.l.b16 %v2192
      %v2709 = vunpack.c.l.b16 %v2193
      %v2710 = vunpack.c.l.b16 %v2194
      %v2711 = vunpack.c.l.b16 %v2195
      %v2712 = vunpack.c.l.b16 %v2196
      %v2713 = vunpack.c.l.b16 %v2197
      %v2714 = vunpack.c.l.b16 %v2198
      %v2715 = vunpack.c.l.b16 %v2199
      %v2716 = vunpack.c.l.b16 %v2200
      %v2717 = vunpack.c.l.b16 %v2201
      %v2718 = vunpack.c.l.b16 %v2202
      %v2719 = vunpack.c.l.b16 %v2203
      %v2720 = vunpack.c.l.b16 %v2204
      %v2721 = vunpack.c.l.b16 %v2205
      %v2722 = vunpack.c.l.b16 %v2206
      %v2723 = vunpack.c.l.b16 %v2207
      %v2724 = vunpack.c.l.b16 %v2208
      %v2725 = vunpack.c.l.b16 %v2209
      %v2726 = vunpack.c.l.b16 %v2210
      %v2727 = vunpack.c.l.b16 %v2211
      %v2728 = vunpack.c.l.b16 %v2212
      %v2729 = vunpack.c.l.b16 %v2213
      %v2730 = vunpack.c.l.b16 %v2214
      %v2731 = vunpack.c.l.b16 %v2215
      %v2732 = vunpack.c.l.b16 %v2216
      %v2733 = vunpack.c.l.b16 %v2217
      %v2734 = vunpack.c.l.b16 %v2218
      %v2735 = vunpack.c.l.b16 %v2219
      %v2736 = vunpack.c.l.b16 %v2220
      %v2737 = vunpack.c.l.b16 %v2221
      %v2738 = vunpack.c.l.b16 %v2222
      %v2739 = vunpack.c.l.b16 %v2223
      %v2740 = vunpack.c.l.b16 %v2224
      %v2741 = vunpack.c.l.b16 %v2225
      %v2742 = vunpack.c.l.b16 %v2226
      %v2743 = vunpack.c.l.b16 %v2227
      %v2744 = vunpack.c.l.b16 %v2228
      %v2745 = vunpack.c.l.b16 %v2229
      %v2746 = vunpack.c.l.b16 %v2230
      %v2747 = vunpack.c.l.b16 %v2231
      %v2748 = vunpack.c.l.b16 %v2232
      %v2749 = vunpack.c.l.b16 %v2233
      %v2750 = vunpack.c.l.b16 %v2234
      %v2751 = vunpack.c.l.b16 %v2235
      %v2752 = vunpack.c.l.b16 %v2236
      %v2753 = vunpack.c.l.b16 %v2237
      %v2754 = vunpack.c.l.b16 %v2238
      %v2755 = vunpack.c.l.b16 %v2239
      %v2756 = vunpack.c.l.b16 %v2240
      %v2757 = vunpack.c.l.b16 %v2241
      %v2758 = vunpack.c.l.b16 %v2242
      %v2759 = vunpack.c.l.b16 %v2243
      %v2760 = vunpack.c.l.b16 %v2244
      %v2761 = vunpack.c.l.b16 %v2245
      %v2762 = vunpack.c.l.b16 %v2246
      %v2763 = vunpack.c.l.b16 %v2247
      %v2764 = vunpack.c.l.b16 %v2248
      %v2765 = vunpack.c.l.b16 %v2249
      %v2766 = vunpack.c.l.b16 %v2250
      %v2767 = vunpack.c.l.b16 %v2251
      %v2768 = vunpack.c.l.b16 %v2252
      %v2769 = vunpack.c.l.b16 %v2253
      %v2770 = vunpack.c.l.b16 %v2254
      %v2771 = vunpack.c.l.b16 %v2255
      %v2772 = vunpack.c.l.b16 %v2256
      %v2773 = vunpack.c.l.b16 %v2257
      %v2774 = vunpack.c.l.b16 %v2258
      %v2775 = vunpack.c.l.b16 %v2259
      %v2776 = vunpack.c.l.b16 %v2260
      %v2777 = vunpack.c.l.b16 %v2261
      %v2778 = vunpack.c.l.b16 %v2262
      %v2779 = vunpack.c.l.b16 %v2263
      %v2780 = vunpack.c.l.b16 %v2264
      %v2781 = vunpack.c.l.b16 %v2265
      %v2782 = vunpack.c.l.b16 %v2266
      %v2783 = vunpack.c.l.b16 %v2267
      %v2784 = vunpack.c.l.b16 %v2268
      %v2785 = vunpack.c.l.b16 %v2269
      %v2786 = vunpack.c.l.b16 %v2270
      %v2787 = vunpack.c.l.b16 %v2271
      %v2788 = vunpack.c.l.b16 %v2272
      %v2789 = vunpack.c.l.b16 %v2273
      %v2790 = vunpack.c.l.b16 %v2274
      %v2791 = vunpack.c.l.b16 %v2275
      %v2792 = vunpack.c.l.b16 %v2276
      %v2793 = vunpack.c.l.b16 %v2277
      %v2794 = vunpack.c.l.b16 %v2278
      %v2795 = vunpack.c.l.b16 %v2279
      %v2796 = vunpack.c.l.b16 %v2280
      %v2797 = vunpack.c.l.b16 %v2281
      %v2798 = vunpack.c.l.b16 %v2282
      %v2799 = vunpack.c.l.b16 %v2283
      %v2800 = vunpack.c.l.b16 %v2284
      %v2801 = vunpack.c.l.b16 %v2285
      %v2802 = vunpack.c.l.b16 %v2286
      %v2803 = vunpack.c.l.b16 %v2287
      %v2804 = vunpack.c.l.b16 %v2288
      %v2805 = vunpack.c.l.b16 %v2289
      %v2806 = vunpack.c.l.b16 %v2290
      %v2807 = vunpack.c.l.b16 %v2291
      %v2808 = vunpack.c.l.b16 %v2292
      %v2809 = vunpack.c.l.b16 %v2293
      %v2810 = vunpack.c.l.b16 %v2294
      %v2811 = vunpack.c.l.b16 %v2295
      %v2812 = vunpack.c.l.b16 %v2296
      %v2813 = vunpack.c.l.b16 %v2297
      %v2814 = vunpack.c.l.b16 %v2298
      %v2815 = vunpack.c.l.b16 %v2299
      %v2816 = vunpack.c.l.b16 %v2300
      %v2817 = vunpack.c.l.b16 %v2301
      %v2818 = vunpack.c.l.b16 %v2302
      %v2819 = vunpack.c.l.b16 %v2303
      %v2820 = vunpack.c.l.b16 %v2304
      %v2821 = vunpack.c.l.b16 %v2305
      %v2822 = vunpack.c.l.b16 %v2306
      %v2823 = vunpack.c.l.b16 %v2307
      %v2824 = vunpack.c.l.b16 %v2308
      %v2825 = vunpack.c.l.b16 %v2309
      %v2826 = vunpack.c.l.b16 %v2310
      %v2827 = vunpack.c.l.b16 %v2311
      %v2828 = vunpack.c.l.b16 %v2312
      %v2829 = vunpack.c.l.b16 %v2313
      %v2830 = vunpack.c.l.b16 %v2314
      %v2831 = vunpack.c.l.b16 %v2315
      %v2832 = vunpack.c.l.b16 %v2316
      %v2833 = vunpack.c.l.b16 %v2317
      %v2834 = vunpack.c.l.b16 %v2318
      %v2835 = vunpack.c.l.b16 %v2319
      %v2836 = vunpack.c.l.b16 %v2320
      %v2837 = vunpack.c.l.b16 %v2321
      %v2838 = vunpack.c.l.b16 %v2322
      %v2839 = vunpack.c.l.b16 %v2323
      %v2840 = vunpack.c.l.b16 %v2324
      %v2841 = vunpack.c.l.b16 %v2325
      %v2842 = vunpack.c.l.b16 %v2326
      %v2843 = vunpack.c.l.b16 %v2327
      %v2844 = vunpack.c.l.b16 %v2328
      %v2845 = vunpack.c.l.b16 %v2329
      %v2846 = vunpack.c.l.b16 %v2330
      %v2847 = vunpack.c.l.b16 %v2331
      %v2848 = vunpack.c.l.b16 %v2332
      %v2849 = vunpack.c.l.b16 %v2333
      %v2850 = vpack.c.b16 %v2595, %v2594
      %v2851 = vpack.c.b16 %v2597, %v2596
      %v2852 = vpack.c.b16 %v2599, %v2598
      %v2853 = vpack.c.b16 %v2601, %v2600
      %v2854 = vpack.c.b16 %v2603, %v2602
      %v2855 = vpack.c.b16 %v2605, %v2604
      %v2856 = vpack.c.b16 %v2607, %v2606
      %v2857 = vpack.c.b16 %v2609, %v2608
      %v2858 = vpack.c.b16 %v2611, %v2610
      %v2859 = vpack.c.b16 %v2613, %v2612
      %v2860 = vpack.c.b16 %v2615, %v2614
      %v2861 = vpack.c.b16 %v2617, %v2616
      %v2862 = vpack.c.b16 %v2619, %v2618
      %v2863 = vpack.c.b16 %v2621, %v2620
      %v2864 = vpack.c.b16 %v2623, %v2622
      %v2865 = vpack.c.b16 %v2625, %v2624
      %v2866 = vpack.c.b16 %v2627, %v2626
      %v2867 = vpack.c.b16 %v2629, %v2628
      %v2868 = vpack.c.b16 %v2631, %v2630
      %v2869 = vpack.c.b16 %v2633, %v2632
      %v2870 = vpack.c.b16 %v2635, %v2634
      %v2871 = vpack.c.b16 %v2637, %v2636
      %v2872 = vpack.c.b16 %v2639, %v2638
      %v2873 = vpack.c.b16 %v2641, %v2640
      %v2874 = vpack.c.b16 %v2643, %v2642
      %v2875 = vpack.c.b16 %v2645, %v2644
      %v2876 = vpack.c.b16 %v2647, %v2646
      %v2877 = vpack.c.b16 %v2649, %v2648
      %v2878 = vpack.c.b16 %v2651, %v2650
      %v2879 = vpack.c.b16 %v2653, %v2652
      %v2880 = vpack.c.b16 %v2655, %v2654
      %v2881 = vpack.c.b16 %v2657, %v2656
      %v2882 = vpack.c.b16 %v2659, %v2658
      %v2883 = vpack.c.b16 %v2661, %v2660
      %v2884 = vpack.c.b16 %v2663, %v2662
      %v2885 = vpack.c.b16 %v2665, %v2664
      %v2886 = vpack.c.b16 %v2667, %v2666
      %v2887 = vpack.c.b16 %v2669, %v2668
      %v2888 = vpack.c.b16 %v2671, %v2670
      %v2889 = vpack.c.b16 %v2673, %v2672
      %v2890 = vpack.c.b16 %v2675, %v2674
      %v2891 = vpack.c.b16 %v2677, %v2676
      %v2892 = vpack.c.b16 %v2679, %v2678
      %v2893 = vpack.c.b16 %v2681, %v2680
      %v2894 = vpack.c.b16 %v2683, %v2682
      %v2895 = vpack.c.b16 %v2685, %v2684
      %v2896 = vpack.c.b16 %v2687, %v2686
      %v2897 = vpack.c.b16 %v2689, %v2688
      %v2898 = vpack.c.b16 %v2691, %v2690
      %v2899 = vpack.c.b16 %v2693, %v2692
      %v2900 = vpack.c.b16 %v2695, %v2694
      %v2901 = vpack.c.b16 %v2697, %v2696
      %v2902 = vpack.c.b16 %v2699, %v2698
      %v2903 = vpack.c.b16 %v2701, %v2700
      %v2904 = vpack.c.b16 %v2703, %v2702
      %v2905 = vpack.c.b16 %v2705, %v2704
      %v2906 = vpack.c.b16 %v2707, %v2706
      %v2907 = vpack.c.b16 %v2709, %v2708
      %v2908 = vpack.c.b16 %v2711, %v2710
      %v2909 = vpack.c.b16 %v2713, %v2712
      %v2910 = vpack.c.b16 %v2715, %v2714
      %v2911 = vpack.c.b16 %v2717, %v2716
      %v2912 = vpack.c.b16 %v2719, %v2718
      %v2913 = vpack.c.b16 %v2721, %v2720
      %v2914 = vpack.c.b16 %v2723, %v2722
      %v2915 = vpack.c.b16 %v2725, %v2724
      %v2916 = vpack.c.b16 %v2727, %v2726
      %v2917 = vpack.c.b16 %v2729, %v2728
      %v2918 = vpack.c.b16 %v2731, %v2730
      %v2919 = vpack.c.b16 %v2733, %v2732
      %v2920 = vpack.c.b16 %v2735, %v2734
      %v2921 = vpack.c.b16 %v2737, %v2736
      %v2922 = vpack.c.b16 %v2739, %v2738
      %v2923 = vpack.c.b16 %v2741, %v2740
      %v2924 = vpack.c.b16 %v2743, %v2742
      %v2925 = vpack.c.b16 %v2745, %v2744
      %v2926 = vpack.c.b16 %v2747, %v2746
      %v2927 = vpack.c.b16 %v2749, %v2748
      %v2928 = vpack.c.b16 %v2751, %v2750
      %v2929 = vpack.c.b16 %v2753, %v2752
      %v2930 = vpack.c.b16 %v2755, %v2754
      %v2931 = vpack.c.b16 %v2757, %v2756
      %v2932 = vpack.c.b16 %v2759, %v2758
      %v2933 = vpack.c.b16 %v2761, %v2760
      %v2934 = vpack.c.b16 %v2763, %v2762
      %v2935 = vpack.c.b16 %v2765, %v2764
      %v2936 = vpack.c.b16 %v2767, %v2766
      %v2937 = vpack.c.b16 %v2769, %v2768
      %v2938 = vpack.c.b16 %v2771, %v2770
      %v2939 = vpack.c.b16 %v2773, %v2772
      %v2940 = vpack.c.b16 %v2775, %v2774
      %v2941 = vpack.c.b16 %v2777, %v2776
      %v2942 = vpack.c.b16 %v2779, %v2778
      %v2943 = vpack.c.b16 %v2781, %v2780
      %v2944 = vpack.c.b16 %v2783, %v2782
      %v2945 = vpack.c.b16 %v2785, %v2784
      %v2946 = vpack.c.b16 %v2787, %v2786
      %v2947 = vpack.c.b16 %v2789, %v2788
      %v2948 = vpack.c.b16 %v2791, %v2790
      %v2949 = vpack.c.b16 %v2793, %v2792
      %v2950 = vpack.c.b16 %v2795, %v2794
      %v2951 = vpack.c.b16 %v2797, %v2796
      %v2952 = vpack.c.b16 %v2799, %v2798
      %v2953 = vpack.c.b16 %v2801, %v2800
      %v2954 = vpack.c.b16 %v2803, %v2802
      %v2955 = vpack.c.b16 %v2805, %v2804
      %v2956 = vpack.c.b16 %v2807, %v2806
      %v2957 = vpack.c.b16 %v2809, %v2808
      %v2958 = vpack.c.b16 %v2811, %v2810
      %v2959 = vpack.c.b16 %v2813, %v2812
      %v2960 = vpack.c.b16 %v2815, %v2814
      %v2961 = vpack.c.b16 %v2817, %v2816
      %v2962 = vpack.c.b16 %v2819, %v2818
      %v2963 = vpack.c.b16 %v2821, %v2820
      %v2964 = vpack.c.b16 %v2823, %v2822
      %v2965 = vpack.c.b16 %v2825, %v2824
      %v2966 = vpack.c.b16 %v2827, %v2826
      %v2967 = vpack.c.b16 %v2829, %v2828
      %v2968 = vpack.c.b16 %v2831, %v2830
      %v2969 = vpack.c.b16 %v2833, %v2832
      %v2970 = vpack.c.b16 %v2835, %v2834
      %v2971 = vpack.c.b16 %v2837, %v2836
      %v2972 = vpack.c.b16 %v2839, %v2838
      %v2973 = vpack.c.b16 %v2841, %v2840
      %v2974 = vpack.c.b16 %v2843, %v2842
      %v2975 = vpack.c.b16 %v2845, %v2844
      %v2976 = vpack.c.b16 %v2847, %v2846
      %v2977 = vpack.c.b16 %v2849, %v2848
      %3106 = vmatpush.bf16.msra.mxu0 %v2857
      %3107 = vmatpush.bf16.msra.mxu0 %v2856
      %3108 = vmatpush.bf16.msra.mxu0 %v2855
      %3109 = vmatpush.bf16.msra.mxu0 %v2854
      %3110 = vmatpush.bf16.msra.mxu0 %v2853
      %3111 = vmatpush.bf16.msra.mxu0 %v2852
      %3112 = vmatpush.bf16.msra.mxu0 %v2851
      %3113 = vmatpush.bf16.msra.mxu0 %v2850
      %3114 = vmatmul.bf16.gmra.mxu0 %v2062
      %v3115 = vpop.f32.mrf.mxu0
      %v3116 = vadd.f32 %v2336, %v3115
      %v3117 = vpop.f32.mrf.mxu0
      %3118 = vdwg.mxu0
      %3119 = vmatpush.bf16.msra.mxu0 %v2865
      %3120 = vmatpush.bf16.msra.mxu0 %v2864
      %3121 = vmatpush.bf16.msra.mxu0 %v2863
      %3122 = vmatpush.bf16.msra.mxu0 %v2862
      %3123 = vmatpush.bf16.msra.mxu0 %v2861
      %3124 = vmatpush.bf16.msra.mxu0 %v2860
      %3125 = vmatpush.bf16.msra.mxu0 %v2859
      %3126 = vmatpush.bf16.msra.mxu0 %v2858
      %3127 = vmatmul.bf16.gmra.mxu0 %v2063
      %v3128 = vpop.f32.mrf.mxu0
      %v3129 = vadd.f32 %v3116, %v3128
      %v3130 = vpop.f32.mrf.mxu0
      %3131 = vdwg.mxu0
      %3132 = vmatpush.bf16.msra.mxu0 %v2873
      %3133 = vmatpush.bf16.msra.mxu0 %v2872
      %3134 = vmatpush.bf16.msra.mxu0 %v2871
      %3135 = vmatpush.bf16.msra.mxu0 %v2870
      %3136 = vmatpush.bf16.msra.mxu0 %v2869
      %3137 = vmatpush.bf16.msra.mxu0 %v2868
      %3138 = vmatpush.bf16.msra.mxu0 %v2867
      %3139 = vmatpush.bf16.msra.mxu0 %v2866
      %3140 = vmatmul.bf16.gmra.mxu0 %v2064
      %v3141 = vpop.f32.mrf.mxu0
      %v3142 = vadd.f32 %v3129, %v3141
      %v3143 = vpop.f32.mrf.mxu0
      %3144 = vdwg.mxu0
      %3145 = vmatpush.bf16.msra.mxu0 %v2881
      %3146 = vmatpush.bf16.msra.mxu0 %v2880
      %3147 = vmatpush.bf16.msra.mxu0 %v2879
      %3148 = vmatpush.bf16.msra.mxu0 %v2878
      %3149 = vmatpush.bf16.msra.mxu0 %v2877
      %3150 = vmatpush.bf16.msra.mxu0 %v2876
      %3151 = vmatpush.bf16.msra.mxu0 %v2875
      %3152 = vmatpush.bf16.msra.mxu0 %v2874
      %3153 = vmatmul.bf16.gmra.mxu0 %v2065
      %v3154 = vpop.f32.mrf.mxu0
      %v3155 = vadd.f32 %v3142, %v3154
      %v3156 = vpop.f32.mrf.mxu0
      %3157 = vdwg.mxu0
      %3158 = vmatpush.bf16.msra.mxu0 %v2889
      %3159 = vmatpush.bf16.msra.mxu0 %v2888
      %3160 = vmatpush.bf16.msra.mxu0 %v2887
      %3161 = vmatpush.bf16.msra.mxu0 %v2886
      %3162 = vmatpush.bf16.msra.mxu0 %v2885
      %3163 = vmatpush.bf16.msra.mxu0 %v2884
      %3164 = vmatpush.bf16.msra.mxu0 %v2883
      %3165 = vmatpush.bf16.msra.mxu0 %v2882
      %3166 = vmatmul.bf16.gmra.mxu0 %v2066
      %v3167 = vpop.f32.mrf.mxu0
      %v3168 = vadd.f32 %v3155, %v3167
      %v3169 = vpop.f32.mrf.mxu0
      %3170 = vdwg.mxu0
      %3171 = vmatpush.bf16.msra.mxu0 %v2897
      %3172 = vmatpush.bf16.msra.mxu0 %v2896
      %3173 = vmatpush.bf16.msra.mxu0 %v2895
      %3174 = vmatpush.bf16.msra.mxu0 %v2894
      %3175 = vmatpush.bf16.msra.mxu0 %v2893
      %3176 = vmatpush.bf16.msra.mxu0 %v2892
      %3177 = vmatpush.bf16.msra.mxu0 %v2891
      %3178 = vmatpush.bf16.msra.mxu0 %v2890
      %3179 = vmatmul.bf16.gmra.mxu0 %v2067
      %v3180 = vpop.f32.mrf.mxu0
      %v3181 = vadd.f32 %v3168, %v3180
      %v3182 = vpop.f32.mrf.mxu0
      %3183 = vdwg.mxu0
      %3184 = vmatpush.bf16.msra.mxu0 %v2905
      %3185 = vmatpush.bf16.msra.mxu0 %v2904
      %3186 = vmatpush.bf16.msra.mxu0 %v2903
      %3187 = vmatpush.bf16.msra.mxu0 %v2902
      %3188 = vmatpush.bf16.msra.mxu0 %v2901
      %3189 = vmatpush.bf16.msra.mxu0 %v2900
      %3190 = vmatpush.bf16.msra.mxu0 %v2899
      %3191 = vmatpush.bf16.msra.mxu0 %v2898
      %3192 = vmatmul.bf16.gmra.mxu0 %v2068
      %v3193 = vpop.f32.mrf.mxu0
      %v3194 = vadd.f32 %v3181, %v3193
      %v3195 = vpop.f32.mrf.mxu0
      %3196 = vdwg.mxu0
      %3197 = vmatpush.bf16.msra.mxu0 %v2913
      %3198 = vmatpush.bf16.msra.mxu0 %v2912
      %3199 = vmatpush.bf16.msra.mxu0 %v2911
      %3200 = vmatpush.bf16.msra.mxu0 %v2910
      %3201 = vmatpush.bf16.msra.mxu0 %v2909
      %3202 = vmatpush.bf16.msra.mxu0 %v2908
      %3203 = vmatpush.bf16.msra.mxu0 %v2907
      %3204 = vmatpush.bf16.msra.mxu0 %v2906
      %3205 = vmatmul.bf16.gmra.mxu0 %v2069
      %v3206 = vpop.f32.mrf.mxu0
      %v3207 = vadd.f32 %v3194, %v3206
      %v3208 = vpop.f32.mrf.mxu0
      %3209 = vdwg.mxu0
      %3210 = vmatpush.bf16.msra.mxu0 %v2921
      %3211 = vmatpush.bf16.msra.mxu0 %v2920
      %3212 = vmatpush.bf16.msra.mxu0 %v2919
      %3213 = vmatpush.bf16.msra.mxu0 %v2918
      %3214 = vmatpush.bf16.msra.mxu0 %v2917
      %3215 = vmatpush.bf16.msra.mxu0 %v2916
      %3216 = vmatpush.bf16.msra.mxu0 %v2915
      %3217 = vmatpush.bf16.msra.mxu0 %v2914
      %3218 = vmatmul.bf16.gmra.mxu0 %v2070
      %v3219 = vpop.f32.mrf.mxu0
      %v3220 = vadd.f32 %v3207, %v3219
      %v3221 = vpop.f32.mrf.mxu0
      %3222 = vdwg.mxu0
      %3223 = vmatpush.bf16.msra.mxu0 %v2929
      %3224 = vmatpush.bf16.msra.mxu0 %v2928
      %3225 = vmatpush.bf16.msra.mxu0 %v2927
      %3226 = vmatpush.bf16.msra.mxu0 %v2926
      %3227 = vmatpush.bf16.msra.mxu0 %v2925
      %3228 = vmatpush.bf16.msra.mxu0 %v2924
      %3229 = vmatpush.bf16.msra.mxu0 %v2923
      %3230 = vmatpush.bf16.msra.mxu0 %v2922
      %3231 = vmatmul.bf16.gmra.mxu0 %v2071
      %v3232 = vpop.f32.mrf.mxu0
      %v3233 = vadd.f32 %v3220, %v3232
      %v3234 = vpop.f32.mrf.mxu0
      %3235 = vdwg.mxu0
      %3236 = vmatpush.bf16.msra.mxu0 %v2937
      %3237 = vmatpush.bf16.msra.mxu0 %v2936
      %3238 = vmatpush.bf16.msra.mxu0 %v2935
      %3239 = vmatpush.bf16.msra.mxu0 %v2934
      %3240 = vmatpush.bf16.msra.mxu0 %v2933
      %3241 = vmatpush.bf16.msra.mxu0 %v2932
      %3242 = vmatpush.bf16.msra.mxu0 %v2931
      %3243 = vmatpush.bf16.msra.mxu0 %v2930
      %3244 = vmatmul.bf16.gmra.mxu0 %v2072
      %v3245 = vpop.f32.mrf.mxu0
      %v3246 = vadd.f32 %v3233, %v3245
      %v3247 = vpop.f32.mrf.mxu0
      %3248 = vdwg.mxu0
      %3249 = vmatpush.bf16.msra.mxu0 %v2945
      %3250 = vmatpush.bf16.msra.mxu0 %v2944
      %3251 = vmatpush.bf16.msra.mxu0 %v2943
      %3252 = vmatpush.bf16.msra.mxu0 %v2942
      %3253 = vmatpush.bf16.msra.mxu0 %v2941
      %3254 = vmatpush.bf16.msra.mxu0 %v2940
      %3255 = vmatpush.bf16.msra.mxu0 %v2939
      %3256 = vmatpush.bf16.msra.mxu0 %v2938
      %3257 = vmatmul.bf16.gmra.mxu0 %v2073
      %v3258 = vpop.f32.mrf.mxu0
      %v3259 = vadd.f32 %v3246, %v3258
      %v3260 = vpop.f32.mrf.mxu0
      %3261 = vdwg.mxu0
      %3262 = vmatpush.bf16.msra.mxu0 %v2953
      %3263 = vmatpush.bf16.msra.mxu0 %v2952
      %3264 = vmatpush.bf16.msra.mxu0 %v2951
      %3265 = vmatpush.bf16.msra.mxu0 %v2950
      %3266 = vmatpush.bf16.msra.mxu0 %v2949
      %3267 = vmatpush.bf16.msra.mxu0 %v2948
      %3268 = vmatpush.bf16.msra.mxu0 %v2947
      %3269 = vmatpush.bf16.msra.mxu0 %v2946
      %3270 = vmatmul.bf16.gmra.mxu0 %v2074
      %v3271 = vpop.f32.mrf.mxu0
      %v3272 = vadd.f32 %v3259, %v3271
      %v3273 = vpop.f32.mrf.mxu0
      %3274 = vdwg.mxu0
      %3275 = vmatpush.bf16.msra.mxu0 %v2961
      %3276 = vmatpush.bf16.msra.mxu0 %v2960
      %3277 = vmatpush.bf16.msra.mxu0 %v2959
      %3278 = vmatpush.bf16.msra.mxu0 %v2958
      %3279 = vmatpush.bf16.msra.mxu0 %v2957
      %3280 = vmatpush.bf16.msra.mxu0 %v2956
      %3281 = vmatpush.bf16.msra.mxu0 %v2955
      %3282 = vmatpush.bf16.msra.mxu0 %v2954
      %3283 = vmatmul.bf16.gmra.mxu0 %v2075
      %v3284 = vpop.f32.mrf.mxu0
      %v3285 = vadd.f32 %v3272, %v3284
      %v3286 = vpop.f32.mrf.mxu0
      %3287 = vdwg.mxu0
      %3288 = vmatpush.bf16.msra.mxu0 %v2969
      %3289 = vmatpush.bf16.msra.mxu0 %v2968
      %3290 = vmatpush.bf16.msra.mxu0 %v2967
      %3291 = vmatpush.bf16.msra.mxu0 %v2966
      %3292 = vmatpush.bf16.msra.mxu0 %v2965
      %3293 = vmatpush.bf16.msra.mxu0 %v2964
      %3294 = vmatpush.bf16.msra.mxu0 %v2963
      %3295 = vmatpush.bf16.msra.mxu0 %v2962
      %3296 = vmatmul.bf16.gmra.mxu0 %v2076
      %v3297 = vpop.f32.mrf.mxu0
      %v3298 = vadd.f32 %v3285, %v3297
      %v3299 = vpop.f32.mrf.mxu0
      %3300 = vdwg.mxu0
      %3301 = vmatpush.bf16.msra.mxu0 %v2977
      %3302 = vmatpush.bf16.msra.mxu0 %v2976
      %3303 = vmatpush.bf16.msra.mxu0 %v2975
      %3304 = vmatpush.bf16.msra.mxu0 %v2974
      %3305 = vmatpush.bf16.msra.mxu0 %v2973
      %3306 = vmatpush.bf16.msra.mxu0 %v2972
      %3307 = vmatpush.bf16.msra.mxu0 %v2971
      %3308 = vmatpush.bf16.msra.mxu0 %v2970
      %3309 = vmatmul.bf16.gmra.mxu0 %v2077
      %v3310 = vpop.f32.mrf.mxu0
      %v3311 = vadd.f32 %v3298, %v3310
      %v3312 = vpop.f32.mrf.mxu0
      %3313 = vdwg.mxu0
      %v3314 = vadd.f32 %v1605, %v3311
      %v3315 = vld [vmem:[%s838] sm:$0x1]
      %v3316 = vld [vmem:[%s841] sm:$0x1]
      %v3317 = vsel %vm951, %v3314, 0.0
      %3318 = vadd.xlane.f32.xlu0 %v3317
      %v3319 = vpop.xlane.xlu0 %3318
      %v3320 = vmul.f32 %v3319, %v1578
      %v3321 = vsub.f32 %v3314, %v3320
      %v3322 = vmul.f32 %v3321, %v3321
      %v3323 = vsel %vm951, %v3322, 0.0
      %3324 = vadd.xlane.f32.xlu0 %v3323
      %v3325 = vpop.xlane.xlu0 %3324
      %v3326 = vmul.f32 %v3325, %v1578
      %v3327 = vadd.f32 %v3326, 1e-05
      %v3328 = vrsqrt.pop %v3327
      %v3329 = vmul.f32 %v3328, %v3327
      %v3330 = vmul.f32 %v3329, %v3328
      %v3331 = vmul.f32 0.5, %v3330
      %v3332 = vsub.f32 1.5, %v3331
      %v3333 = vmul.f32 %v3328, %v3332
      %vm3334 = vweird.f32 %v3327
      %vm3335 = vweird.f32 %v3328
      %vm3336 = vmor %vm3334, %vm3335
      %v3337 = vsel %vm3336, %v3328, %v3333
      %v3338 = vmul.f32 %v3321, %v3337
      %v3340 = vperm.slane %v3315, 0
      %v3342 = vmul.f32 %v3338, %v3340
      %v3344 = vperm.slane %v3316, 0
      %v3346 = vadd.f32 %v3342, %v3344
      %3347 = vst.msk [vmem:[#allocation2] sm:$0xff] %vm951, %v3346
      %p3348 = scmp.eq.s32.totalorder %s36, 1
      // Predicated region
      $region105: #{transformer_forward.1} parent=99 // pred_check
        %p3349 = pneg %p3348
      $region106: #{transformer_forward.1} parent=99 // pred_check_branch
        %3351 = sbr.rel (%p3349) target = $region108
      $region107: #{transformer_forward.1} parent=99 // pred_region
        %v3352 = vpack.c.bf16 %v3346, %v3346
        %v3353 = vld [vmem:[%s18] sm:$0xf]
        %v3354 = vld [vmem:[%s18 + $0x4] sm:$0xf]
        %v3355 = vld [vmem:[%s18 + $0x8] sm:$0xf]
        %v3356 = vld [vmem:[%s18 + $0xc] sm:$0xf]
        %v3357 = vld [vmem:[%s19] sm:$0x1]
        %v3359 = vperm.slane %v3357, 0
        %v3365 = vunpack.c.l.b16 %v3353
        %v3366 = vunpack.c.l.b16 %v3354
        %v3367 = vunpack.c.l.b16 %v3355
        %v3368 = vunpack.c.l.b16 %v3356
        %v3369 = vpack.c.b16 %v3366, %v3365
        %v3370 = vpack.c.b16 %v3368, %v3367
        %v3374 = vsel %vm951, %v3352, 0
        %3376 = vmatpush.bf16.msra.mxu0 0
        %3377 = vmatpush.bf16.msra.mxu0 0
        %3378 = vmatpush.bf16.msra.mxu0 0
        %3379 = vmatpush.bf16.msra.mxu0 0
        %3380 = vmatpush.bf16.msra.mxu0 0
        %3381 = vmatpush.bf16.msra.mxu0 0
        %3382 = vmatpush.bf16.msra.mxu0 %v3370
        %3383 = vmatpush.bf16.msra.mxu0 %v3369
        %3384 = vmatmul.bf16.gmra.mxu0 %v3374
        %v3385 = vpop.f32.mrf.mxu0
        %v3386 = vadd.f32 %v3359, %v3385
        %v3387 = vpop.f32.mrf.mxu0
        %3388 = vdwg.mxu0
        %3389 = vst [vmem:[%s845] sm:$0xff] %v3386
      $region108: #{transformer_forward.1} parent=99 // pred_fallthru
        _
      %p3390 = scmp.lt.s32.totalorder %s35, 1
      %s3391 = scalar_select %p3390, %s35, 1
      %s3392 = smul.addr %s3391, 8
      %s3393 = scalar_lea.vmem %s20, %s3392
      // Predicated region
      $region109: #{transformer_forward.1} parent=99 // pred_check
        %p3394 = pneg %p551
      $region110: #{transformer_forward.1} parent=99 // pred_check_branch
        %3396 = sbr.rel (%p3394) target = $region112
      $region111: #{transformer_forward.1} parent=99 // pred_region
        _
      $region112: #{transformer_forward.1} parent=99 // pred_fallthru
        _
    $region100: #{transformer_forward.1} parent=5 // pred_fallthru
      _
    %p3397 = scmp.le.s32.totalorder 2, %s26
    // Predicated region
    $region113: #{transformer_forward.1} parent=5 // pred_check
      %p3398 = pneg %p3397
    $region114: #{transformer_forward.1} parent=5 // pred_check_branch
      %3400 = sbr.rel (%p3398) target = $region116
    $region115: #{transformer_forward.1} parent=5 // pred_region
      %s3401 = ssub.s32 %s26, 2
      // Predicated region
      $region117: #{transformer_forward.1} parent=115 // pred_check
        %p3402 = pneg %p557
      $region118: #{transformer_forward.1} parent=115 // pred_check_branch
        %3404 = sbr.rel (%p3402) target = $region120
      $region119: #{transformer_forward.1} parent=115 // pred_region
        %p3405 = scmp.lt.s32.totalorder %s37, 1
        %s3406 = scalar_select %p3405, %s37, 1
        %s3407 = smul.addr %s3406, 8
        %s3408 = scalar_lea.vmem %s20, %s3407
      $region120: #{transformer_forward.1} parent=115 // pred_fallthru
        _
    $region116: #{transformer_forward.1} parent=5 // pred_fallthru
      _
  $region6: #{transformer_forward.1} parent=0 // loop_footer
    %s30 = sadd.s32 1, %s26
  $region7: #{transformer_forward.1} parent=0 // loop_footer_branch
    %25 = sbr.rel target = $region3
  $region8: #{transformer_forward.1} parent=0 // loop_exit
    _

</llo_original>
